<compile_context>
chip_gen: v7x
topology: tpu7x:2x2x1
jax: 0.10.0
libtpu: 0.0.40
codegen_flags: <defaults>
</compile_context>

<pallas_src>
import functools

import jax
import jax.numpy as jnp
import numpy as np
from jax import lax
from jax.experimental import pallas as pl
from jax.experimental.pallas import tpu as pltpu


# ----------------------------------------------------------------------------
# Pallas kernel
# ----------------------------------------------------------------------------
def bilstm_kernel(
    x_ref,       # (T*Bp, D)   bf16  time-major, batch-padded, flattened input
    wih_f_ref,   # (D, 4*Hp)   bf16  forward  input->gate weights (gate-padded)
    wih_b_ref,   # (D, 4*Hp)   bf16  backward input->gate weights
    b_f_ref,     # (1, 4*Hp)   f32   forward  bias (b_ih + b_hh)
    b_b_ref,     # (1, 4*Hp)   f32   backward bias
    whh_f_ref,   # (Hp, 4*Hp)  bf16  forward  hidden->gate weights
    whh_b_ref,   # (Hp, 4*Hp)  bf16  backward hidden->gate weights
    wfc_ref,     # (2*Hp, C)   bf16  FC weight (transposed, zero-padded rows)
    bfc_ref,     # (1, C)      f32   FC bias
    out_ref,     # (Bp, C)     f32   sigmoid probabilities
    pg_f_ref,    # scratch VMEM (T, Bp, 4*Hp) f32 : forward  input pre-gates
    pg_b_ref,    # scratch VMEM (T, Bp, 4*Hp) f32 : backward input pre-gates
    *,
    hidden_p: int,
    seq_len: int,
    batch_p: int,
    unroll: int,
):
    Hp, T, Bp = hidden_p, seq_len, batch_p

    # ---- 1. hoisted input projection: one bf16 MXU matmul per direction for
    #         ALL timesteps, bias folded in, written straight into scratch. --
    x = x_ref[...]
    pg_f_ref[...] = (
        jnp.dot(x, wih_f_ref[...], preferred_element_type=jnp.float32)
        + b_f_ref[...]).reshape(T, Bp, 4 * Hp)
    pg_b_ref[...] = (
        jnp.dot(x, wih_b_ref[...], preferred_element_type=jnp.float32)
        + b_b_ref[...]).reshape(T, Bp, 4 * Hp)

    # recurrent weights are loop-invariant: read once, close over the values.
    whh_f = whh_f_ref[...]
    whh_b = whh_b_ref[...]

    def cell(g, c):
        # PyTorch gate order [i | f | g | o]; static 128-lane-aligned slices.
        i = jax.nn.sigmoid(g[:, 0 * Hp:1 * Hp])
        f = jax.nn.sigmoid(g[:, 1 * Hp:2 * Hp])
        gg = jnp.tanh(g[:, 2 * Hp:3 * Hp])
        o = jax.nn.sigmoid(g[:, 3 * Hp:4 * Hp])
        c_new = f * c + i * gg
        return o * jnp.tanh(c_new), c_new

    # ---- 2. serial recurrence; h/c are vreg-resident fori_loop carries. ----
    def step(t, carry):
        h_f, c_f, h_b, c_b = carry
        hg_f = jnp.dot(h_f.astype(jnp.bfloat16), whh_f,
                       preferred_element_type=jnp.float32)     # (Bp, 4Hp)
        hg_b = jnp.dot(h_b.astype(jnp.bfloat16), whh_b,
                       preferred_element_type=jnp.float32)     # (Bp, 4Hp)
        h_f, c_f = cell(pg_f_ref[t] + hg_f, c_f)               # fwd: time t
        h_b, c_b = cell(pg_b_ref[T - 1 - t] + hg_b, c_b)       # bwd: T-1-t
        return h_f, c_f, h_b, c_b

    z = jnp.zeros((Bp, Hp), jnp.float32)         # PyTorch default h0 = c0 = 0
    h_f, _, h_b, _ = lax.fori_loop(0, T, step, (z, z, z, z), unroll=unroll)

    # ---- 3. FC over cat([h_fwd, h_bwd]) + sigmoid ---------------------------
    hn = jnp.concatenate([h_f, h_b], axis=1).astype(jnp.bfloat16)
    logits = jnp.dot(hn, wfc_ref[...],
                     preferred_element_type=jnp.float32) + bfc_ref[...]
    out_ref[...] = jax.nn.sigmoid(logits)


# ----------------------------------------------------------------------------
# Parameter packing (padding / bf16 cast) + wrapper
# ----------------------------------------------------------------------------
def _round_up(n, m):
    return ((n + m - 1) // m) * m


def _pad_gates(w, H, Hp):
    """(rows, 4H), gate order [i|f|g|o] -> (rows, 4Hp), zero-padded per gate."""
    rows = w.shape[0]
    w = w.reshape(rows, 4, H)
    w = jnp.pad(w, ((0, 0), (0, 0), (0, Hp - H)))
    return w.reshape(rows, 4 * Hp)


def _prepare_inputs(x, params, H):
    Hp = _round_up(H, 128)
    B, T, D = x.shape
    Bp = _round_up(B, 8)

    # batch_first -> time-major, pad batch to 8 sublanes, cast bf16, flatten.
    xt = jnp.transpose(x, (1, 0, 2))
    if Bp != B:
        xt = jnp.pad(xt, ((0, 0), (0, Bp - B), (0, 0)))
    x_flat = xt.astype(jnp.bfloat16).reshape(T * Bp, D)

    wih_f = _pad_gates(params["wih_f"], H, Hp).astype(jnp.bfloat16)
    wih_b = _pad_gates(params["wih_b"], H, Hp).astype(jnp.bfloat16)
    b_f = _pad_gates(params["b_f"], H, Hp).astype(jnp.float32)
    b_b = _pad_gates(params["b_b"], H, Hp).astype(jnp.float32)

    whh_f = jnp.pad(_pad_gates(params["whh_f"], H, Hp),
                    ((0, Hp - H), (0, 0))).astype(jnp.bfloat16)
    whh_b = jnp.pad(_pad_gates(params["whh_b"], H, Hp),
                    ((0, Hp - H), (0, 0))).astype(jnp.bfloat16)

    wfc = jnp.concatenate(
        [jnp.pad(params["wfc"][:H], ((0, Hp - H), (0, 0))),
         jnp.pad(params["wfc"][H:], ((0, Hp - H), (0, 0)))],
        axis=0).astype(jnp.bfloat16)
    bfc = params["bfc"].astype(jnp.float32)

    return x_flat, wih_f, wih_b, b_f, b_b, whh_f, whh_b, wfc, bfc, Hp, Bp


@functools.partial(jax.jit, static_argnames=("hidden_size", "num_classes"))
def bilstm_classifier(x, params, *, hidden_size: int, num_classes: int):
    """x: (B, T, D) float32, batch_first like the PyTorch module."""
    B, T, D = x.shape
    (x_flat, wih_f, wih_b, b_f, b_b, whh_f, whh_b, wfc, bfc,
     Hp, Bp) = _prepare_inputs(x, params, hidden_size)

    kernel = functools.partial(
        bilstm_kernel, hidden_p=Hp, seq_len=T, batch_p=Bp,
        unroll=T if T <= 8 else 8)

    # Explicit VMEM budget: pre-gate scratches + inputs/weights + projection
    # temporaries + slack; clamp into [16 MiB, 64 MiB] (valid on every chip).
    pg_bytes = 2 * T * Bp * 4 * Hp * 4
    x_bytes = T * Bp * D * 2
    w_bytes = (2 * D * 4 * Hp + 2 * Hp * 4 * Hp + 2 * Hp * num_classes) * 2 \
        + (8 * Hp + num_classes) * 4
    vmem_limit = int(min(max(2 * pg_bytes + 2 * x_bytes + 2 * w_bytes
                             + (4 << 20), 16 << 20), 64 << 20))

    vmem = pl.BlockSpec(memory_space=pltpu.MemorySpace.VMEM)
    out = pl.pallas_call(
        kernel,
        out_shape=jax.ShapeDtypeStruct((Bp, num_classes), jnp.float32),
        in_specs=[vmem] * 9,
        out_specs=vmem,
        scratch_shapes=[
            pltpu.VMEM((T, Bp, 4 * Hp), jnp.float32),   # forward pre-gates
            pltpu.VMEM((T, Bp, 4 * Hp), jnp.float32),   # backward pre-gates
        ],
        compiler_params=pltpu.CompilerParams(vmem_limit_bytes=vmem_limit),
    )(x_flat, wih_f, wih_b, b_f, b_b, whh_f, whh_b, wfc, bfc)
    return out[:B]


# ----------------------------------------------------------------------------
# Pure-JAX references (mirror torch.nn.LSTM bidirectional + Linear + Sigmoid).
# cast_bf16=True emulates the kernel's bf16-matmul / f32-state numerics.
# ----------------------------------------------------------------------------
def _lstm_dir_ref(xs, wih, whh, b, H, cast_bf16):
    B = xs.shape[1]
    if cast_bf16:
        xs = xs.astype(jnp.bfloat16)
        wih_m, whh_m = wih.astype(jnp.bfloat16), whh.astype(jnp.bfloat16)
        cast_h = lambda h: h.astype(jnp.bfloat16)
    else:
        wih_m, whh_m = wih, whh
        cast_h = lambda h: h

    def step(carry, x_t):
        h, c = carry
        gates = (jnp.dot(x_t, wih_m, preferred_element_type=jnp.float32) + b
                 + jnp.dot(cast_h(h), whh_m, preferred_element_type=jnp.float32))
        i = jax.nn.sigmoid(gates[:, 0 * H:1 * H])
        f = jax.nn.sigmoid(gates[:, 1 * H:2 * H])
        g = jnp.tanh(gates[:, 2 * H:3 * H])
        o = jax.nn.sigmoid(gates[:, 3 * H:4 * H])
        c_new = f * c + i * g
        h_new = o * jnp.tanh(c_new)
        return (h_new, c_new), None

    h0 = jnp.zeros((B, H), jnp.float32)
    c0 = jnp.zeros((B, H), jnp.float32)
    (h, _), _ = lax.scan(step, (h0, c0), xs)
    return h


def reference(x, params, *, hidden_size: int, cast_bf16: bool = False):
    H = hidden_size
    xs = jnp.transpose(x, (1, 0, 2))
    h_f = _lstm_dir_ref(xs, params["wih_f"], params["whh_f"], params["b_f"],
                        H, cast_bf16)
    h_b = _lstm_dir_ref(xs[::-1], params["wih_b"], params["whh_b"],
                        params["b_b"], H, cast_bf16)
    hn = jnp.concatenate([h_f, h_b], axis=1)
    if cast_bf16:
        logits = jnp.dot(hn.astype(jnp.bfloat16),
                         params["wfc"].astype(jnp.bfloat16),
                         preferred_element_type=jnp.float32) + params["bfc"]
    else:
        logits = hn @ params["wfc"] + params["bfc"]
    return jax.nn.sigmoid(logits)


# ----------------------------------------------------------------------------
# Deterministic parameter init (PyTorch-style uniform(-1/sqrt(H), 1/sqrt(H)))
# ----------------------------------------------------------------------------
def init_params(key, input_size: int, hidden_size: int, num_classes: int):
    H, D, C = hidden_size, input_size, num_classes
    bound = 1.0 / np.sqrt(H)
    keys = jax.random.split(key, 10)

    def u(k, shape):
        return jax.random.uniform(k, shape, jnp.float32, -bound, bound)

    return {
        # forward direction (weights stored transposed: in_features x 4H)
        "wih_f": u(keys[0], (D, 4 * H)),
        "whh_f": u(keys[1], (H, 4 * H)),
        "b_f": u(keys[2], (1, 4 * H)) + u(keys[3], (1, 4 * H)),  # b_ih + b_hh
        # backward direction
        "wih_b": u(keys[4], (D, 4 * H)),
        "whh_b": u(keys[5], (H, 4 * H)),
        "b_b": u(keys[6], (1, 4 * H)) + u(keys[7], (1, 4 * H)),
        # fc: Linear(2H, C), stored transposed as (2H, C)
        "wfc": u(keys[8], (2 * H, C)),
        "bfc": u(keys[9], (1, C)),
    }


if __name__ == "__main__":
    B, T, D, H, C = 8, 8, 16, 32, 1

    key = jax.random.PRNGKey(0)
    kx, kp = jax.random.split(key)
    x = jax.random.normal(kx, (B, T, D), jnp.float32)
    params = init_params(kp, input_size=D, hidden_size=H, num_classes=C)

    out = bilstm_classifier(x, params, hidden_size=H, num_classes=C)
    out = np.asarray(jax.block_until_ready(out))

    # tight check: reference emulating the kernel's bf16-matmul / f32-state math
    ref_bf16 = np.asarray(reference(x, params, hidden_size=H, cast_bf16=True))
    np.testing.assert_allclose(out, ref_bf16, rtol=1e-3, atol=1e-3)

    # loose check: full-f32 reference (PyTorch semantics), bf16-level tolerance
    ref_f32 = np.asarray(reference(x, params, hidden_size=H, cast_bf16=False))
    np.testing.assert_allclose(out, ref_f32, rtol=2e-2, atol=2e-2)

    print("KERNEL_OK")
</pallas_src>

<mosaic_0001>
module attributes {stable_mosaic.version = 11 : i64} {
  func.func @bilstm_kernel(%arg0: memref<64x16xbf16, #tpu.memory_space<vmem>>, %arg1: memref<16x512xbf16, #tpu.memory_space<vmem>>, %arg2: memref<16x512xbf16, #tpu.memory_space<vmem>>, %arg3: memref<1x512xf32, #tpu.memory_space<vmem>>, %arg4: memref<1x512xf32, #tpu.memory_space<vmem>>, %arg5: memref<128x512xbf16, #tpu.memory_space<vmem>>, %arg6: memref<128x512xbf16, #tpu.memory_space<vmem>>, %arg7: memref<256x1xbf16, #tpu.memory_space<vmem>>, %arg8: memref<1x1xf32, #tpu.memory_space<vmem>>, %arg9: memref<8x1xf32, #tpu.memory_space<vmem>>, %arg10: memref<8x8x512xf32, #tpu.memory_space<vmem>>, %arg11: memref<8x8x512xf32, #tpu.memory_space<vmem>>) attributes {dimension_semantics = [], scalar_prefetch = 0 : i64, scratch_operands = 2 : i64, tpu.core_type = #tpu.core_type<tc>} {
    %c0 = arith.constant 0 : index
    %c0_0 = arith.constant 0 : index
    %0 = vector.load %arg0[%c0, %c0_0] : memref<64x16xbf16, #tpu.memory_space<vmem>>, vector<64x16xbf16>
    %c0_1 = arith.constant 0 : index
    %c0_2 = arith.constant 0 : index
    %1 = vector.load %arg1[%c0_1, %c0_2] : memref<16x512xbf16, #tpu.memory_space<vmem>>, vector<16x512xbf16>
    %cst = arith.constant dense<0.000000e+00> : vector<64x512xf32>
    %2 = tpu.matmul %0, %1, %cst {dimension_numbers = #tpu.dot_dimension_numbers<[1], [0], [0], [1], [0, 0, 1, 1], [], []>} : vector<64x16xbf16>, vector<16x512xbf16>, vector<64x512xf32> -> vector<64x512xf32>
    %c0_3 = arith.constant 0 : index
    %c0_4 = arith.constant 0 : index
    %3 = vector.load %arg3[%c0_3, %c0_4] : memref<1x512xf32, #tpu.memory_space<vmem>>, vector<1x512xf32>
    %4 = vector.broadcast %3 : vector<1x512xf32> to vector<64x512xf32>
    %5 = arith.addf %2, %4 : vector<64x512xf32>
    %6 = vector.shape_cast %5 : vector<64x512xf32> to vector<8x8x512xf32>
    %c0_5 = arith.constant 0 : index
    %c0_6 = arith.constant 0 : index
    %c0_7 = arith.constant 0 : index
    %7 = vector.load %arg10[%c0_5, %c0_6, %c0_7] : memref<8x8x512xf32, #tpu.memory_space<vmem>>, vector<8x8x512xf32>
    tpu.vector_store %arg10[%c0_5, %c0_6, %c0_7], %6 {strides = array<i32>} : memref<8x8x512xf32, #tpu.memory_space<vmem>>, vector<8x8x512xf32>,
    %c0_8 = arith.constant 0 : index
    %c0_9 = arith.constant 0 : index
    %8 = vector.load %arg2[%c0_8, %c0_9] : memref<16x512xbf16, #tpu.memory_space<vmem>>, vector<16x512xbf16>
    %cst_10 = arith.constant dense<0.000000e+00> : vector<64x512xf32>
    %9 = tpu.matmul %0, %8, %cst_10 {dimension_numbers = #tpu.dot_dimension_numbers<[1], [0], [0], [1], [0, 0, 1, 1], [], []>} : vector<64x16xbf16>, vector<16x512xbf16>, vector<64x512xf32> -> vector<64x512xf32>
    %c0_11 = arith.constant 0 : index
    %c0_12 = arith.constant 0 : index
    %10 = vector.load %arg4[%c0_11, %c0_12] : memref<1x512xf32, #tpu.memory_space<vmem>>, vector<1x512xf32>
    %11 = vector.broadcast %10 : vector<1x512xf32> to vector<64x512xf32>
    %12 = arith.addf %9, %11 : vector<64x512xf32>
    %13 = vector.shape_cast %12 : vector<64x512xf32> to vector<8x8x512xf32>
    %c0_13 = arith.constant 0 : index
    %c0_14 = arith.constant 0 : index
    %c0_15 = arith.constant 0 : index
    %14 = vector.load %arg11[%c0_13, %c0_14, %c0_15] : memref<8x8x512xf32, #tpu.memory_space<vmem>>, vector<8x8x512xf32>
    tpu.vector_store %arg11[%c0_13, %c0_14, %c0_15], %13 {strides = array<i32>} : memref<8x8x512xf32, #tpu.memory_space<vmem>>, vector<8x8x512xf32>,
    %c0_16 = arith.constant 0 : index
    %c0_17 = arith.constant 0 : index
    %15 = vector.load %arg5[%c0_16, %c0_17] : memref<128x512xbf16, #tpu.memory_space<vmem>>, vector<128x512xbf16>
    %c0_18 = arith.constant 0 : index
    %c0_19 = arith.constant 0 : index
    %16 = vector.load %arg6[%c0_18, %c0_19] : memref<128x512xbf16, #tpu.memory_space<vmem>>, vector<128x512xbf16>
    %cst_20 = arith.constant 0.000000e+00 : f32
    %17 = vector.broadcast %cst_20 : f32 to vector<8x128xf32>
    %c0_i32 = arith.constant 0 : i32
    %18 = arith.truncf %17 : vector<8x128xf32> to vector<8x128xbf16>
    %cst_21 = arith.constant dense<0.000000e+00> : vector<8x512xf32>
    %19 = tpu.matmul %18, %15, %cst_21 {dimension_numbers = #tpu.dot_dimension_numbers<[1], [0], [0], [1], [0, 0, 1, 1], [], []>} : vector<8x128xbf16>, vector<128x512xbf16>, vector<8x512xf32> -> vector<8x512xf32>
    %20 = arith.truncf %17 : vector<8x128xf32> to vector<8x128xbf16>
    %cst_22 = arith.constant dense<0.000000e+00> : vector<8x512xf32>
    %21 = tpu.matmul %20, %16, %cst_22 {dimension_numbers = #tpu.dot_dimension_numbers<[1], [0], [0], [1], [0, 0, 1, 1], [], []>} : vector<8x128xbf16>, vector<128x512xbf16>, vector<8x512xf32> -> vector<8x512xf32>
    %22 = arith.index_cast %c0_i32 : i32 to index
    %c0_23 = arith.constant 0 : index
    %c0_24 = arith.constant 0 : index
    %23 = vector.load %arg10[%22, %c0_23, %c0_24] : memref<8x8x512xf32, #tpu.memory_space<vmem>>, vector<1x8x512xf32>
    %24 = vector.shape_cast %23 : vector<1x8x512xf32> to vector<8x512xf32>
    %25 = arith.addf %24, %19 : vector<8x512xf32>
    %26 = vector.extract_strided_slice %25 {offsets = [0, 0], sizes = [8, 128], strides = [1, 1]} : vector<8x512xf32> to vector<8x128xf32>
    %27 = arith.negf %26 : vector<8x128xf32>
    %28 = math.exp %27 : vector<8x128xf32>
    %cst_25 = arith.constant 1.000000e+00 : f32
    %29 = vector.broadcast %cst_25 : f32 to vector<8x128xf32>
    %30 = arith.addf %29, %28 : vector<8x128xf32>
    %31 = arith.divf %29, %30 : vector<8x128xf32>
    %32 = vector.extract_strided_slice %25 {offsets = [0, 128], sizes = [8, 128], strides = [1, 1]} : vector<8x512xf32> to vector<8x128xf32>
    %33 = arith.negf %32 : vector<8x128xf32>
    %34 = math.exp %33 : vector<8x128xf32>
    %cst_26 = arith.constant 1.000000e+00 : f32
    %35 = vector.broadcast %cst_26 : f32 to vector<8x128xf32>
    %36 = arith.addf %35, %34 : vector<8x128xf32>
    %37 = arith.divf %35, %36 : vector<8x128xf32>
    %38 = vector.extract_strided_slice %25 {offsets = [0, 256], sizes = [8, 128], strides = [1, 1]} : vector<8x512xf32> to vector<8x128xf32>
    %39 = math.tanh %38 : vector<8x128xf32>
    %40 = vector.extract_strided_slice %25 {offsets = [0, 384], sizes = [8, 128], strides = [1, 1]} : vector<8x512xf32> to vector<8x128xf32>
    %41 = arith.negf %40 : vector<8x128xf32>
    %42 = math.exp %41 : vector<8x128xf32>
    %cst_27 = arith.constant 1.000000e+00 : f32
    %43 = vector.broadcast %cst_27 : f32 to vector<8x128xf32>
    %44 = arith.addf %43, %42 : vector<8x128xf32>
    %45 = arith.divf %43, %44 : vector<8x128xf32>
    %46 = arith.mulf %37, %17 : vector<8x128xf32>
    %47 = arith.mulf %31, %39 : vector<8x128xf32>
    %48 = arith.addf %46, %47 : vector<8x128xf32>
    %49 = math.tanh %48 : vector<8x128xf32>
    %50 = arith.mulf %45, %49 : vector<8x128xf32>
    %c7_i32 = arith.constant 7 : i32
    %51 = arith.subi %c7_i32, %c0_i32 : i32
    %52 = arith.index_cast %51 : i32 to index
    %c0_28 = arith.constant 0 : index
    %c0_29 = arith.constant 0 : index
    %53 = vector.load %arg11[%52, %c0_28, %c0_29] : memref<8x8x512xf32, #tpu.memory_space<vmem>>, vector<1x8x512xf32>
    %54 = vector.shape_cast %53 : vector<1x8x512xf32> to vector<8x512xf32>
    %55 = arith.addf %54, %21 : vector<8x512xf32>
    %56 = vector.extract_strided_slice %55 {offsets = [0, 0], sizes = [8, 128], strides = [1, 1]} : vector<8x512xf32> to vector<8x128xf32>
    %57 = arith.negf %56 : vector<8x128xf32>
    %58 = math.exp %57 : vector<8x128xf32>
    %cst_30 = arith.constant 1.000000e+00 : f32
    %59 = vector.broadcast %cst_30 : f32 to vector<8x128xf32>
    %60 = arith.addf %59, %58 : vector<8x128xf32>
    %61 = arith.divf %59, %60 : vector<8x128xf32>
    %62 = vector.extract_strided_slice %55 {offsets = [0, 128], sizes = [8, 128], strides = [1, 1]} : vector<8x512xf32> to vector<8x128xf32>
    %63 = arith.negf %62 : vector<8x128xf32>
    %64 = math.exp %63 : vector<8x128xf32>
    %cst_31 = arith.constant 1.000000e+00 : f32
    %65 = vector.broadcast %cst_31 : f32 to vector<8x128xf32>
    %66 = arith.addf %65, %64 : vector<8x128xf32>
    %67 = arith.divf %65, %66 : vector<8x128xf32>
    %68 = vector.extract_strided_slice %55 {offsets = [0, 256], sizes = [8, 128], strides = [1, 1]} : vector<8x512xf32> to vector<8x128xf32>
    %69 = math.tanh %68 : vector<8x128xf32>
    %70 = vector.extract_strided_slice %55 {offsets = [0, 384], sizes = [8, 128], strides = [1, 1]} : vector<8x512xf32> to vector<8x128xf32>
    %71 = arith.negf %70 : vector<8x128xf32>
    %72 = math.exp %71 : vector<8x128xf32>
    %cst_32 = arith.constant 1.000000e+00 : f32
    %73 = vector.broadcast %cst_32 : f32 to vector<8x128xf32>
    %74 = arith.addf %73, %72 : vector<8x128xf32>
    %75 = arith.divf %73, %74 : vector<8x128xf32>
    %76 = arith.mulf %67, %17 : vector<8x128xf32>
    %77 = arith.mulf %61, %69 : vector<8x128xf32>
    %78 = arith.addf %76, %77 : vector<8x128xf32>
    %79 = math.tanh %78 : vector<8x128xf32>
    %80 = arith.mulf %75, %79 : vector<8x128xf32>
    %c1_i32 = arith.constant 1 : i32
    %81 = arith.truncf %50 : vector<8x128xf32> to vector<8x128xbf16>
    %cst_33 = arith.constant dense<0.000000e+00> : vector<8x512xf32>
    %82 = tpu.matmul %81, %15, %cst_33 {dimension_numbers = #tpu.dot_dimension_numbers<[1], [0], [0], [1], [0, 0, 1, 1], [], []>} : vector<8x128xbf16>, vector<128x512xbf16>, vector<8x512xf32> -> vector<8x512xf32>
    %83 = arith.truncf %80 : vector<8x128xf32> to vector<8x128xbf16>
    %cst_34 = arith.constant dense<0.000000e+00> : vector<8x512xf32>
    %84 = tpu.matmul %83, %16, %cst_34 {dimension_numbers = #tpu.dot_dimension_numbers<[1], [0], [0], [1], [0, 0, 1, 1], [], []>} : vector<8x128xbf16>, vector<128x512xbf16>, vector<8x512xf32> -> vector<8x512xf32>
    %85 = arith.index_cast %c1_i32 : i32 to index
    %c0_35 = arith.constant 0 : index
    %c0_36 = arith.constant 0 : index
    %86 = vector.load %arg10[%85, %c0_35, %c0_36] : memref<8x8x512xf32, #tpu.memory_space<vmem>>, vector<1x8x512xf32>
    %87 = vector.shape_cast %86 : vector<1x8x512xf32> to vector<8x512xf32>
    %88 = arith.addf %87, %82 : vector<8x512xf32>
    %89 = vector.extract_strided_slice %88 {offsets = [0, 0], sizes = [8, 128], strides = [1, 1]} : vector<8x512xf32> to vector<8x128xf32>
    %90 = arith.negf %89 : vector<8x128xf32>
    %91 = math.exp %90 : vector<8x128xf32>
    %cst_37 = arith.constant 1.000000e+00 : f32
    %92 = vector.broadcast %cst_37 : f32 to vector<8x128xf32>
    %93 = arith.addf %92, %91 : vector<8x128xf32>
    %94 = arith.divf %92, %93 : vector<8x128xf32>
    %95 = vector.extract_strided_slice %88 {offsets = [0, 128], sizes = [8, 128], strides = [1, 1]} : vector<8x512xf32> to vector<8x128xf32>
    %96 = arith.negf %95 : vector<8x128xf32>
    %97 = math.exp %96 : vector<8x128xf32>
    %cst_38 = arith.constant 1.000000e+00 : f32
    %98 = vector.broadcast %cst_38 : f32 to vector<8x128xf32>
    %99 = arith.addf %98, %97 : vector<8x128xf32>
    %100 = arith.divf %98, %99 : vector<8x128xf32>
    %101 = vector.extract_strided_slice %88 {offsets = [0, 256], sizes = [8, 128], strides = [1, 1]} : vector<8x512xf32> to vector<8x128xf32>
    %102 = math.tanh %101 : vector<8x128xf32>
    %103 = vector.extract_strided_slice %88 {offsets = [0, 384], sizes = [8, 128], strides = [1, 1]} : vector<8x512xf32> to vector<8x128xf32>
    %104 = arith.negf %103 : vector<8x128xf32>
    %105 = math.exp %104 : vector<8x128xf32>
    %cst_39 = arith.constant 1.000000e+00 : f32
    %106 = vector.broadcast %cst_39 : f32 to vector<8x128xf32>
    %107 = arith.addf %106, %105 : vector<8x128xf32>
    %108 = arith.divf %106, %107 : vector<8x128xf32>
    %109 = arith.mulf %100, %48 : vector<8x128xf32>
    %110 = arith.mulf %94, %102 : vector<8x128xf32>
    %111 = arith.addf %109, %110 : vector<8x128xf32>
    %112 = math.tanh %111 : vector<8x128xf32>
    %113 = arith.mulf %108, %112 : vector<8x128xf32>
    %c7_i32_40 = arith.constant 7 : i32
    %114 = arith.subi %c7_i32_40, %c1_i32 : i32
    %115 = arith.index_cast %114 : i32 to index
    %c0_41 = arith.constant 0 : index
    %c0_42 = arith.constant 0 : index
    %116 = vector.load %arg11[%115, %c0_41, %c0_42] : memref<8x8x512xf32, #tpu.memory_space<vmem>>, vector<1x8x512xf32>
    %117 = vector.shape_cast %116 : vector<1x8x512xf32> to vector<8x512xf32>
    %118 = arith.addf %117, %84 : vector<8x512xf32>
    %119 = vector.extract_strided_slice %118 {offsets = [0, 0], sizes = [8, 128], strides = [1, 1]} : vector<8x512xf32> to vector<8x128xf32>
    %120 = arith.negf %119 : vector<8x128xf32>
    %121 = math.exp %120 : vector<8x128xf32>
    %cst_43 = arith.constant 1.000000e+00 : f32
    %122 = vector.broadcast %cst_43 : f32 to vector<8x128xf32>
    %123 = arith.addf %122, %121 : vector<8x128xf32>
    %124 = arith.divf %122, %123 : vector<8x128xf32>
    %125 = vector.extract_strided_slice %118 {offsets = [0, 128], sizes = [8, 128], strides = [1, 1]} : vector<8x512xf32> to vector<8x128xf32>
    %126 = arith.negf %125 : vector<8x128xf32>
    %127 = math.exp %126 : vector<8x128xf32>
    %cst_44 = arith.constant 1.000000e+00 : f32
    %128 = vector.broadcast %cst_44 : f32 to vector<8x128xf32>
    %129 = arith.addf %128, %127 : vector<8x128xf32>
    %130 = arith.divf %128, %129 : vector<8x128xf32>
    %131 = vector.extract_strided_slice %118 {offsets = [0, 256], sizes = [8, 128], strides = [1, 1]} : vector<8x512xf32> to vector<8x128xf32>
    %132 = math.tanh %131 : vector<8x128xf32>
    %133 = vector.extract_strided_slice %118 {offsets = [0, 384], sizes = [8, 128], strides = [1, 1]} : vector<8x512xf32> to vector<8x128xf32>
    %134 = arith.negf %133 : vector<8x128xf32>
    %135 = math.exp %134 : vector<8x128xf32>
    %cst_45 = arith.constant 1.000000e+00 : f32
    %136 = vector.broadcast %cst_45 : f32 to vector<8x128xf32>
    %137 = arith.addf %136, %135 : vector<8x128xf32>
    %138 = arith.divf %136, %137 : vector<8x128xf32>
    %139 = arith.mulf %130, %78 : vector<8x128xf32>
    %140 = arith.mulf %124, %132 : vector<8x128xf32>
    %141 = arith.addf %139, %140 : vector<8x128xf32>
    %142 = math.tanh %141 : vector<8x128xf32>
    %143 = arith.mulf %138, %142 : vector<8x128xf32>
    %c2_i32 = arith.constant 2 : i32
    %144 = arith.truncf %113 : vector<8x128xf32> to vector<8x128xbf16>
    %cst_46 = arith.constant dense<0.000000e+00> : vector<8x512xf32>
    %145 = tpu.matmul %144, %15, %cst_46 {dimension_numbers = #tpu.dot_dimension_numbers<[1], [0], [0], [1], [0, 0, 1, 1], [], []>} : vector<8x128xbf16>, vector<128x512xbf16>, vector<8x512xf32> -> vector<8x512xf32>
    %146 = arith.truncf %143 : vector<8x128xf32> to vector<8x128xbf16>
    %cst_47 = arith.constant dense<0.000000e+00> : vector<8x512xf32>
    %147 = tpu.matmul %146, %16, %cst_47 {dimension_numbers = #tpu.dot_dimension_numbers<[1], [0], [0], [1], [0, 0, 1, 1], [], []>} : vector<8x128xbf16>, vector<128x512xbf16>, vector<8x512xf32> -> vector<8x512xf32>
    %148 = arith.index_cast %c2_i32 : i32 to index
    %c0_48 = arith.constant 0 : index
    %c0_49 = arith.constant 0 : index
    %149 = vector.load %arg10[%148, %c0_48, %c0_49] : memref<8x8x512xf32, #tpu.memory_space<vmem>>, vector<1x8x512xf32>
    %150 = vector.shape_cast %149 : vector<1x8x512xf32> to vector<8x512xf32>
    %151 = arith.addf %150, %145 : vector<8x512xf32>
    %152 = vector.extract_strided_slice %151 {offsets = [0, 0], sizes = [8, 128], strides = [1, 1]} : vector<8x512xf32> to vector<8x128xf32>
    %153 = arith.negf %152 : vector<8x128xf32>
    %154 = math.exp %153 : vector<8x128xf32>
    %cst_50 = arith.constant 1.000000e+00 : f32
    %155 = vector.broadcast %cst_50 : f32 to vector<8x128xf32>
    %156 = arith.addf %155, %154 : vector<8x128xf32>
    %157 = arith.divf %155, %156 : vector<8x128xf32>
    %158 = vector.extract_strided_slice %151 {offsets = [0, 128], sizes = [8, 128], strides = [1, 1]} : vector<8x512xf32> to vector<8x128xf32>
    %159 = arith.negf %158 : vector<8x128xf32>
    %160 = math.exp %159 : vector<8x128xf32>
    %cst_51 = arith.constant 1.000000e+00 : f32
    %161 = vector.broadcast %cst_51 : f32 to vector<8x128xf32>
    %162 = arith.addf %161, %160 : vector<8x128xf32>
    %163 = arith.divf %161, %162 : vector<8x128xf32>
    %164 = vector.extract_strided_slice %151 {offsets = [0, 256], sizes = [8, 128], strides = [1, 1]} : vector<8x512xf32> to vector<8x128xf32>
    %165 = math.tanh %164 : vector<8x128xf32>
    %166 = vector.extract_strided_slice %151 {offsets = [0, 384], sizes = [8, 128], strides = [1, 1]} : vector<8x512xf32> to vector<8x128xf32>
    %167 = arith.negf %166 : vector<8x128xf32>
    %168 = math.exp %167 : vector<8x128xf32>
    %cst_52 = arith.constant 1.000000e+00 : f32
    %169 = vector.broadcast %cst_52 : f32 to vector<8x128xf32>
    %170 = arith.addf %169, %168 : vector<8x128xf32>
    %171 = arith.divf %169, %170 : vector<8x128xf32>
    %172 = arith.mulf %163, %111 : vector<8x128xf32>
    %173 = arith.mulf %157, %165 : vector<8x128xf32>
    %174 = arith.addf %172, %173 : vector<8x128xf32>
    %175 = math.tanh %174 : vector<8x128xf32>
    %176 = arith.mulf %171, %175 : vector<8x128xf32>
    %c7_i32_53 = arith.constant 7 : i32
    %177 = arith.subi %c7_i32_53, %c2_i32 : i32
    %178 = arith.index_cast %177 : i32 to index
    %c0_54 = arith.constant 0 : index
    %c0_55 = arith.constant 0 : index
    %179 = vector.load %arg11[%178, %c0_54, %c0_55] : memref<8x8x512xf32, #tpu.memory_space<vmem>>, vector<1x8x512xf32>
    %180 = vector.shape_cast %179 : vector<1x8x512xf32> to vector<8x512xf32>
    %181 = arith.addf %180, %147 : vector<8x512xf32>
    %182 = vector.extract_strided_slice %181 {offsets = [0, 0], sizes = [8, 128], strides = [1, 1]} : vector<8x512xf32> to vector<8x128xf32>
    %183 = arith.negf %182 : vector<8x128xf32>
    %184 = math.exp %183 : vector<8x128xf32>
    %cst_56 = arith.constant 1.000000e+00 : f32
    %185 = vector.broadcast %cst_56 : f32 to vector<8x128xf32>
    %186 = arith.addf %185, %184 : vector<8x128xf32>
    %187 = arith.divf %185, %186 : vector<8x128xf32>
    %188 = vector.extract_strided_slice %181 {offsets = [0, 128], sizes = [8, 128], strides = [1, 1]} : vector<8x512xf32> to vector<8x128xf32>
    %189 = arith.negf %188 : vector<8x128xf32>
    %190 = math.exp %189 : vector<8x128xf32>
    %cst_57 = arith.constant 1.000000e+00 : f32
    %191 = vector.broadcast %cst_57 : f32 to vector<8x128xf32>
    %192 = arith.addf %191, %190 : vector<8x128xf32>
    %193 = arith.divf %191, %192 : vector<8x128xf32>
    %194 = vector.extract_strided_slice %181 {offsets = [0, 256], sizes = [8, 128], strides = [1, 1]} : vector<8x512xf32> to vector<8x128xf32>
    %195 = math.tanh %194 : vector<8x128xf32>
    %196 = vector.extract_strided_slice %181 {offsets = [0, 384], sizes = [8, 128], strides = [1, 1]} : vector<8x512xf32> to vector<8x128xf32>
    %197 = arith.negf %196 : vector<8x128xf32>
    %198 = math.exp %197 : vector<8x128xf32>
    %cst_58 = arith.constant 1.000000e+00 : f32
    %199 = vector.broadcast %cst_58 : f32 to vector<8x128xf32>
    %200 = arith.addf %199, %198 : vector<8x128xf32>
    %201 = arith.divf %199, %200 : vector<8x128xf32>
    %202 = arith.mulf %193, %141 : vector<8x128xf32>
    %203 = arith.mulf %187, %195 : vector<8x128xf32>
    %204 = arith.addf %202, %203 : vector<8x128xf32>
    %205 = math.tanh %204 : vector<8x128xf32>
    %206 = arith.mulf %201, %205 : vector<8x128xf32>
    %c3_i32 = arith.constant 3 : i32
    %207 = arith.truncf %176 : vector<8x128xf32> to vector<8x128xbf16>
    %cst_59 = arith.constant dense<0.000000e+00> : vector<8x512xf32>
    %208 = tpu.matmul %207, %15, %cst_59 {dimension_numbers = #tpu.dot_dimension_numbers<[1], [0], [0], [1], [0, 0, 1, 1], [], []>} : vector<8x128xbf16>, vector<128x512xbf16>, vector<8x512xf32> -> vector<8x512xf32>
    %209 = arith.truncf %206 : vector<8x128xf32> to vector<8x128xbf16>
    %cst_60 = arith.constant dense<0.000000e+00> : vector<8x512xf32>
    %210 = tpu.matmul %209, %16, %cst_60 {dimension_numbers = #tpu.dot_dimension_numbers<[1], [0], [0], [1], [0, 0, 1, 1], [], []>} : vector<8x128xbf16>, vector<128x512xbf16>, vector<8x512xf32> -> vector<8x512xf32>
    %211 = arith.index_cast %c3_i32 : i32 to index
    %c0_61 = arith.constant 0 : index
    %c0_62 = arith.constant 0 : index
    %212 = vector.load %arg10[%211, %c0_61, %c0_62] : memref<8x8x512xf32, #tpu.memory_space<vmem>>, vector<1x8x512xf32>
    %213 = vector.shape_cast %212 : vector<1x8x512xf32> to vector<8x512xf32>
    %214 = arith.addf %213, %208 : vector<8x512xf32>
    %215 = vector.extract_strided_slice %214 {offsets = [0, 0], sizes = [8, 128], strides = [1, 1]} : vector<8x512xf32> to vector<8x128xf32>
    %216 = arith.negf %215 : vector<8x128xf32>
    %217 = math.exp %216 : vector<8x128xf32>
    %cst_63 = arith.constant 1.000000e+00 : f32
    %218 = vector.broadcast %cst_63 : f32 to vector<8x128xf32>
    %219 = arith.addf %218, %217 : vector<8x128xf32>
    %220 = arith.divf %218, %219 : vector<8x128xf32>
    %221 = vector.extract_strided_slice %214 {offsets = [0, 128], sizes = [8, 128], strides = [1, 1]} : vector<8x512xf32> to vector<8x128xf32>
    %222 = arith.negf %221 : vector<8x128xf32>
    %223 = math.exp %222 : vector<8x128xf32>
    %cst_64 = arith.constant 1.000000e+00 : f32
    %224 = vector.broadcast %cst_64 : f32 to vector<8x128xf32>
    %225 = arith.addf %224, %223 : vector<8x128xf32>
    %226 = arith.divf %224, %225 : vector<8x128xf32>
    %227 = vector.extract_strided_slice %214 {offsets = [0, 256], sizes = [8, 128], strides = [1, 1]} : vector<8x512xf32> to vector<8x128xf32>
    %228 = math.tanh %227 : vector<8x128xf32>
    %229 = vector.extract_strided_slice %214 {offsets = [0, 384], sizes = [8, 128], strides = [1, 1]} : vector<8x512xf32> to vector<8x128xf32>
    %230 = arith.negf %229 : vector<8x128xf32>
    %231 = math.exp %230 : vector<8x128xf32>
    %cst_65 = arith.constant 1.000000e+00 : f32
    %232 = vector.broadcast %cst_65 : f32 to vector<8x128xf32>
    %233 = arith.addf %232, %231 : vector<8x128xf32>
    %234 = arith.divf %232, %233 : vector<8x128xf32>
    %235 = arith.mulf %226, %174 : vector<8x128xf32>
    %236 = arith.mulf %220, %228 : vector<8x128xf32>
    %237 = arith.addf %235, %236 : vector<8x128xf32>
    %238 = math.tanh %237 : vector<8x128xf32>
    %239 = arith.mulf %234, %238 : vector<8x128xf32>
    %c7_i32_66 = arith.constant 7 : i32
    %240 = arith.subi %c7_i32_66, %c3_i32 : i32
    %241 = arith.index_cast %240 : i32 to index
    %c0_67 = arith.constant 0 : index
    %c0_68 = arith.constant 0 : index
    %242 = vector.load %arg11[%241, %c0_67, %c0_68] : memref<8x8x512xf32, #tpu.memory_space<vmem>>, vector<1x8x512xf32>
    %243 = vector.shape_cast %242 : vector<1x8x512xf32> to vector<8x512xf32>
    %244 = arith.addf %243, %210 : vector<8x512xf32>
    %245 = vector.extract_strided_slice %244 {offsets = [0, 0], sizes = [8, 128], strides = [1, 1]} : vector<8x512xf32> to vector<8x128xf32>
    %246 = arith.negf %245 : vector<8x128xf32>
    %247 = math.exp %246 : vector<8x128xf32>
    %cst_69 = arith.constant 1.000000e+00 : f32
    %248 = vector.broadcast %cst_69 : f32 to vector<8x128xf32>
    %249 = arith.addf %248, %247 : vector<8x128xf32>
    %250 = arith.divf %248, %249 : vector<8x128xf32>
    %251 = vector.extract_strided_slice %244 {offsets = [0, 128], sizes = [8, 128], strides = [1, 1]} : vector<8x512xf32> to vector<8x128xf32>
    %252 = arith.negf %251 : vector<8x128xf32>
    %253 = math.exp %252 : vector<8x128xf32>
    %cst_70 = arith.constant 1.000000e+00 : f32
    %254 = vector.broadcast %cst_70 : f32 to vector<8x128xf32>
    %255 = arith.addf %254, %253 : vector<8x128xf32>
    %256 = arith.divf %254, %255 : vector<8x128xf32>
    %257 = vector.extract_strided_slice %244 {offsets = [0, 256], sizes = [8, 128], strides = [1, 1]} : vector<8x512xf32> to vector<8x128xf32>
    %258 = math.tanh %257 : vector<8x128xf32>
    %259 = vector.extract_strided_slice %244 {offsets = [0, 384], sizes = [8, 128], strides = [1, 1]} : vector<8x512xf32> to vector<8x128xf32>
    %260 = arith.negf %259 : vector<8x128xf32>
    %261 = math.exp %260 : vector<8x128xf32>
    %cst_71 = arith.constant 1.000000e+00 : f32
    %262 = vector.broadcast %cst_71 : f32 to vector<8x128xf32>
    %263 = arith.addf %262, %261 : vector<8x128xf32>
    %264 = arith.divf %262, %263 : vector<8x128xf32>
    %265 = arith.mulf %256, %204 : vector<8x128xf32>
    %266 = arith.mulf %250, %258 : vector<8x128xf32>
    %267 = arith.addf %265, %266 : vector<8x128xf32>
    %268 = math.tanh %267 : vector<8x128xf32>
    %269 = arith.mulf %264, %268 : vector<8x128xf32>
    %c4_i32 = arith.constant 4 : i32
    %270 = arith.truncf %239 : vector<8x128xf32> to vector<8x128xbf16>
    %cst_72 = arith.constant dense<0.000000e+00> : vector<8x512xf32>
    %271 = tpu.matmul %270, %15, %cst_72 {dimension_numbers = #tpu.dot_dimension_numbers<[1], [0], [0], [1], [0, 0, 1, 1], [], []>} : vector<8x128xbf16>, vector<128x512xbf16>, vector<8x512xf32> -> vector<8x512xf32>
    %272 = arith.truncf %269 : vector<8x128xf32> to vector<8x128xbf16>
    %cst_73 = arith.constant dense<0.000000e+00> : vector<8x512xf32>
    %273 = tpu.matmul %272, %16, %cst_73 {dimension_numbers = #tpu.dot_dimension_numbers<[1], [0], [0], [1], [0, 0, 1, 1], [], []>} : vector<8x128xbf16>, vector<128x512xbf16>, vector<8x512xf32> -> vector<8x512xf32>
    %274 = arith.index_cast %c4_i32 : i32 to index
    %c0_74 = arith.constant 0 : index
    %c0_75 = arith.constant 0 : index
    %275 = vector.load %arg10[%274, %c0_74, %c0_75] : memref<8x8x512xf32, #tpu.memory_space<vmem>>, vector<1x8x512xf32>
    %276 = vector.shape_cast %275 : vector<1x8x512xf32> to vector<8x512xf32>
    %277 = arith.addf %276, %271 : vector<8x512xf32>
    %278 = vector.extract_strided_slice %277 {offsets = [0, 0], sizes = [8, 128], strides = [1, 1]} : vector<8x512xf32> to vector<8x128xf32>
    %279 = arith.negf %278 : vector<8x128xf32>
    %280 = math.exp %279 : vector<8x128xf32>
    %cst_76 = arith.constant 1.000000e+00 : f32
    %281 = vector.broadcast %cst_76 : f32 to vector<8x128xf32>
    %282 = arith.addf %281, %280 : vector<8x128xf32>
    %283 = arith.divf %281, %282 : vector<8x128xf32>
    %284 = vector.extract_strided_slice %277 {offsets = [0, 128], sizes = [8, 128], strides = [1, 1]} : vector<8x512xf32> to vector<8x128xf32>
    %285 = arith.negf %284 : vector<8x128xf32>
    %286 = math.exp %285 : vector<8x128xf32>
    %cst_77 = arith.constant 1.000000e+00 : f32
    %287 = vector.broadcast %cst_77 : f32 to vector<8x128xf32>
    %288 = arith.addf %287, %286 : vector<8x128xf32>
    %289 = arith.divf %287, %288 : vector<8x128xf32>
    %290 = vector.extract_strided_slice %277 {offsets = [0, 256], sizes = [8, 128], strides = [1, 1]} : vector<8x512xf32> to vector<8x128xf32>
    %291 = math.tanh %290 : vector<8x128xf32>
    %292 = vector.extract_strided_slice %277 {offsets = [0, 384], sizes = [8, 128], strides = [1, 1]} : vector<8x512xf32> to vector<8x128xf32>
    %293 = arith.negf %292 : vector<8x128xf32>
    %294 = math.exp %293 : vector<8x128xf32>
    %cst_78 = arith.constant 1.000000e+00 : f32
    %295 = vector.broadcast %cst_78 : f32 to vector<8x128xf32>
    %296 = arith.addf %295, %294 : vector<8x128xf32>
    %297 = arith.divf %295, %296 : vector<8x128xf32>
    %298 = arith.mulf %289, %237 : vector<8x128xf32>
    %299 = arith.mulf %283, %291 : vector<8x128xf32>
    %300 = arith.addf %298, %299 : vector<8x128xf32>
    %301 = math.tanh %300 : vector<8x128xf32>
    %302 = arith.mulf %297, %301 : vector<8x128xf32>
    %c7_i32_79 = arith.constant 7 : i32
    %303 = arith.subi %c7_i32_79, %c4_i32 : i32
    %304 = arith.index_cast %303 : i32 to index
    %c0_80 = arith.constant 0 : index
    %c0_81 = arith.constant 0 : index
    %305 = vector.load %arg11[%304, %c0_80, %c0_81] : memref<8x8x512xf32, #tpu.memory_space<vmem>>, vector<1x8x512xf32>
    %306 = vector.shape_cast %305 : vector<1x8x512xf32> to vector<8x512xf32>
    %307 = arith.addf %306, %273 : vector<8x512xf32>
    %308 = vector.extract_strided_slice %307 {offsets = [0, 0], sizes = [8, 128], strides = [1, 1]} : vector<8x512xf32> to vector<8x128xf32>
    %309 = arith.negf %308 : vector<8x128xf32>
    %310 = math.exp %309 : vector<8x128xf32>
    %cst_82 = arith.constant 1.000000e+00 : f32
    %311 = vector.broadcast %cst_82 : f32 to vector<8x128xf32>
    %312 = arith.addf %311, %310 : vector<8x128xf32>
    %313 = arith.divf %311, %312 : vector<8x128xf32>
    %314 = vector.extract_strided_slice %307 {offsets = [0, 128], sizes = [8, 128], strides = [1, 1]} : vector<8x512xf32> to vector<8x128xf32>
    %315 = arith.negf %314 : vector<8x128xf32>
    %316 = math.exp %315 : vector<8x128xf32>
    %cst_83 = arith.constant 1.000000e+00 : f32
    %317 = vector.broadcast %cst_83 : f32 to vector<8x128xf32>
    %318 = arith.addf %317, %316 : vector<8x128xf32>
    %319 = arith.divf %317, %318 : vector<8x128xf32>
    %320 = vector.extract_strided_slice %307 {offsets = [0, 256], sizes = [8, 128], strides = [1, 1]} : vector<8x512xf32> to vector<8x128xf32>
    %321 = math.tanh %320 : vector<8x128xf32>
    %322 = vector.extract_strided_slice %307 {offsets = [0, 384], sizes = [8, 128], strides = [1, 1]} : vector<8x512xf32> to vector<8x128xf32>
    %323 = arith.negf %322 : vector<8x128xf32>
    %324 = math.exp %323 : vector<8x128xf32>
    %cst_84 = arith.constant 1.000000e+00 : f32
    %325 = vector.broadcast %cst_84 : f32 to vector<8x128xf32>
    %326 = arith.addf %325, %324 : vector<8x128xf32>
    %327 = arith.divf %325, %326 : vector<8x128xf32>
    %328 = arith.mulf %319, %267 : vector<8x128xf32>
    %329 = arith.mulf %313, %321 : vector<8x128xf32>
    %330 = arith.addf %328, %329 : vector<8x128xf32>
    %331 = math.tanh %330 : vector<8x128xf32>
    %332 = arith.mulf %327, %331 : vector<8x128xf32>
    %c5_i32 = arith.constant 5 : i32
    %333 = arith.truncf %302 : vector<8x128xf32> to vector<8x128xbf16>
    %cst_85 = arith.constant dense<0.000000e+00> : vector<8x512xf32>
    %334 = tpu.matmul %333, %15, %cst_85 {dimension_numbers = #tpu.dot_dimension_numbers<[1], [0], [0], [1], [0, 0, 1, 1], [], []>} : vector<8x128xbf16>, vector<128x512xbf16>, vector<8x512xf32> -> vector<8x512xf32>
    %335 = arith.truncf %332 : vector<8x128xf32> to vector<8x128xbf16>
    %cst_86 = arith.constant dense<0.000000e+00> : vector<8x512xf32>
    %336 = tpu.matmul %335, %16, %cst_86 {dimension_numbers = #tpu.dot_dimension_numbers<[1], [0], [0], [1], [0, 0, 1, 1], [], []>} : vector<8x128xbf16>, vector<128x512xbf16>, vector<8x512xf32> -> vector<8x512xf32>
    %337 = arith.index_cast %c5_i32 : i32 to index
    %c0_87 = arith.constant 0 : index
    %c0_88 = arith.constant 0 : index
    %338 = vector.load %arg10[%337, %c0_87, %c0_88] : memref<8x8x512xf32, #tpu.memory_space<vmem>>, vector<1x8x512xf32>
    %339 = vector.shape_cast %338 : vector<1x8x512xf32> to vector<8x512xf32>
    %340 = arith.addf %339, %334 : vector<8x512xf32>
    %341 = vector.extract_strided_slice %340 {offsets = [0, 0], sizes = [8, 128], strides = [1, 1]} : vector<8x512xf32> to vector<8x128xf32>
    %342 = arith.negf %341 : vector<8x128xf32>
    %343 = math.exp %342 : vector<8x128xf32>
    %cst_89 = arith.constant 1.000000e+00 : f32
    %344 = vector.broadcast %cst_89 : f32 to vector<8x128xf32>
    %345 = arith.addf %344, %343 : vector<8x128xf32>
    %346 = arith.divf %344, %345 : vector<8x128xf32>
    %347 = vector.extract_strided_slice %340 {offsets = [0, 128], sizes = [8, 128], strides = [1, 1]} : vector<8x512xf32> to vector<8x128xf32>
    %348 = arith.negf %347 : vector<8x128xf32>
    %349 = math.exp %348 : vector<8x128xf32>
    %cst_90 = arith.constant 1.000000e+00 : f32
    %350 = vector.broadcast %cst_90 : f32 to vector<8x128xf32>
    %351 = arith.addf %350, %349 : vector<8x128xf32>
    %352 = arith.divf %350, %351 : vector<8x128xf32>
    %353 = vector.extract_strided_slice %340 {offsets = [0, 256], sizes = [8, 128], strides = [1, 1]} : vector<8x512xf32> to vector<8x128xf32>
    %354 = math.tanh %353 : vector<8x128xf32>
    %355 = vector.extract_strided_slice %340 {offsets = [0, 384], sizes = [8, 128], strides = [1, 1]} : vector<8x512xf32> to vector<8x128xf32>
    %356 = arith.negf %355 : vector<8x128xf32>
    %357 = math.exp %356 : vector<8x128xf32>
    %cst_91 = arith.constant 1.000000e+00 : f32
    %358 = vector.broadcast %cst_91 : f32 to vector<8x128xf32>
    %359 = arith.addf %358, %357 : vector<8x128xf32>
    %360 = arith.divf %358, %359 : vector<8x128xf32>
    %361 = arith.mulf %352, %300 : vector<8x128xf32>
    %362 = arith.mulf %346, %354 : vector<8x128xf32>
    %363 = arith.addf %361, %362 : vector<8x128xf32>
    %364 = math.tanh %363 : vector<8x128xf32>
    %365 = arith.mulf %360, %364 : vector<8x128xf32>
    %c7_i32_92 = arith.constant 7 : i32
    %366 = arith.subi %c7_i32_92, %c5_i32 : i32
    %367 = arith.index_cast %366 : i32 to index
    %c0_93 = arith.constant 0 : index
    %c0_94 = arith.constant 0 : index
    %368 = vector.load %arg11[%367, %c0_93, %c0_94] : memref<8x8x512xf32, #tpu.memory_space<vmem>>, vector<1x8x512xf32>
    %369 = vector.shape_cast %368 : vector<1x8x512xf32> to vector<8x512xf32>
    %370 = arith.addf %369, %336 : vector<8x512xf32>
    %371 = vector.extract_strided_slice %370 {offsets = [0, 0], sizes = [8, 128], strides = [1, 1]} : vector<8x512xf32> to vector<8x128xf32>
    %372 = arith.negf %371 : vector<8x128xf32>
    %373 = math.exp %372 : vector<8x128xf32>
    %cst_95 = arith.constant 1.000000e+00 : f32
    %374 = vector.broadcast %cst_95 : f32 to vector<8x128xf32>
    %375 = arith.addf %374, %373 : vector<8x128xf32>
    %376 = arith.divf %374, %375 : vector<8x128xf32>
    %377 = vector.extract_strided_slice %370 {offsets = [0, 128], sizes = [8, 128], strides = [1, 1]} : vector<8x512xf32> to vector<8x128xf32>
    %378 = arith.negf %377 : vector<8x128xf32>
    %379 = math.exp %378 : vector<8x128xf32>
    %cst_96 = arith.constant 1.000000e+00 : f32
    %380 = vector.broadcast %cst_96 : f32 to vector<8x128xf32>
    %381 = arith.addf %380, %379 : vector<8x128xf32>
    %382 = arith.divf %380, %381 : vector<8x128xf32>
    %383 = vector.extract_strided_slice %370 {offsets = [0, 256], sizes = [8, 128], strides = [1, 1]} : vector<8x512xf32> to vector<8x128xf32>
    %384 = math.tanh %383 : vector<8x128xf32>
    %385 = vector.extract_strided_slice %370 {offsets = [0, 384], sizes = [8, 128], strides = [1, 1]} : vector<8x512xf32> to vector<8x128xf32>
    %386 = arith.negf %385 : vector<8x128xf32>
    %387 = math.exp %386 : vector<8x128xf32>
    %cst_97 = arith.constant 1.000000e+00 : f32
    %388 = vector.broadcast %cst_97 : f32 to vector<8x128xf32>
    %389 = arith.addf %388, %387 : vector<8x128xf32>
    %390 = arith.divf %388, %389 : vector<8x128xf32>
    %391 = arith.mulf %382, %330 : vector<8x128xf32>
    %392 = arith.mulf %376, %384 : vector<8x128xf32>
    %393 = arith.addf %391, %392 : vector<8x128xf32>
    %394 = math.tanh %393 : vector<8x128xf32>
    %395 = arith.mulf %390, %394 : vector<8x128xf32>
    %c6_i32 = arith.constant 6 : i32
    %396 = arith.truncf %365 : vector<8x128xf32> to vector<8x128xbf16>
    %cst_98 = arith.constant dense<0.000000e+00> : vector<8x512xf32>
    %397 = tpu.matmul %396, %15, %cst_98 {dimension_numbers = #tpu.dot_dimension_numbers<[1], [0], [0], [1], [0, 0, 1, 1], [], []>} : vector<8x128xbf16>, vector<128x512xbf16>, vector<8x512xf32> -> vector<8x512xf32>
    %398 = arith.truncf %395 : vector<8x128xf32> to vector<8x128xbf16>
    %cst_99 = arith.constant dense<0.000000e+00> : vector<8x512xf32>
    %399 = tpu.matmul %398, %16, %cst_99 {dimension_numbers = #tpu.dot_dimension_numbers<[1], [0], [0], [1], [0, 0, 1, 1], [], []>} : vector<8x128xbf16>, vector<128x512xbf16>, vector<8x512xf32> -> vector<8x512xf32>
    %400 = arith.index_cast %c6_i32 : i32 to index
    %c0_100 = arith.constant 0 : index
    %c0_101 = arith.constant 0 : index
    %401 = vector.load %arg10[%400, %c0_100, %c0_101] : memref<8x8x512xf32, #tpu.memory_space<vmem>>, vector<1x8x512xf32>
    %402 = vector.shape_cast %401 : vector<1x8x512xf32> to vector<8x512xf32>
    %403 = arith.addf %402, %397 : vector<8x512xf32>
    %404 = vector.extract_strided_slice %403 {offsets = [0, 0], sizes = [8, 128], strides = [1, 1]} : vector<8x512xf32> to vector<8x128xf32>
    %405 = arith.negf %404 : vector<8x128xf32>
    %406 = math.exp %405 : vector<8x128xf32>
    %cst_102 = arith.constant 1.000000e+00 : f32
    %407 = vector.broadcast %cst_102 : f32 to vector<8x128xf32>
    %408 = arith.addf %407, %406 : vector<8x128xf32>
    %409 = arith.divf %407, %408 : vector<8x128xf32>
    %410 = vector.extract_strided_slice %403 {offsets = [0, 128], sizes = [8, 128], strides = [1, 1]} : vector<8x512xf32> to vector<8x128xf32>
    %411 = arith.negf %410 : vector<8x128xf32>
    %412 = math.exp %411 : vector<8x128xf32>
    %cst_103 = arith.constant 1.000000e+00 : f32
    %413 = vector.broadcast %cst_103 : f32 to vector<8x128xf32>
    %414 = arith.addf %413, %412 : vector<8x128xf32>
    %415 = arith.divf %413, %414 : vector<8x128xf32>
    %416 = vector.extract_strided_slice %403 {offsets = [0, 256], sizes = [8, 128], strides = [1, 1]} : vector<8x512xf32> to vector<8x128xf32>
    %417 = math.tanh %416 : vector<8x128xf32>
    %418 = vector.extract_strided_slice %403 {offsets = [0, 384], sizes = [8, 128], strides = [1, 1]} : vector<8x512xf32> to vector<8x128xf32>
    %419 = arith.negf %418 : vector<8x128xf32>
    %420 = math.exp %419 : vector<8x128xf32>
    %cst_104 = arith.constant 1.000000e+00 : f32
    %421 = vector.broadcast %cst_104 : f32 to vector<8x128xf32>
    %422 = arith.addf %421, %420 : vector<8x128xf32>
    %423 = arith.divf %421, %422 : vector<8x128xf32>
    %424 = arith.mulf %415, %363 : vector<8x128xf32>
    %425 = arith.mulf %409, %417 : vector<8x128xf32>
    %426 = arith.addf %424, %425 : vector<8x128xf32>
    %427 = math.tanh %426 : vector<8x128xf32>
    %428 = arith.mulf %423, %427 : vector<8x128xf32>
    %c7_i32_105 = arith.constant 7 : i32
    %429 = arith.subi %c7_i32_105, %c6_i32 : i32
    %430 = arith.index_cast %429 : i32 to index
    %c0_106 = arith.constant 0 : index
    %c0_107 = arith.constant 0 : index
    %431 = vector.load %arg11[%430, %c0_106, %c0_107] : memref<8x8x512xf32, #tpu.memory_space<vmem>>, vector<1x8x512xf32>
    %432 = vector.shape_cast %431 : vector<1x8x512xf32> to vector<8x512xf32>
    %433 = arith.addf %432, %399 : vector<8x512xf32>
    %434 = vector.extract_strided_slice %433 {offsets = [0, 0], sizes = [8, 128], strides = [1, 1]} : vector<8x512xf32> to vector<8x128xf32>
    %435 = arith.negf %434 : vector<8x128xf32>
    %436 = math.exp %435 : vector<8x128xf32>
    %cst_108 = arith.constant 1.000000e+00 : f32
    %437 = vector.broadcast %cst_108 : f32 to vector<8x128xf32>
    %438 = arith.addf %437, %436 : vector<8x128xf32>
    %439 = arith.divf %437, %438 : vector<8x128xf32>
    %440 = vector.extract_strided_slice %433 {offsets = [0, 128], sizes = [8, 128], strides = [1, 1]} : vector<8x512xf32> to vector<8x128xf32>
    %441 = arith.negf %440 : vector<8x128xf32>
    %442 = math.exp %441 : vector<8x128xf32>
    %cst_109 = arith.constant 1.000000e+00 : f32
    %443 = vector.broadcast %cst_109 : f32 to vector<8x128xf32>
    %444 = arith.addf %443, %442 : vector<8x128xf32>
    %445 = arith.divf %443, %444 : vector<8x128xf32>
    %446 = vector.extract_strided_slice %433 {offsets = [0, 256], sizes = [8, 128], strides = [1, 1]} : vector<8x512xf32> to vector<8x128xf32>
    %447 = math.tanh %446 : vector<8x128xf32>
    %448 = vector.extract_strided_slice %433 {offsets = [0, 384], sizes = [8, 128], strides = [1, 1]} : vector<8x512xf32> to vector<8x128xf32>
    %449 = arith.negf %448 : vector<8x128xf32>
    %450 = math.exp %449 : vector<8x128xf32>
    %cst_110 = arith.constant 1.000000e+00 : f32
    %451 = vector.broadcast %cst_110 : f32 to vector<8x128xf32>
    %452 = arith.addf %451, %450 : vector<8x128xf32>
    %453 = arith.divf %451, %452 : vector<8x128xf32>
    %454 = arith.mulf %445, %393 : vector<8x128xf32>
    %455 = arith.mulf %439, %447 : vector<8x128xf32>
    %456 = arith.addf %454, %455 : vector<8x128xf32>
    %457 = math.tanh %456 : vector<8x128xf32>
    %458 = arith.mulf %453, %457 : vector<8x128xf32>
    %c7_i32_111 = arith.constant 7 : i32
    %459 = arith.truncf %428 : vector<8x128xf32> to vector<8x128xbf16>
    %cst_112 = arith.constant dense<0.000000e+00> : vector<8x512xf32>
    %460 = tpu.matmul %459, %15, %cst_112 {dimension_numbers = #tpu.dot_dimension_numbers<[1], [0], [0], [1], [0, 0, 1, 1], [], []>} : vector<8x128xbf16>, vector<128x512xbf16>, vector<8x512xf32> -> vector<8x512xf32>
    %461 = arith.truncf %458 : vector<8x128xf32> to vector<8x128xbf16>
    %cst_113 = arith.constant dense<0.000000e+00> : vector<8x512xf32>
    %462 = tpu.matmul %461, %16, %cst_113 {dimension_numbers = #tpu.dot_dimension_numbers<[1], [0], [0], [1], [0, 0, 1, 1], [], []>} : vector<8x128xbf16>, vector<128x512xbf16>, vector<8x512xf32> -> vector<8x512xf32>
    %463 = arith.index_cast %c7_i32_111 : i32 to index
    %c0_114 = arith.constant 0 : index
    %c0_115 = arith.constant 0 : index
    %464 = vector.load %arg10[%463, %c0_114, %c0_115] : memref<8x8x512xf32, #tpu.memory_space<vmem>>, vector<1x8x512xf32>
    %465 = vector.shape_cast %464 : vector<1x8x512xf32> to vector<8x512xf32>
    %466 = arith.addf %465, %460 : vector<8x512xf32>
    %467 = vector.extract_strided_slice %466 {offsets = [0, 0], sizes = [8, 128], strides = [1, 1]} : vector<8x512xf32> to vector<8x128xf32>
    %468 = arith.negf %467 : vector<8x128xf32>
    %469 = math.exp %468 : vector<8x128xf32>
    %cst_116 = arith.constant 1.000000e+00 : f32
    %470 = vector.broadcast %cst_116 : f32 to vector<8x128xf32>
    %471 = arith.addf %470, %469 : vector<8x128xf32>
    %472 = arith.divf %470, %471 : vector<8x128xf32>
    %473 = vector.extract_strided_slice %466 {offsets = [0, 128], sizes = [8, 128], strides = [1, 1]} : vector<8x512xf32> to vector<8x128xf32>
    %474 = arith.negf %473 : vector<8x128xf32>
    %475 = math.exp %474 : vector<8x128xf32>
    %cst_117 = arith.constant 1.000000e+00 : f32
    %476 = vector.broadcast %cst_117 : f32 to vector<8x128xf32>
    %477 = arith.addf %476, %475 : vector<8x128xf32>
    %478 = arith.divf %476, %477 : vector<8x128xf32>
    %479 = vector.extract_strided_slice %466 {offsets = [0, 256], sizes = [8, 128], strides = [1, 1]} : vector<8x512xf32> to vector<8x128xf32>
    %480 = math.tanh %479 : vector<8x128xf32>
    %481 = vector.extract_strided_slice %466 {offsets = [0, 384], sizes = [8, 128], strides = [1, 1]} : vector<8x512xf32> to vector<8x128xf32>
    %482 = arith.negf %481 : vector<8x128xf32>
    %483 = math.exp %482 : vector<8x128xf32>
    %cst_118 = arith.constant 1.000000e+00 : f32
    %484 = vector.broadcast %cst_118 : f32 to vector<8x128xf32>
    %485 = arith.addf %484, %483 : vector<8x128xf32>
    %486 = arith.divf %484, %485 : vector<8x128xf32>
    %487 = arith.mulf %478, %426 : vector<8x128xf32>
    %488 = arith.mulf %472, %480 : vector<8x128xf32>
    %489 = arith.addf %487, %488 : vector<8x128xf32>
    %490 = math.tanh %489 : vector<8x128xf32>
    %491 = arith.mulf %486, %490 : vector<8x128xf32>
    %c7_i32_119 = arith.constant 7 : i32
    %492 = arith.subi %c7_i32_119, %c7_i32_111 : i32
    %493 = arith.index_cast %492 : i32 to index
    %c0_120 = arith.constant 0 : index
    %c0_121 = arith.constant 0 : index
    %494 = vector.load %arg11[%493, %c0_120, %c0_121] : memref<8x8x512xf32, #tpu.memory_space<vmem>>, vector<1x8x512xf32>
    %495 = vector.shape_cast %494 : vector<1x8x512xf32> to vector<8x512xf32>
    %496 = arith.addf %495, %462 : vector<8x512xf32>
    %497 = vector.extract_strided_slice %496 {offsets = [0, 0], sizes = [8, 128], strides = [1, 1]} : vector<8x512xf32> to vector<8x128xf32>
    %498 = arith.negf %497 : vector<8x128xf32>
    %499 = math.exp %498 : vector<8x128xf32>
    %cst_122 = arith.constant 1.000000e+00 : f32
    %500 = vector.broadcast %cst_122 : f32 to vector<8x128xf32>
    %501 = arith.addf %500, %499 : vector<8x128xf32>
    %502 = arith.divf %500, %501 : vector<8x128xf32>
    %503 = vector.extract_strided_slice %496 {offsets = [0, 128], sizes = [8, 128], strides = [1, 1]} : vector<8x512xf32> to vector<8x128xf32>
    %504 = arith.negf %503 : vector<8x128xf32>
    %505 = math.exp %504 : vector<8x128xf32>
    %cst_123 = arith.constant 1.000000e+00 : f32
    %506 = vector.broadcast %cst_123 : f32 to vector<8x128xf32>
    %507 = arith.addf %506, %505 : vector<8x128xf32>
    %508 = arith.divf %506, %507 : vector<8x128xf32>
    %509 = vector.extract_strided_slice %496 {offsets = [0, 256], sizes = [8, 128], strides = [1, 1]} : vector<8x512xf32> to vector<8x128xf32>
    %510 = math.tanh %509 : vector<8x128xf32>
    %511 = vector.extract_strided_slice %496 {offsets = [0, 384], sizes = [8, 128], strides = [1, 1]} : vector<8x512xf32> to vector<8x128xf32>
    %512 = arith.negf %511 : vector<8x128xf32>
    %513 = math.exp %512 : vector<8x128xf32>
    %cst_124 = arith.constant 1.000000e+00 : f32
    %514 = vector.broadcast %cst_124 : f32 to vector<8x128xf32>
    %515 = arith.addf %514, %513 : vector<8x128xf32>
    %516 = arith.divf %514, %515 : vector<8x128xf32>
    %517 = arith.mulf %508, %456 : vector<8x128xf32>
    %518 = arith.mulf %502, %510 : vector<8x128xf32>
    %519 = arith.addf %517, %518 : vector<8x128xf32>
    %520 = math.tanh %519 : vector<8x128xf32>
    %521 = arith.mulf %516, %520 : vector<8x128xf32>
    %c8_i32 = arith.constant 8 : i32
    %522 = tpu.concatenate %491, %521 in 1 : vector<8x128xf32>, vector<8x128xf32> -> vector<8x256xf32>
    %523 = arith.truncf %522 : vector<8x256xf32> to vector<8x256xbf16>
    %c0_125 = arith.constant 0 : index
    %c0_126 = arith.constant 0 : index
    %524 = vector.load %arg7[%c0_125, %c0_126] : memref<256x1xbf16, #tpu.memory_space<vmem>>, vector<256x1xbf16>
    %cst_127 = arith.constant dense<0.000000e+00> : vector<8x1xf32>
    %525 = tpu.matmul %523, %524, %cst_127 {dimension_numbers = #tpu.dot_dimension_numbers<[1], [0], [0], [1], [0, 0, 1, 1], [], []>} : vector<8x256xbf16>, vector<256x1xbf16>, vector<8x1xf32> -> vector<8x1xf32>
    %c0_128 = arith.constant 0 : index
    %c0_129 = arith.constant 0 : index
    %526 = vector.load %arg8[%c0_128, %c0_129] : memref<1x1xf32, #tpu.memory_space<vmem>>, vector<1x1xf32>
    %527 = vector.broadcast %526 : vector<1x1xf32> to vector<8x1xf32>
    %528 = arith.addf %525, %527 : vector<8x1xf32>
    %529 = arith.negf %528 : vector<8x1xf32>
    %530 = math.exp %529 : vector<8x1xf32>
    %cst_130 = arith.constant 1.000000e+00 : f32
    %531 = vector.broadcast %cst_130 : f32 to vector<8x1xf32>
    %532 = arith.addf %531, %530 : vector<8x1xf32>
    %533 = arith.divf %531, %532 : vector<8x1xf32>
    %c0_131 = arith.constant 0 : index
    %c0_132 = arith.constant 0 : index
    %534 = vector.load %arg9[%c0_131, %c0_132] : memref<8x1xf32, #tpu.memory_space<vmem>>, vector<8x1xf32>
    tpu.vector_store %arg9[%c0_131, %c0_132], %533 {strides = array<i32>} : memref<8x1xf32, #tpu.memory_space<vmem>>, vector<8x1xf32>,
    return
  }
}

</mosaic_0001>

<llo_original>
// kernel: bilstm_classifier.1
$region0: #{bilstm_classifier.1}
  #allocation0 [shape = 'u32[]', space=smem, size = 0x4, offset = 0x4, fixed_abs, tag = 'smem constant byte address 0x4 - core index']
  #allocation1 [shape = 'u32[144,128]{1,0:T(1,128)}', space=vmem, size = 0x12000, scoped, tag = 'internal scratch']
  #allocation2 [shape = 'f32[8,8,512]{2,1,0:T(8,128)}', space=vmem, size = 0x20000, scoped, tag = 'scratch operand']
  #allocation3 [shape = 'f32[8,8,512]{2,1,0:T(8,128)}', space=vmem, size = 0x20000, scoped, tag = 'scratch operand']
  #allocation4 [shape = 'f32[1,1]{1,0:T(1,128)S(1)}', space=vmem, size = 0x200, scoped, tag = 'scoped memory for bilstm_classifier.1']
  %s0 = inlined_call_operand.vmem [shape: bf16[64,16], index: 0, kind: input, shape index: {}]
  %s1 = inlined_call_operand.vmem [shape: bf16[16,512], index: 1, kind: input, shape index: {}]
  %s2 = inlined_call_operand.vmem [shape: bf16[16,512], index: 2, kind: input, shape index: {}]
  %s3 = inlined_call_operand.vmem [shape: f32[1,512], index: 3, kind: input, shape index: {}]
  %s4 = inlined_call_operand.vmem [shape: f32[1,512], index: 4, kind: input, shape index: {}]
  %s5 = inlined_call_operand.vmem [shape: bf16[128,512], index: 5, kind: input, shape index: {}]
  %s6 = inlined_call_operand.vmem [shape: bf16[128,512], index: 6, kind: input, shape index: {}]
  %s7 = inlined_call_operand.vmem [shape: bf16[256,1], index: 7, kind: input, shape index: {}]
  %s8 = inlined_call_operand.<no memory space> [shape: f32[1,1], index: 8, kind: input, shape index: {}]
  %s9 = inlined_call_operand.vmem [shape: f32[8,1], index: 9, kind: output, shape index: {}]
  %s10 = sld [smem:[#allocation0]]
  $region46: #{bilstm_classifier.1} parent=0
    _
  %s12 = ssub.s32 1, %s10
  %s13 = scalar_select 0, %s12, %s10
  %v14 = vstv %s8
  %15 = vst [vmem:[#allocation4] sm:$0x1] %v14
  // Predicated region
  $region2: #{bilstm_classifier.1} parent=0 // pred_check
    _
  $region3: #{bilstm_classifier.1} parent=0 // pred_check_branch
    %17 = sbr.rel (0) target = $region5
  $region4: #{bilstm_classifier.1} parent=0 // pred_region
    _
  $region5: #{bilstm_classifier.1} parent=0 // pred_fallthru
    _
  // Predicated region
  $region6: #{bilstm_classifier.1} parent=0 // pred_check
    _
  $region7: #{bilstm_classifier.1} parent=0 // pred_check_branch
    %19 = sbr.rel (0) target = $region9
  $region8: #{bilstm_classifier.1} parent=0 // pred_region
    _
  $region9: #{bilstm_classifier.1} parent=0 // pred_fallthru
    _
  // Predicated region
  $region10: #{bilstm_classifier.1} parent=0 // pred_check
    _
  $region11: #{bilstm_classifier.1} parent=0 // pred_check_branch
    %21 = sbr.rel (0) target = $region13
  $region12: #{bilstm_classifier.1} parent=0 // pred_region
    _
  $region13: #{bilstm_classifier.1} parent=0 // pred_fallthru
    _
  // Predicated region
  $region14: #{bilstm_classifier.1} parent=0 // pred_check
    _
  $region15: #{bilstm_classifier.1} parent=0 // pred_check_branch
    %23 = sbr.rel (0) target = $region17
  $region16: #{bilstm_classifier.1} parent=0 // pred_region
    _
  $region17: #{bilstm_classifier.1} parent=0 // pred_fallthru
    _
  // Predicated region
  $region18: #{bilstm_classifier.1} parent=0 // pred_check
    _
  $region19: #{bilstm_classifier.1} parent=0 // pred_check_branch
    %25 = sbr.rel (0) target = $region21
  $region20: #{bilstm_classifier.1} parent=0 // pred_region
    _
  $region21: #{bilstm_classifier.1} parent=0 // pred_fallthru
    _
  // Predicated region
  $region22: #{bilstm_classifier.1} parent=0 // pred_check
    _
  $region23: #{bilstm_classifier.1} parent=0 // pred_check_branch
    %27 = sbr.rel (0) target = $region25
  $region24: #{bilstm_classifier.1} parent=0 // pred_region
    _
  $region25: #{bilstm_classifier.1} parent=0 // pred_fallthru
    _
  // Predicated region
  $region26: #{bilstm_classifier.1} parent=0 // pred_check
    _
  $region27: #{bilstm_classifier.1} parent=0 // pred_check_branch
    %29 = sbr.rel (0) target = $region29
  $region28: #{bilstm_classifier.1} parent=0 // pred_region
    _
  $region29: #{bilstm_classifier.1} parent=0 // pred_fallthru
    _
  // Predicated region
  $region30: #{bilstm_classifier.1} parent=0 // pred_check
    _
  $region31: #{bilstm_classifier.1} parent=0 // pred_check_branch
    %31 = sbr.rel (0) target = $region33
  $region32: #{bilstm_classifier.1} parent=0 // pred_region
    _
  $region33: #{bilstm_classifier.1} parent=0 // pred_fallthru
    _
  // Predicated region
  $region34: #{bilstm_classifier.1} parent=0 // pred_check
    _
  $region35: #{bilstm_classifier.1} parent=0 // pred_check_branch
    %33 = sbr.rel (0) target = $region37
  $region36: #{bilstm_classifier.1} parent=0 // pred_region
    _
  $region37: #{bilstm_classifier.1} parent=0 // pred_fallthru
    _
  %v35 = vld [vmem:[%s0] sm:$0xf]
  %v36 = vld [vmem:[%s0 + $0x4] sm:$0xf]
  %v37 = vld [vmem:[%s0 + $0x8] sm:$0xf]
  %v38 = vld [vmem:[%s0 + $0xc] sm:$0xf]
  %v39 = vld [vmem:[%s0 + $0x10] sm:$0xf]
  %v40 = vld [vmem:[%s0 + $0x14] sm:$0xf]
  %v41 = vld [vmem:[%s0 + $0x18] sm:$0xf]
  %v42 = vld [vmem:[%s0 + $0x1c] sm:$0xf]
  %v43 = vld [vmem:[%s1] sm:$0xff]
  %v44 = vld [vmem:[%s1 + $0x8] sm:$0xff]
  %v45 = vld [vmem:[%s1 + $0x10] sm:$0xff]
  %v46 = vld [vmem:[%s1 + $0x18] sm:$0xff]
  %v47 = vld [vmem:[%s3] sm:$0xf]
  %v49 = vlaneseq
  %v50 = vshrl.u32 %v49, 7
  %v51 = vsub.s32 0, %v50
  %v52 = vrot.slane %v47, %v51
  %v53 = vlaneseq
  %v54 = vshrl.u32 %v53, 7
  %v55 = vsub.s32 1, %v54
  %v56 = vrot.slane %v47, %v55
  %v57 = vlaneseq
  %v58 = vshrl.u32 %v57, 7
  %v59 = vsub.s32 2, %v58
  %v60 = vrot.slane %v47, %v59
  %v61 = vlaneseq
  %v62 = vshrl.u32 %v61, 7
  %v63 = vsub.s32 3, %v62
  %v64 = vrot.slane %v47, %v63
  %v77 = vunpack.c.l.b16 %v35
  %v78 = vunpack.c.l.b16 %v36
  %v79 = vunpack.c.l.b16 %v37
  %v80 = vunpack.c.l.b16 %v38
  %v81 = vunpack.c.l.b16 %v39
  %v82 = vunpack.c.l.b16 %v40
  %v83 = vunpack.c.l.b16 %v41
  %v84 = vunpack.c.l.b16 %v42
  %v85 = vpack.c.b16 %v78, %v77
  %v86 = vpack.c.b16 %v80, %v79
  %v87 = vpack.c.b16 %v82, %v81
  %v88 = vpack.c.b16 %v84, %v83
  %v93 = vunpack.c.l.b16 %v43
  %v94 = vunpack.c.h.b16 %v43
  %v95 = vunpack.c.l.b16 %v44
  %v96 = vunpack.c.h.b16 %v44
  %v97 = vunpack.c.l.b16 %v45
  %v98 = vunpack.c.h.b16 %v45
  %v99 = vunpack.c.l.b16 %v46
  %v100 = vunpack.c.h.b16 %v46
  %v101 = vpack.c.b16 %v97, %v93
  %v102 = vpack.c.b16 %v98, %v94
  %v103 = vpack.c.b16 %v99, %v95
  %v104 = vpack.c.b16 %v100, %v96
  %vm109 = vcmask 130048
  %v111 = vsel %vm109, %v85, 0
  %v114 = vsel %vm109, %v86, 0
  %v117 = vsel %vm109, %v87, 0
  %v120 = vsel %vm109, %v88, 0
  %122 = vmatprep.subr.bf16.mxu0 %v102
  %123 = vmatpush1.bf16.msra.mxu0 %v101
  %124 = vmatprep.subr.bf16.mxu0 0
  %125 = vmatpush1.bf16.msra.mxu0 0
  %126 = vmatprep.subr.bf16.mxu0 0
  %127 = vmatpush1.bf16.msra.mxu0 0
  %128 = vmatprep.subr.bf16.mxu0 0
  %129 = vmatpush1.bf16.msra.mxu0 0
  %130 = vmatprep.subr.bf16.mxu0 0
  %131 = vmatpush1.bf16.msra.mxu0 0
  %132 = vmatprep.subr.bf16.mxu0 0
  %133 = vmatpush1.bf16.msra.mxu0 0
  %134 = vmatprep.subr.bf16.mxu0 0
  %135 = vmatpush1.bf16.msra.mxu0 0
  %136 = vmatprep.subr.bf16.mxu0 0
  %137 = vmatpush1.bf16.msra.mxu0 0
  %138 = vmatprep.subr.bf16.mxu0 0
  %139 = vmatpush1.bf16.msra.mxu0 0
  %140 = vmatprep.subr.bf16.mxu0 0
  %141 = vmatpush1.bf16.msra.mxu0 0
  %142 = vmatprep.subr.bf16.mxu0 0
  %143 = vmatpush1.bf16.msra.mxu0 0
  %144 = vmatprep.subr.bf16.mxu0 0
  %145 = vmatpush1.bf16.msra.mxu0 0
  %146 = vmatprep.subr.bf16.mxu0 0
  %147 = vmatpush1.bf16.msra.mxu0 0
  %148 = vmatprep.subr.bf16.mxu0 0
  %149 = vmatpush1.bf16.msra.mxu0 0
  %150 = vmatprep.subr.bf16.mxu0 0
  %151 = vmatpush1.bf16.msra.mxu0 0
  %152 = vmatprep.subr.bf16.mxu0 0
  %153 = vmatpush1.bf16.msra.mxu0 0
  %154 = vmatprep.mubr.bf16.mxu0 0
  %155 = vmatmul.mubr.bf16.gmra.mrb[0].mxu0 %v111
  %v156 = vpop.f32.mrb[0].mxu0
  %v157 = vadd.f32 %v52, %v156
  %v158 = vpop.f32.mrb[0].mxu0
  %v159 = vadd.f32 %v56, %v158
  %v160 = vpop.f32.mrb[0].mxu0
  %v161 = vadd.f32 %v52, %v160
  %v162 = vpop.f32.mrb[0].mxu0
  %v163 = vadd.f32 %v56, %v162
  %164 = vmatprep.mubr.bf16.mxu0 0
  %165 = vmatmul.mubr.bf16.gmra.mrb[0].mxu0 %v114
  %v166 = vpop.f32.mrb[0].mxu0
  %v167 = vadd.f32 %v52, %v166
  %v168 = vpop.f32.mrb[0].mxu0
  %v169 = vadd.f32 %v56, %v168
  %v170 = vpop.f32.mrb[0].mxu0
  %v171 = vadd.f32 %v52, %v170
  %v172 = vpop.f32.mrb[0].mxu0
  %v173 = vadd.f32 %v56, %v172
  %174 = vmatprep.mubr.bf16.mxu0 0
  %175 = vmatmul.mubr.bf16.gmra.mrb[0].mxu0 %v117
  %v176 = vpop.f32.mrb[0].mxu0
  %v177 = vadd.f32 %v52, %v176
  %v178 = vpop.f32.mrb[0].mxu0
  %v179 = vadd.f32 %v56, %v178
  %v180 = vpop.f32.mrb[0].mxu0
  %v181 = vadd.f32 %v52, %v180
  %v182 = vpop.f32.mrb[0].mxu0
  %v183 = vadd.f32 %v56, %v182
  %184 = vmatprep.mubr.bf16.mxu0 0
  %185 = vmatmul.mubr.bf16.gmra.mrb[0].mxu0 %v120
  %v186 = vpop.f32.mrb[0].mxu0
  %v187 = vadd.f32 %v52, %v186
  %v188 = vpop.f32.mrb[0].mxu0
  %v189 = vadd.f32 %v56, %v188
  %v190 = vpop.f32.mrb[0].mxu0
  %v191 = vadd.f32 %v52, %v190
  %v192 = vpop.f32.mrb[0].mxu0
  %v193 = vadd.f32 %v56, %v192
  %194 = vdwg.mxu0
  %195 = vmatprep.subr.bf16.mxu0 %v104
  %196 = vmatpush1.bf16.msra.mxu0 %v103
  %197 = vmatprep.subr.bf16.mxu0 0
  %198 = vmatpush1.bf16.msra.mxu0 0
  %199 = vmatprep.subr.bf16.mxu0 0
  %200 = vmatpush1.bf16.msra.mxu0 0
  %201 = vmatprep.subr.bf16.mxu0 0
  %202 = vmatpush1.bf16.msra.mxu0 0
  %203 = vmatprep.subr.bf16.mxu0 0
  %204 = vmatpush1.bf16.msra.mxu0 0
  %205 = vmatprep.subr.bf16.mxu0 0
  %206 = vmatpush1.bf16.msra.mxu0 0
  %207 = vmatprep.subr.bf16.mxu0 0
  %208 = vmatpush1.bf16.msra.mxu0 0
  %209 = vmatprep.subr.bf16.mxu0 0
  %210 = vmatpush1.bf16.msra.mxu0 0
  %211 = vmatprep.subr.bf16.mxu0 0
  %212 = vmatpush1.bf16.msra.mxu0 0
  %213 = vmatprep.subr.bf16.mxu0 0
  %214 = vmatpush1.bf16.msra.mxu0 0
  %215 = vmatprep.subr.bf16.mxu0 0
  %216 = vmatpush1.bf16.msra.mxu0 0
  %217 = vmatprep.subr.bf16.mxu0 0
  %218 = vmatpush1.bf16.msra.mxu0 0
  %219 = vmatprep.subr.bf16.mxu0 0
  %220 = vmatpush1.bf16.msra.mxu0 0
  %221 = vmatprep.subr.bf16.mxu0 0
  %222 = vmatpush1.bf16.msra.mxu0 0
  %223 = vmatprep.subr.bf16.mxu0 0
  %224 = vmatpush1.bf16.msra.mxu0 0
  %225 = vmatprep.subr.bf16.mxu0 0
  %226 = vmatpush1.bf16.msra.mxu0 0
  %227 = vmatprep.mubr.bf16.mxu0 0
  %228 = vmatmul.mubr.bf16.gmra.mrb[0].mxu0 %v111
  %v229 = vpop.f32.mrb[0].mxu0
  %v230 = vadd.f32 %v60, %v229
  %v231 = vpop.f32.mrb[0].mxu0
  %v232 = vadd.f32 %v64, %v231
  %v233 = vpop.f32.mrb[0].mxu0
  %v234 = vadd.f32 %v60, %v233
  %v235 = vpop.f32.mrb[0].mxu0
  %v236 = vadd.f32 %v64, %v235
  %237 = vmatprep.mubr.bf16.mxu0 0
  %238 = vmatmul.mubr.bf16.gmra.mrb[0].mxu0 %v114
  %v239 = vpop.f32.mrb[0].mxu0
  %v240 = vadd.f32 %v60, %v239
  %v241 = vpop.f32.mrb[0].mxu0
  %v242 = vadd.f32 %v64, %v241
  %v243 = vpop.f32.mrb[0].mxu0
  %v244 = vadd.f32 %v60, %v243
  %v245 = vpop.f32.mrb[0].mxu0
  %v246 = vadd.f32 %v64, %v245
  %247 = vmatprep.mubr.bf16.mxu0 0
  %248 = vmatmul.mubr.bf16.gmra.mrb[0].mxu0 %v117
  %v249 = vpop.f32.mrb[0].mxu0
  %v250 = vadd.f32 %v60, %v249
  %v251 = vpop.f32.mrb[0].mxu0
  %v252 = vadd.f32 %v64, %v251
  %v253 = vpop.f32.mrb[0].mxu0
  %v254 = vadd.f32 %v60, %v253
  %v255 = vpop.f32.mrb[0].mxu0
  %v256 = vadd.f32 %v64, %v255
  %257 = vmatprep.mubr.bf16.mxu0 0
  %258 = vmatmul.mubr.bf16.gmra.mrb[0].mxu0 %v120
  %v259 = vpop.f32.mrb[0].mxu0
  %v260 = vadd.f32 %v60, %v259
  %v261 = vpop.f32.mrb[0].mxu0
  %v262 = vadd.f32 %v64, %v261
  %v263 = vpop.f32.mrb[0].mxu0
  %v264 = vadd.f32 %v60, %v263
  %v265 = vpop.f32.mrb[0].mxu0
  %v266 = vadd.f32 %v64, %v265
  %267 = vdwg.mxu0
  %268 = vst [vmem:[#allocation2] sm:$0xff] %v157
  %269 = vst [vmem:[#allocation2 + $0x8] sm:$0xff] %v159
  %270 = vst [vmem:[#allocation2 + $0x10] sm:$0xff] %v230
  %271 = vst [vmem:[#allocation2 + $0x18] sm:$0xff] %v232
  %272 = vst [vmem:[#allocation2 + $0x20] sm:$0xff] %v161
  %273 = vst [vmem:[#allocation2 + $0x28] sm:$0xff] %v163
  %274 = vst [vmem:[#allocation2 + $0x30] sm:$0xff] %v234
  %275 = vst [vmem:[#allocation2 + $0x38] sm:$0xff] %v236
  %276 = vst [vmem:[#allocation2 + $0x40] sm:$0xff] %v167
  %277 = vst [vmem:[#allocation2 + $0x48] sm:$0xff] %v169
  %278 = vst [vmem:[#allocation2 + $0x50] sm:$0xff] %v240
  %279 = vst [vmem:[#allocation2 + $0x58] sm:$0xff] %v242
  %280 = vst [vmem:[#allocation2 + $0x60] sm:$0xff] %v171
  %281 = vst [vmem:[#allocation2 + $0x68] sm:$0xff] %v173
  %282 = vst [vmem:[#allocation2 + $0x70] sm:$0xff] %v244
  %283 = vst [vmem:[#allocation2 + $0x78] sm:$0xff] %v246
  %284 = vst [vmem:[#allocation2 + $0x80] sm:$0xff] %v177
  %285 = vst [vmem:[#allocation2 + $0x88] sm:$0xff] %v179
  %286 = vst [vmem:[#allocation2 + $0x90] sm:$0xff] %v250
  %287 = vst [vmem:[#allocation2 + $0x98] sm:$0xff] %v252
  %288 = vst [vmem:[#allocation2 + $0xa0] sm:$0xff] %v181
  %289 = vst [vmem:[#allocation2 + $0xa8] sm:$0xff] %v183
  %290 = vst [vmem:[#allocation2 + $0xb0] sm:$0xff] %v254
  %291 = vst [vmem:[#allocation2 + $0xb8] sm:$0xff] %v256
  %292 = vst [vmem:[#allocation2 + $0xc0] sm:$0xff] %v187
  %293 = vst [vmem:[#allocation2 + $0xc8] sm:$0xff] %v189
  %294 = vst [vmem:[#allocation2 + $0xd0] sm:$0xff] %v260
  %295 = vst [vmem:[#allocation2 + $0xd8] sm:$0xff] %v262
  %296 = vst [vmem:[#allocation2 + $0xe0] sm:$0xff] %v191
  %297 = vst [vmem:[#allocation2 + $0xe8] sm:$0xff] %v193
  %298 = vst [vmem:[#allocation2 + $0xf0] sm:$0xff] %v264
  %299 = vst [vmem:[#allocation2 + $0xf8] sm:$0xff] %v266
  %v300 = vld [vmem:[%s2] sm:$0xff]
  %v301 = vld [vmem:[%s2 + $0x8] sm:$0xff]
  %v302 = vld [vmem:[%s2 + $0x10] sm:$0xff]
  %v303 = vld [vmem:[%s2 + $0x18] sm:$0xff]
  %v304 = vld [vmem:[%s4] sm:$0xf]
  %v306 = vlaneseq
  %v307 = vshrl.u32 %v306, 7
  %v308 = vsub.s32 0, %v307
  %v309 = vrot.slane %v304, %v308
  %v310 = vlaneseq
  %v311 = vshrl.u32 %v310, 7
  %v312 = vsub.s32 1, %v311
  %v313 = vrot.slane %v304, %v312
  %v314 = vlaneseq
  %v315 = vshrl.u32 %v314, 7
  %v316 = vsub.s32 2, %v315
  %v317 = vrot.slane %v304, %v316
  %v318 = vlaneseq
  %v319 = vshrl.u32 %v318, 7
  %v320 = vsub.s32 3, %v319
  %v321 = vrot.slane %v304, %v320
  %v330 = vunpack.c.l.b16 %v300
  %v331 = vunpack.c.h.b16 %v300
  %v332 = vunpack.c.l.b16 %v301
  %v333 = vunpack.c.h.b16 %v301
  %v334 = vunpack.c.l.b16 %v302
  %v335 = vunpack.c.h.b16 %v302
  %v336 = vunpack.c.l.b16 %v303
  %v337 = vunpack.c.h.b16 %v303
  %v338 = vpack.c.b16 %v334, %v330
  %v339 = vpack.c.b16 %v335, %v331
  %v340 = vpack.c.b16 %v336, %v332
  %v341 = vpack.c.b16 %v337, %v333
  %346 = vmatprep.subr.bf16.mxu0 %v339
  %347 = vmatpush1.bf16.msra.mxu0 %v338
  %348 = vmatprep.subr.bf16.mxu0 0
  %349 = vmatpush1.bf16.msra.mxu0 0
  %350 = vmatprep.subr.bf16.mxu0 0
  %351 = vmatpush1.bf16.msra.mxu0 0
  %352 = vmatprep.subr.bf16.mxu0 0
  %353 = vmatpush1.bf16.msra.mxu0 0
  %354 = vmatprep.subr.bf16.mxu0 0
  %355 = vmatpush1.bf16.msra.mxu0 0
  %356 = vmatprep.subr.bf16.mxu0 0
  %357 = vmatpush1.bf16.msra.mxu0 0
  %358 = vmatprep.subr.bf16.mxu0 0
  %359 = vmatpush1.bf16.msra.mxu0 0
  %360 = vmatprep.subr.bf16.mxu0 0
  %361 = vmatpush1.bf16.msra.mxu0 0
  %362 = vmatprep.subr.bf16.mxu0 0
  %363 = vmatpush1.bf16.msra.mxu0 0
  %364 = vmatprep.subr.bf16.mxu0 0
  %365 = vmatpush1.bf16.msra.mxu0 0
  %366 = vmatprep.subr.bf16.mxu0 0
  %367 = vmatpush1.bf16.msra.mxu0 0
  %368 = vmatprep.subr.bf16.mxu0 0
  %369 = vmatpush1.bf16.msra.mxu0 0
  %370 = vmatprep.subr.bf16.mxu0 0
  %371 = vmatpush1.bf16.msra.mxu0 0
  %372 = vmatprep.subr.bf16.mxu0 0
  %373 = vmatpush1.bf16.msra.mxu0 0
  %374 = vmatprep.subr.bf16.mxu0 0
  %375 = vmatpush1.bf16.msra.mxu0 0
  %376 = vmatprep.subr.bf16.mxu0 0
  %377 = vmatpush1.bf16.msra.mxu0 0
  %378 = vmatprep.mubr.bf16.mxu0 0
  %379 = vmatmul.mubr.bf16.gmra.mrb[0].mxu0 %v111
  %v380 = vpop.f32.mrb[0].mxu0
  %v381 = vadd.f32 %v309, %v380
  %v382 = vpop.f32.mrb[0].mxu0
  %v383 = vadd.f32 %v313, %v382
  %v384 = vpop.f32.mrb[0].mxu0
  %v385 = vadd.f32 %v309, %v384
  %v386 = vpop.f32.mrb[0].mxu0
  %v387 = vadd.f32 %v313, %v386
  %388 = vmatprep.mubr.bf16.mxu0 0
  %389 = vmatmul.mubr.bf16.gmra.mrb[0].mxu0 %v114
  %v390 = vpop.f32.mrb[0].mxu0
  %v391 = vadd.f32 %v309, %v390
  %v392 = vpop.f32.mrb[0].mxu0
  %v393 = vadd.f32 %v313, %v392
  %v394 = vpop.f32.mrb[0].mxu0
  %v395 = vadd.f32 %v309, %v394
  %v396 = vpop.f32.mrb[0].mxu0
  %v397 = vadd.f32 %v313, %v396
  %398 = vmatprep.mubr.bf16.mxu0 0
  %399 = vmatmul.mubr.bf16.gmra.mrb[0].mxu0 %v117
  %v400 = vpop.f32.mrb[0].mxu0
  %v401 = vadd.f32 %v309, %v400
  %v402 = vpop.f32.mrb[0].mxu0
  %v403 = vadd.f32 %v313, %v402
  %v404 = vpop.f32.mrb[0].mxu0
  %v405 = vadd.f32 %v309, %v404
  %v406 = vpop.f32.mrb[0].mxu0
  %v407 = vadd.f32 %v313, %v406
  %408 = vmatprep.mubr.bf16.mxu0 0
  %409 = vmatmul.mubr.bf16.gmra.mrb[0].mxu0 %v120
  %v410 = vpop.f32.mrb[0].mxu0
  %v411 = vadd.f32 %v309, %v410
  %v412 = vpop.f32.mrb[0].mxu0
  %v413 = vadd.f32 %v313, %v412
  %v414 = vpop.f32.mrb[0].mxu0
  %v415 = vadd.f32 %v309, %v414
  %v416 = vpop.f32.mrb[0].mxu0
  %v417 = vadd.f32 %v313, %v416
  %418 = vdwg.mxu0
  %419 = vmatprep.subr.bf16.mxu0 %v341
  %420 = vmatpush1.bf16.msra.mxu0 %v340
  %421 = vmatprep.subr.bf16.mxu0 0
  %422 = vmatpush1.bf16.msra.mxu0 0
  %423 = vmatprep.subr.bf16.mxu0 0
  %424 = vmatpush1.bf16.msra.mxu0 0
  %425 = vmatprep.subr.bf16.mxu0 0
  %426 = vmatpush1.bf16.msra.mxu0 0
  %427 = vmatprep.subr.bf16.mxu0 0
  %428 = vmatpush1.bf16.msra.mxu0 0
  %429 = vmatprep.subr.bf16.mxu0 0
  %430 = vmatpush1.bf16.msra.mxu0 0
  %431 = vmatprep.subr.bf16.mxu0 0
  %432 = vmatpush1.bf16.msra.mxu0 0
  %433 = vmatprep.subr.bf16.mxu0 0
  %434 = vmatpush1.bf16.msra.mxu0 0
  %435 = vmatprep.subr.bf16.mxu0 0
  %436 = vmatpush1.bf16.msra.mxu0 0
  %437 = vmatprep.subr.bf16.mxu0 0
  %438 = vmatpush1.bf16.msra.mxu0 0
  %439 = vmatprep.subr.bf16.mxu0 0
  %440 = vmatpush1.bf16.msra.mxu0 0
  %441 = vmatprep.subr.bf16.mxu0 0
  %442 = vmatpush1.bf16.msra.mxu0 0
  %443 = vmatprep.subr.bf16.mxu0 0
  %444 = vmatpush1.bf16.msra.mxu0 0
  %445 = vmatprep.subr.bf16.mxu0 0
  %446 = vmatpush1.bf16.msra.mxu0 0
  %447 = vmatprep.subr.bf16.mxu0 0
  %448 = vmatpush1.bf16.msra.mxu0 0
  %449 = vmatprep.subr.bf16.mxu0 0
  %450 = vmatpush1.bf16.msra.mxu0 0
  %451 = vmatprep.mubr.bf16.mxu0 0
  %452 = vmatmul.mubr.bf16.gmra.mrb[0].mxu0 %v111
  %v453 = vpop.f32.mrb[0].mxu0
  %v454 = vadd.f32 %v317, %v453
  %v455 = vpop.f32.mrb[0].mxu0
  %v456 = vadd.f32 %v321, %v455
  %v457 = vpop.f32.mrb[0].mxu0
  %v458 = vadd.f32 %v317, %v457
  %v459 = vpop.f32.mrb[0].mxu0
  %v460 = vadd.f32 %v321, %v459
  %461 = vmatprep.mubr.bf16.mxu0 0
  %462 = vmatmul.mubr.bf16.gmra.mrb[0].mxu0 %v114
  %v463 = vpop.f32.mrb[0].mxu0
  %v464 = vadd.f32 %v317, %v463
  %v465 = vpop.f32.mrb[0].mxu0
  %v466 = vadd.f32 %v321, %v465
  %v467 = vpop.f32.mrb[0].mxu0
  %v468 = vadd.f32 %v317, %v467
  %v469 = vpop.f32.mrb[0].mxu0
  %v470 = vadd.f32 %v321, %v469
  %471 = vmatprep.mubr.bf16.mxu0 0
  %472 = vmatmul.mubr.bf16.gmra.mrb[0].mxu0 %v117
  %v473 = vpop.f32.mrb[0].mxu0
  %v474 = vadd.f32 %v317, %v473
  %v475 = vpop.f32.mrb[0].mxu0
  %v476 = vadd.f32 %v321, %v475
  %v477 = vpop.f32.mrb[0].mxu0
  %v478 = vadd.f32 %v317, %v477
  %v479 = vpop.f32.mrb[0].mxu0
  %v480 = vadd.f32 %v321, %v479
  %481 = vmatprep.mubr.bf16.mxu0 0
  %482 = vmatmul.mubr.bf16.gmra.mrb[0].mxu0 %v120
  %v483 = vpop.f32.mrb[0].mxu0
  %v484 = vadd.f32 %v317, %v483
  %v485 = vpop.f32.mrb[0].mxu0
  %v486 = vadd.f32 %v321, %v485
  %v487 = vpop.f32.mrb[0].mxu0
  %v488 = vadd.f32 %v317, %v487
  %v489 = vpop.f32.mrb[0].mxu0
  %v490 = vadd.f32 %v321, %v489
  %491 = vdwg.mxu0
  %492 = vst [vmem:[#allocation3] sm:$0xff] %v381
  %493 = vst [vmem:[#allocation3 + $0x8] sm:$0xff] %v383
  %494 = vst [vmem:[#allocation3 + $0x10] sm:$0xff] %v454
  %495 = vst [vmem:[#allocation3 + $0x18] sm:$0xff] %v456
  %496 = vst [vmem:[#allocation3 + $0x20] sm:$0xff] %v385
  %497 = vst [vmem:[#allocation3 + $0x28] sm:$0xff] %v387
  %498 = vst [vmem:[#allocation3 + $0x30] sm:$0xff] %v458
  %499 = vst [vmem:[#allocation3 + $0x38] sm:$0xff] %v460
  %500 = vst [vmem:[#allocation3 + $0x40] sm:$0xff] %v391
  %501 = vst [vmem:[#allocation3 + $0x48] sm:$0xff] %v393
  %502 = vst [vmem:[#allocation3 + $0x50] sm:$0xff] %v464
  %503 = vst [vmem:[#allocation3 + $0x58] sm:$0xff] %v466
  %504 = vst [vmem:[#allocation3 + $0x60] sm:$0xff] %v395
  %505 = vst [vmem:[#allocation3 + $0x68] sm:$0xff] %v397
  %506 = vst [vmem:[#allocation3 + $0x70] sm:$0xff] %v468
  %507 = vst [vmem:[#allocation3 + $0x78] sm:$0xff] %v470
  %508 = vst [vmem:[#allocation3 + $0x80] sm:$0xff] %v401
  %509 = vst [vmem:[#allocation3 + $0x88] sm:$0xff] %v403
  %510 = vst [vmem:[#allocation3 + $0x90] sm:$0xff] %v474
  %511 = vst [vmem:[#allocation3 + $0x98] sm:$0xff] %v476
  %512 = vst [vmem:[#allocation3 + $0xa0] sm:$0xff] %v405
  %513 = vst [vmem:[#allocation3 + $0xa8] sm:$0xff] %v407
  %514 = vst [vmem:[#allocation3 + $0xb0] sm:$0xff] %v478
  %515 = vst [vmem:[#allocation3 + $0xb8] sm:$0xff] %v480
  %516 = vst [vmem:[#allocation3 + $0xc0] sm:$0xff] %v411
  %517 = vst [vmem:[#allocation3 + $0xc8] sm:$0xff] %v413
  %518 = vst [vmem:[#allocation3 + $0xd0] sm:$0xff] %v484
  %519 = vst [vmem:[#allocation3 + $0xd8] sm:$0xff] %v486
  %520 = vst [vmem:[#allocation3 + $0xe0] sm:$0xff] %v415
  %521 = vst [vmem:[#allocation3 + $0xe8] sm:$0xff] %v417
  %522 = vst [vmem:[#allocation3 + $0xf0] sm:$0xff] %v488
  %523 = vst [vmem:[#allocation3 + $0xf8] sm:$0xff] %v490
  %v524 = vld [vmem:[%s5] sm:$0xff]
  %v525 = vld [vmem:[%s5 + $0x8] sm:$0xff]
  %v526 = vld [vmem:[%s5 + $0x10] sm:$0xff]
  %v527 = vld [vmem:[%s5 + $0x18] sm:$0xff]
  %v528 = vld [vmem:[%s5 + $0x20] sm:$0xff]
  %v529 = vld [vmem:[%s5 + $0x28] sm:$0xff]
  %v530 = vld [vmem:[%s5 + $0x30] sm:$0xff]
  %v531 = vld [vmem:[%s5 + $0x38] sm:$0xff]
  %v532 = vld [vmem:[%s5 + $0x40] sm:$0xff]
  %v533 = vld [vmem:[%s5 + $0x48] sm:$0xff]
  %v534 = vld [vmem:[%s5 + $0x50] sm:$0xff]
  %v535 = vld [vmem:[%s5 + $0x58] sm:$0xff]
  %v536 = vld [vmem:[%s5 + $0x60] sm:$0xff]
  %v537 = vld [vmem:[%s5 + $0x68] sm:$0xff]
  %v538 = vld [vmem:[%s5 + $0x70] sm:$0xff]
  %v539 = vld [vmem:[%s5 + $0x78] sm:$0xff]
  %v540 = vld [vmem:[%s5 + $0x80] sm:$0xff]
  %v541 = vld [vmem:[%s5 + $0x88] sm:$0xff]
  %v542 = vld [vmem:[%s5 + $0x90] sm:$0xff]
  %v543 = vld [vmem:[%s5 + $0x98] sm:$0xff]
  %v544 = vld [vmem:[%s5 + $0xa0] sm:$0xff]
  %v545 = vld [vmem:[%s5 + $0xa8] sm:$0xff]
  %v546 = vld [vmem:[%s5 + $0xb0] sm:$0xff]
  %v547 = vld [vmem:[%s5 + $0xb8] sm:$0xff]
  %v548 = vld [vmem:[%s5 + $0xc0] sm:$0xff]
  %v549 = vld [vmem:[%s5 + $0xc8] sm:$0xff]
  %v550 = vld [vmem:[%s5 + $0xd0] sm:$0xff]
  %v551 = vld [vmem:[%s5 + $0xd8] sm:$0xff]
  %v552 = vld [vmem:[%s5 + $0xe0] sm:$0xff]
  %v553 = vld [vmem:[%s5 + $0xe8] sm:$0xff]
  %v554 = vld [vmem:[%s5 + $0xf0] sm:$0xff]
  %v555 = vld [vmem:[%s5 + $0xf8] sm:$0xff]
  %v556 = vld [vmem:[%s6] sm:$0xff]
  %v557 = vld [vmem:[%s6 + $0x8] sm:$0xff]
  %v558 = vld [vmem:[%s6 + $0x10] sm:$0xff]
  %v559 = vld [vmem:[%s6 + $0x18] sm:$0xff]
  %v560 = vld [vmem:[%s6 + $0x20] sm:$0xff]
  %v561 = vld [vmem:[%s6 + $0x28] sm:$0xff]
  %v562 = vld [vmem:[%s6 + $0x30] sm:$0xff]
  %v563 = vld [vmem:[%s6 + $0x38] sm:$0xff]
  %v564 = vld [vmem:[%s6 + $0x40] sm:$0xff]
  %v565 = vld [vmem:[%s6 + $0x48] sm:$0xff]
  %v566 = vld [vmem:[%s6 + $0x50] sm:$0xff]
  %v567 = vld [vmem:[%s6 + $0x58] sm:$0xff]
  %v568 = vld [vmem:[%s6 + $0x60] sm:$0xff]
  %v569 = vld [vmem:[%s6 + $0x68] sm:$0xff]
  %v570 = vld [vmem:[%s6 + $0x70] sm:$0xff]
  %v571 = vld [vmem:[%s6 + $0x78] sm:$0xff]
  %v572 = vld [vmem:[%s6 + $0x80] sm:$0xff]
  %v573 = vld [vmem:[%s6 + $0x88] sm:$0xff]
  %v574 = vld [vmem:[%s6 + $0x90] sm:$0xff]
  %v575 = vld [vmem:[%s6 + $0x98] sm:$0xff]
  %v576 = vld [vmem:[%s6 + $0xa0] sm:$0xff]
  %v577 = vld [vmem:[%s6 + $0xa8] sm:$0xff]
  %v578 = vld [vmem:[%s6 + $0xb0] sm:$0xff]
  %v579 = vld [vmem:[%s6 + $0xb8] sm:$0xff]
  %v580 = vld [vmem:[%s6 + $0xc0] sm:$0xff]
  %v581 = vld [vmem:[%s6 + $0xc8] sm:$0xff]
  %v582 = vld [vmem:[%s6 + $0xd0] sm:$0xff]
  %v583 = vld [vmem:[%s6 + $0xd8] sm:$0xff]
  %v584 = vld [vmem:[%s6 + $0xe0] sm:$0xff]
  %v585 = vld [vmem:[%s6 + $0xe8] sm:$0xff]
  %v586 = vld [vmem:[%s6 + $0xf0] sm:$0xff]
  %v587 = vld [vmem:[%s6 + $0xf8] sm:$0xff]
  %v620 = vunpack.c.l.b16 %v524
  %v621 = vunpack.c.h.b16 %v524
  %v622 = vunpack.c.l.b16 %v525
  %v623 = vunpack.c.h.b16 %v525
  %v624 = vunpack.c.l.b16 %v526
  %v625 = vunpack.c.h.b16 %v526
  %v626 = vunpack.c.l.b16 %v527
  %v627 = vunpack.c.h.b16 %v527
  %v628 = vunpack.c.l.b16 %v528
  %v629 = vunpack.c.h.b16 %v528
  %v630 = vunpack.c.l.b16 %v529
  %v631 = vunpack.c.h.b16 %v529
  %v632 = vunpack.c.l.b16 %v530
  %v633 = vunpack.c.h.b16 %v530
  %v634 = vunpack.c.l.b16 %v531
  %v635 = vunpack.c.h.b16 %v531
  %v636 = vunpack.c.l.b16 %v532
  %v637 = vunpack.c.h.b16 %v532
  %v638 = vunpack.c.l.b16 %v533
  %v639 = vunpack.c.h.b16 %v533
  %v640 = vunpack.c.l.b16 %v534
  %v641 = vunpack.c.h.b16 %v534
  %v642 = vunpack.c.l.b16 %v535
  %v643 = vunpack.c.h.b16 %v535
  %v644 = vunpack.c.l.b16 %v536
  %v645 = vunpack.c.h.b16 %v536
  %v646 = vunpack.c.l.b16 %v537
  %v647 = vunpack.c.h.b16 %v537
  %v648 = vunpack.c.l.b16 %v538
  %v649 = vunpack.c.h.b16 %v538
  %v650 = vunpack.c.l.b16 %v539
  %v651 = vunpack.c.h.b16 %v539
  %v652 = vunpack.c.l.b16 %v540
  %v653 = vunpack.c.h.b16 %v540
  %v654 = vunpack.c.l.b16 %v541
  %v655 = vunpack.c.h.b16 %v541
  %v656 = vunpack.c.l.b16 %v542
  %v657 = vunpack.c.h.b16 %v542
  %v658 = vunpack.c.l.b16 %v543
  %v659 = vunpack.c.h.b16 %v543
  %v660 = vunpack.c.l.b16 %v544
  %v661 = vunpack.c.h.b16 %v544
  %v662 = vunpack.c.l.b16 %v545
  %v663 = vunpack.c.h.b16 %v545
  %v664 = vunpack.c.l.b16 %v546
  %v665 = vunpack.c.h.b16 %v546
  %v666 = vunpack.c.l.b16 %v547
  %v667 = vunpack.c.h.b16 %v547
  %v668 = vunpack.c.l.b16 %v548
  %v669 = vunpack.c.h.b16 %v548
  %v670 = vunpack.c.l.b16 %v549
  %v671 = vunpack.c.h.b16 %v549
  %v672 = vunpack.c.l.b16 %v550
  %v673 = vunpack.c.h.b16 %v550
  %v674 = vunpack.c.l.b16 %v551
  %v675 = vunpack.c.h.b16 %v551
  %v676 = vunpack.c.l.b16 %v552
  %v677 = vunpack.c.h.b16 %v552
  %v678 = vunpack.c.l.b16 %v553
  %v679 = vunpack.c.h.b16 %v553
  %v680 = vunpack.c.l.b16 %v554
  %v681 = vunpack.c.h.b16 %v554
  %v682 = vunpack.c.l.b16 %v555
  %v683 = vunpack.c.h.b16 %v555
  %v684 = vpack.c.b16 %v624, %v620
  %v685 = vpack.c.b16 %v625, %v621
  %v686 = vpack.c.b16 %v626, %v622
  %v687 = vpack.c.b16 %v627, %v623
  %v688 = vpack.c.b16 %v632, %v628
  %v689 = vpack.c.b16 %v633, %v629
  %v690 = vpack.c.b16 %v634, %v630
  %v691 = vpack.c.b16 %v635, %v631
  %v692 = vpack.c.b16 %v640, %v636
  %v693 = vpack.c.b16 %v641, %v637
  %v694 = vpack.c.b16 %v642, %v638
  %v695 = vpack.c.b16 %v643, %v639
  %v696 = vpack.c.b16 %v648, %v644
  %v697 = vpack.c.b16 %v649, %v645
  %v698 = vpack.c.b16 %v650, %v646
  %v699 = vpack.c.b16 %v651, %v647
  %v700 = vpack.c.b16 %v656, %v652
  %v701 = vpack.c.b16 %v657, %v653
  %v702 = vpack.c.b16 %v658, %v654
  %v703 = vpack.c.b16 %v659, %v655
  %v704 = vpack.c.b16 %v664, %v660
  %v705 = vpack.c.b16 %v665, %v661
  %v706 = vpack.c.b16 %v666, %v662
  %v707 = vpack.c.b16 %v667, %v663
  %v708 = vpack.c.b16 %v672, %v668
  %v709 = vpack.c.b16 %v673, %v669
  %v710 = vpack.c.b16 %v674, %v670
  %v711 = vpack.c.b16 %v675, %v671
  %v712 = vpack.c.b16 %v680, %v676
  %v713 = vpack.c.b16 %v681, %v677
  %v714 = vpack.c.b16 %v682, %v678
  %v715 = vpack.c.b16 %v683, %v679
  %748 = vmatprep.subr.bf16.mxu0 %v685
  %749 = vmatpush1.bf16.msra.mxu0 %v684
  %750 = vmatprep.subr.bf16.mxu0 %v689
  %751 = vmatpush1.bf16.msra.mxu0 %v688
  %752 = vmatprep.subr.bf16.mxu0 %v693
  %753 = vmatpush1.bf16.msra.mxu0 %v692
  %754 = vmatprep.subr.bf16.mxu0 %v697
  %755 = vmatpush1.bf16.msra.mxu0 %v696
  %756 = vmatprep.subr.bf16.mxu0 %v701
  %757 = vmatpush1.bf16.msra.mxu0 %v700
  %758 = vmatprep.subr.bf16.mxu0 %v705
  %759 = vmatpush1.bf16.msra.mxu0 %v704
  %760 = vmatprep.subr.bf16.mxu0 %v709
  %761 = vmatpush1.bf16.msra.mxu0 %v708
  %762 = vmatprep.subr.bf16.mxu0 %v713
  %763 = vmatpush1.bf16.msra.mxu0 %v712
  %764 = vmatprep.subr.bf16.mxu0 0
  %765 = vmatpush1.bf16.msra.mxu0 0
  %766 = vmatprep.subr.bf16.mxu0 0
  %767 = vmatpush1.bf16.msra.mxu0 0
  %768 = vmatprep.subr.bf16.mxu0 0
  %769 = vmatpush1.bf16.msra.mxu0 0
  %770 = vmatprep.subr.bf16.mxu0 0
  %771 = vmatpush1.bf16.msra.mxu0 0
  %772 = vmatprep.subr.bf16.mxu0 0
  %773 = vmatpush1.bf16.msra.mxu0 0
  %774 = vmatprep.subr.bf16.mxu0 0
  %775 = vmatpush1.bf16.msra.mxu0 0
  %776 = vmatprep.subr.bf16.mxu0 0
  %777 = vmatpush1.bf16.msra.mxu0 0
  %778 = vmatprep.subr.bf16.mxu0 0
  %779 = vmatpush1.bf16.msra.mxu0 0
  %780 = vmatprep.mubr.bf16.mxu0 0
  %781 = vmatmul.mubr.bf16.gmra.mrb[0].mxu0 0
  %v782 = vpop.f32.mrb[0].mxu0
  %v783 = vadd.f32 0.0, %v782
  %v784 = vpop.f32.mrb[0].mxu0
  %v785 = vadd.f32 0.0, %v784
  %v786 = vpop.f32.mrb[0].mxu0
  %v787 = vpop.f32.mrb[0].mxu0
  %788 = vdwg.mxu0
  %789 = vmatprep.subr.bf16.mxu0 %v687
  %790 = vmatpush1.bf16.msra.mxu0 %v686
  %791 = vmatprep.subr.bf16.mxu0 %v691
  %792 = vmatpush1.bf16.msra.mxu0 %v690
  %793 = vmatprep.subr.bf16.mxu0 %v695
  %794 = vmatpush1.bf16.msra.mxu0 %v694
  %795 = vmatprep.subr.bf16.mxu0 %v699
  %796 = vmatpush1.bf16.msra.mxu0 %v698
  %797 = vmatprep.subr.bf16.mxu0 %v703
  %798 = vmatpush1.bf16.msra.mxu0 %v702
  %799 = vmatprep.subr.bf16.mxu0 %v707
  %800 = vmatpush1.bf16.msra.mxu0 %v706
  %801 = vmatprep.subr.bf16.mxu0 %v711
  %802 = vmatpush1.bf16.msra.mxu0 %v710
  %803 = vmatprep.subr.bf16.mxu0 %v715
  %804 = vmatpush1.bf16.msra.mxu0 %v714
  %805 = vmatprep.subr.bf16.mxu0 0
  %806 = vmatpush1.bf16.msra.mxu0 0
  %807 = vmatprep.subr.bf16.mxu0 0
  %808 = vmatpush1.bf16.msra.mxu0 0
  %809 = vmatprep.subr.bf16.mxu0 0
  %810 = vmatpush1.bf16.msra.mxu0 0
  %811 = vmatprep.subr.bf16.mxu0 0
  %812 = vmatpush1.bf16.msra.mxu0 0
  %813 = vmatprep.subr.bf16.mxu0 0
  %814 = vmatpush1.bf16.msra.mxu0 0
  %815 = vmatprep.subr.bf16.mxu0 0
  %816 = vmatpush1.bf16.msra.mxu0 0
  %817 = vmatprep.subr.bf16.mxu0 0
  %818 = vmatpush1.bf16.msra.mxu0 0
  %819 = vmatprep.subr.bf16.mxu0 0
  %820 = vmatpush1.bf16.msra.mxu0 0
  %821 = vmatprep.mubr.bf16.mxu0 0
  %822 = vmatmul.mubr.bf16.gmra.mrb[0].mxu0 0
  %v823 = vpop.f32.mrb[0].mxu0
  %v824 = vadd.f32 0.0, %v823
  %v825 = vpop.f32.mrb[0].mxu0
  %v826 = vadd.f32 0.0, %v825
  %v827 = vpop.f32.mrb[0].mxu0
  %v828 = vpop.f32.mrb[0].mxu0
  %829 = vdwg.mxu0
  %v862 = vunpack.c.l.b16 %v556
  %v863 = vunpack.c.h.b16 %v556
  %v864 = vunpack.c.l.b16 %v557
  %v865 = vunpack.c.h.b16 %v557
  %v866 = vunpack.c.l.b16 %v558
  %v867 = vunpack.c.h.b16 %v558
  %v868 = vunpack.c.l.b16 %v559
  %v869 = vunpack.c.h.b16 %v559
  %v870 = vunpack.c.l.b16 %v560
  %v871 = vunpack.c.h.b16 %v560
  %v872 = vunpack.c.l.b16 %v561
  %v873 = vunpack.c.h.b16 %v561
  %v874 = vunpack.c.l.b16 %v562
  %v875 = vunpack.c.h.b16 %v562
  %v876 = vunpack.c.l.b16 %v563
  %v877 = vunpack.c.h.b16 %v563
  %v878 = vunpack.c.l.b16 %v564
  %v879 = vunpack.c.h.b16 %v564
  %v880 = vunpack.c.l.b16 %v565
  %v881 = vunpack.c.h.b16 %v565
  %v882 = vunpack.c.l.b16 %v566
  %v883 = vunpack.c.h.b16 %v566
  %v884 = vunpack.c.l.b16 %v567
  %v885 = vunpack.c.h.b16 %v567
  %v886 = vunpack.c.l.b16 %v568
  %v887 = vunpack.c.h.b16 %v568
  %v888 = vunpack.c.l.b16 %v569
  %v889 = vunpack.c.h.b16 %v569
  %v890 = vunpack.c.l.b16 %v570
  %v891 = vunpack.c.h.b16 %v570
  %v892 = vunpack.c.l.b16 %v571
  %v893 = vunpack.c.h.b16 %v571
  %v894 = vunpack.c.l.b16 %v572
  %v895 = vunpack.c.h.b16 %v572
  %v896 = vunpack.c.l.b16 %v573
  %v897 = vunpack.c.h.b16 %v573
  %v898 = vunpack.c.l.b16 %v574
  %v899 = vunpack.c.h.b16 %v574
  %v900 = vunpack.c.l.b16 %v575
  %v901 = vunpack.c.h.b16 %v575
  %v902 = vunpack.c.l.b16 %v576
  %v903 = vunpack.c.h.b16 %v576
  %v904 = vunpack.c.l.b16 %v577
  %v905 = vunpack.c.h.b16 %v577
  %v906 = vunpack.c.l.b16 %v578
  %v907 = vunpack.c.h.b16 %v578
  %v908 = vunpack.c.l.b16 %v579
  %v909 = vunpack.c.h.b16 %v579
  %v910 = vunpack.c.l.b16 %v580
  %v911 = vunpack.c.h.b16 %v580
  %v912 = vunpack.c.l.b16 %v581
  %v913 = vunpack.c.h.b16 %v581
  %v914 = vunpack.c.l.b16 %v582
  %v915 = vunpack.c.h.b16 %v582
  %v916 = vunpack.c.l.b16 %v583
  %v917 = vunpack.c.h.b16 %v583
  %v918 = vunpack.c.l.b16 %v584
  %v919 = vunpack.c.h.b16 %v584
  %v920 = vunpack.c.l.b16 %v585
  %v921 = vunpack.c.h.b16 %v585
  %v922 = vunpack.c.l.b16 %v586
  %v923 = vunpack.c.h.b16 %v586
  %v924 = vunpack.c.l.b16 %v587
  %v925 = vunpack.c.h.b16 %v587
  %v926 = vpack.c.b16 %v866, %v862
  %v927 = vpack.c.b16 %v867, %v863
  %v928 = vpack.c.b16 %v868, %v864
  %v929 = vpack.c.b16 %v869, %v865
  %v930 = vpack.c.b16 %v874, %v870
  %v931 = vpack.c.b16 %v875, %v871
  %v932 = vpack.c.b16 %v876, %v872
  %v933 = vpack.c.b16 %v877, %v873
  %v934 = vpack.c.b16 %v882, %v878
  %v935 = vpack.c.b16 %v883, %v879
  %v936 = vpack.c.b16 %v884, %v880
  %v937 = vpack.c.b16 %v885, %v881
  %v938 = vpack.c.b16 %v890, %v886
  %v939 = vpack.c.b16 %v891, %v887
  %v940 = vpack.c.b16 %v892, %v888
  %v941 = vpack.c.b16 %v893, %v889
  %v942 = vpack.c.b16 %v898, %v894
  %v943 = vpack.c.b16 %v899, %v895
  %v944 = vpack.c.b16 %v900, %v896
  %v945 = vpack.c.b16 %v901, %v897
  %v946 = vpack.c.b16 %v906, %v902
  %v947 = vpack.c.b16 %v907, %v903
  %v948 = vpack.c.b16 %v908, %v904
  %v949 = vpack.c.b16 %v909, %v905
  %v950 = vpack.c.b16 %v914, %v910
  %v951 = vpack.c.b16 %v915, %v911
  %v952 = vpack.c.b16 %v916, %v912
  %v953 = vpack.c.b16 %v917, %v913
  %v954 = vpack.c.b16 %v922, %v918
  %v955 = vpack.c.b16 %v923, %v919
  %v956 = vpack.c.b16 %v924, %v920
  %v957 = vpack.c.b16 %v925, %v921
  %990 = vmatprep.subr.bf16.mxu0 %v927
  %991 = vmatpush1.bf16.msra.mxu0 %v926
  %992 = vmatprep.subr.bf16.mxu0 %v931
  %993 = vmatpush1.bf16.msra.mxu0 %v930
  %994 = vmatprep.subr.bf16.mxu0 %v935
  %995 = vmatpush1.bf16.msra.mxu0 %v934
  %996 = vmatprep.subr.bf16.mxu0 %v939
  %997 = vmatpush1.bf16.msra.mxu0 %v938
  %998 = vmatprep.subr.bf16.mxu0 %v943
  %999 = vmatpush1.bf16.msra.mxu0 %v942
  %1000 = vmatprep.subr.bf16.mxu0 %v947
  %1001 = vmatpush1.bf16.msra.mxu0 %v946
  %1002 = vmatprep.subr.bf16.mxu0 %v951
  %1003 = vmatpush1.bf16.msra.mxu0 %v950
  %1004 = vmatprep.subr.bf16.mxu0 %v955
  %1005 = vmatpush1.bf16.msra.mxu0 %v954
  %1006 = vmatprep.subr.bf16.mxu0 0
  %1007 = vmatpush1.bf16.msra.mxu0 0
  %1008 = vmatprep.subr.bf16.mxu0 0
  %1009 = vmatpush1.bf16.msra.mxu0 0
  %1010 = vmatprep.subr.bf16.mxu0 0
  %1011 = vmatpush1.bf16.msra.mxu0 0
  %1012 = vmatprep.subr.bf16.mxu0 0
  %1013 = vmatpush1.bf16.msra.mxu0 0
  %1014 = vmatprep.subr.bf16.mxu0 0
  %1015 = vmatpush1.bf16.msra.mxu0 0
  %1016 = vmatprep.subr.bf16.mxu0 0
  %1017 = vmatpush1.bf16.msra.mxu0 0
  %1018 = vmatprep.subr.bf16.mxu0 0
  %1019 = vmatpush1.bf16.msra.mxu0 0
  %1020 = vmatprep.subr.bf16.mxu0 0
  %1021 = vmatpush1.bf16.msra.mxu0 0
  %1022 = vmatprep.mubr.bf16.mxu0 0
  %1023 = vmatmul.mubr.bf16.gmra.mrb[0].mxu0 0
  %v1024 = vpop.f32.mrb[0].mxu0
  %v1025 = vadd.f32 0.0, %v1024
  %v1026 = vpop.f32.mrb[0].mxu0
  %v1027 = vadd.f32 0.0, %v1026
  %v1028 = vpop.f32.mrb[0].mxu0
  %v1029 = vpop.f32.mrb[0].mxu0
  %1030 = vdwg.mxu0
  %1031 = vmatprep.subr.bf16.mxu0 %v929
  %1032 = vmatpush1.bf16.msra.mxu0 %v928
  %1033 = vmatprep.subr.bf16.mxu0 %v933
  %1034 = vmatpush1.bf16.msra.mxu0 %v932
  %1035 = vmatprep.subr.bf16.mxu0 %v937
  %1036 = vmatpush1.bf16.msra.mxu0 %v936
  %1037 = vmatprep.subr.bf16.mxu0 %v941
  %1038 = vmatpush1.bf16.msra.mxu0 %v940
  %1039 = vmatprep.subr.bf16.mxu0 %v945
  %1040 = vmatpush1.bf16.msra.mxu0 %v944
  %1041 = vmatprep.subr.bf16.mxu0 %v949
  %1042 = vmatpush1.bf16.msra.mxu0 %v948
  %1043 = vmatprep.subr.bf16.mxu0 %v953
  %1044 = vmatpush1.bf16.msra.mxu0 %v952
  %1045 = vmatprep.subr.bf16.mxu0 %v957
  %1046 = vmatpush1.bf16.msra.mxu0 %v956
  %1047 = vmatprep.subr.bf16.mxu0 0
  %1048 = vmatpush1.bf16.msra.mxu0 0
  %1049 = vmatprep.subr.bf16.mxu0 0
  %1050 = vmatpush1.bf16.msra.mxu0 0
  %1051 = vmatprep.subr.bf16.mxu0 0
  %1052 = vmatpush1.bf16.msra.mxu0 0
  %1053 = vmatprep.subr.bf16.mxu0 0
  %1054 = vmatpush1.bf16.msra.mxu0 0
  %1055 = vmatprep.subr.bf16.mxu0 0
  %1056 = vmatpush1.bf16.msra.mxu0 0
  %1057 = vmatprep.subr.bf16.mxu0 0
  %1058 = vmatpush1.bf16.msra.mxu0 0
  %1059 = vmatprep.subr.bf16.mxu0 0
  %1060 = vmatpush1.bf16.msra.mxu0 0
  %1061 = vmatprep.subr.bf16.mxu0 0
  %1062 = vmatpush1.bf16.msra.mxu0 0
  %1063 = vmatprep.mubr.bf16.mxu0 0
  %1064 = vmatmul.mubr.bf16.gmra.mrb[0].mxu0 0
  %v1065 = vpop.f32.mrb[0].mxu0
  %v1066 = vadd.f32 0.0, %v1065
  %v1067 = vpop.f32.mrb[0].mxu0
  %v1068 = vadd.f32 0.0, %v1067
  %v1069 = vpop.f32.mrb[0].mxu0
  %v1070 = vpop.f32.mrb[0].mxu0
  %1071 = vdwg.mxu0
  %v1072 = vld [vmem:[#allocation2] sm:$0xff]
  %v1073 = vld [vmem:[#allocation2 + $0x8] sm:$0xff]
  %v1074 = vld [vmem:[#allocation2 + $0x10] sm:$0xff]
  %v1075 = vld [vmem:[#allocation2 + $0x18] sm:$0xff]
  %v1076 = vadd.f32 %v1072, %v783
  %v1077 = vadd.f32 %v1073, %v785
  %v1078 = vadd.f32 %v1074, %v824
  %v1079 = vadd.f32 %v1075, %v826
  %v1080 = vxor.u32 %v1076, 2147483648
  %v1081 = vmul.f32 %v1080, 1.442695
  %v1082 = vpow.pop %v1081
  %v1083 = vadd.f32 %v1082, 1.0
  %v1084 = vrcp.pop %v1083
  %v1085 = vmul.f32 1.0, %v1084
  %v1086 = vxor.u32 %v1077, 2147483648
  %v1087 = vmul.f32 %v1086, 1.442695
  %v1088 = vpow.pop %v1087
  %v1089 = vadd.f32 %v1088, 1.0
  %v1090 = vrcp.pop %v1089
  %v1091 = vmul.f32 1.0, %v1090
  %v1092 = vtanh.pop %v1078
  %v1093 = vxor.u32 %v1079, 2147483648
  %v1094 = vmul.f32 %v1093, 1.442695
  %v1095 = vpow.pop %v1094
  %v1096 = vadd.f32 %v1095, 1.0
  %v1097 = vrcp.pop %v1096
  %v1098 = vmul.f32 1.0, %v1097
  %v1099 = vmul.f32 %v1091, 0.0
  %v1100 = vmul.f32 %v1085, %v1092
  %v1101 = vadd.f32 %v1099, %v1100
  %v1102 = vtanh.pop %v1101
  %v1103 = vmul.f32 %v1098, %v1102
  %s1104 = scalar_lea.vmem [#allocation3], 224
  %v1105 = vld [vmem:[%s1104] sm:$0xff]
  %v1106 = vld [vmem:[%s1104 + $0x8] sm:$0xff]
  %v1107 = vld [vmem:[%s1104 + $0x10] sm:$0xff]
  %v1108 = vld [vmem:[%s1104 + $0x18] sm:$0xff]
  %v1109 = vadd.f32 %v1105, %v1025
  %v1110 = vadd.f32 %v1106, %v1027
  %v1111 = vadd.f32 %v1107, %v1066
  %v1112 = vadd.f32 %v1108, %v1068
  %v1113 = vxor.u32 %v1109, 2147483648
  %v1114 = vmul.f32 %v1113, 1.442695
  %v1115 = vpow.pop %v1114
  %v1116 = vadd.f32 %v1115, 1.0
  %v1117 = vrcp.pop %v1116
  %v1118 = vmul.f32 1.0, %v1117
  %v1119 = vxor.u32 %v1110, 2147483648
  %v1120 = vmul.f32 %v1119, 1.442695
  %v1121 = vpow.pop %v1120
  %v1122 = vadd.f32 %v1121, 1.0
  %v1123 = vrcp.pop %v1122
  %v1124 = vmul.f32 1.0, %v1123
  %v1125 = vtanh.pop %v1111
  %v1126 = vxor.u32 %v1112, 2147483648
  %v1127 = vmul.f32 %v1126, 1.442695
  %v1128 = vpow.pop %v1127
  %v1129 = vadd.f32 %v1128, 1.0
  %v1130 = vrcp.pop %v1129
  %v1131 = vmul.f32 1.0, %v1130
  %v1132 = vmul.f32 %v1124, 0.0
  %v1133 = vmul.f32 %v1118, %v1125
  %v1134 = vadd.f32 %v1132, %v1133
  %v1135 = vtanh.pop %v1134
  %v1136 = vmul.f32 %v1131, %v1135
  %v1137 = vpack.c.bf16 %v1103, %v1103
  %1138 = vmatprep.subr.bf16.mxu0 %v685
  %1139 = vmatpush1.bf16.msra.mxu0 %v684
  %1140 = vmatprep.subr.bf16.mxu0 %v689
  %1141 = vmatpush1.bf16.msra.mxu0 %v688
  %1142 = vmatprep.subr.bf16.mxu0 %v693
  %1143 = vmatpush1.bf16.msra.mxu0 %v692
  %1144 = vmatprep.subr.bf16.mxu0 %v697
  %1145 = vmatpush1.bf16.msra.mxu0 %v696
  %1146 = vmatprep.subr.bf16.mxu0 %v701
  %1147 = vmatpush1.bf16.msra.mxu0 %v700
  %1148 = vmatprep.subr.bf16.mxu0 %v705
  %1149 = vmatpush1.bf16.msra.mxu0 %v704
  %1150 = vmatprep.subr.bf16.mxu0 %v709
  %1151 = vmatpush1.bf16.msra.mxu0 %v708
  %1152 = vmatprep.subr.bf16.mxu0 %v713
  %1153 = vmatpush1.bf16.msra.mxu0 %v712
  %1154 = vmatprep.subr.bf16.mxu0 0
  %1155 = vmatpush1.bf16.msra.mxu0 0
  %1156 = vmatprep.subr.bf16.mxu0 0
  %1157 = vmatpush1.bf16.msra.mxu0 0
  %1158 = vmatprep.subr.bf16.mxu0 0
  %1159 = vmatpush1.bf16.msra.mxu0 0
  %1160 = vmatprep.subr.bf16.mxu0 0
  %1161 = vmatpush1.bf16.msra.mxu0 0
  %1162 = vmatprep.subr.bf16.mxu0 0
  %1163 = vmatpush1.bf16.msra.mxu0 0
  %1164 = vmatprep.subr.bf16.mxu0 0
  %1165 = vmatpush1.bf16.msra.mxu0 0
  %1166 = vmatprep.subr.bf16.mxu0 0
  %1167 = vmatpush1.bf16.msra.mxu0 0
  %1168 = vmatprep.subr.bf16.mxu0 0
  %1169 = vmatpush1.bf16.msra.mxu0 0
  %1170 = vmatprep.mubr.bf16.mxu0 0
  %1171 = vmatmul.mubr.bf16.gmra.mrb[0].mxu0 %v1137
  %v1172 = vpop.f32.mrb[0].mxu0
  %v1173 = vadd.f32 0.0, %v1172
  %v1174 = vpop.f32.mrb[0].mxu0
  %v1175 = vadd.f32 0.0, %v1174
  %v1176 = vpop.f32.mrb[0].mxu0
  %v1177 = vpop.f32.mrb[0].mxu0
  %1178 = vdwg.mxu0
  %1179 = vmatprep.subr.bf16.mxu0 %v687
  %1180 = vmatpush1.bf16.msra.mxu0 %v686
  %1181 = vmatprep.subr.bf16.mxu0 %v691
  %1182 = vmatpush1.bf16.msra.mxu0 %v690
  %1183 = vmatprep.subr.bf16.mxu0 %v695
  %1184 = vmatpush1.bf16.msra.mxu0 %v694
  %1185 = vmatprep.subr.bf16.mxu0 %v699
  %1186 = vmatpush1.bf16.msra.mxu0 %v698
  %1187 = vmatprep.subr.bf16.mxu0 %v703
  %1188 = vmatpush1.bf16.msra.mxu0 %v702
  %1189 = vmatprep.subr.bf16.mxu0 %v707
  %1190 = vmatpush1.bf16.msra.mxu0 %v706
  %1191 = vmatprep.subr.bf16.mxu0 %v711
  %1192 = vmatpush1.bf16.msra.mxu0 %v710
  %1193 = vmatprep.subr.bf16.mxu0 %v715
  %1194 = vmatpush1.bf16.msra.mxu0 %v714
  %1195 = vmatprep.subr.bf16.mxu0 0
  %1196 = vmatpush1.bf16.msra.mxu0 0
  %1197 = vmatprep.subr.bf16.mxu0 0
  %1198 = vmatpush1.bf16.msra.mxu0 0
  %1199 = vmatprep.subr.bf16.mxu0 0
  %1200 = vmatpush1.bf16.msra.mxu0 0
  %1201 = vmatprep.subr.bf16.mxu0 0
  %1202 = vmatpush1.bf16.msra.mxu0 0
  %1203 = vmatprep.subr.bf16.mxu0 0
  %1204 = vmatpush1.bf16.msra.mxu0 0
  %1205 = vmatprep.subr.bf16.mxu0 0
  %1206 = vmatpush1.bf16.msra.mxu0 0
  %1207 = vmatprep.subr.bf16.mxu0 0
  %1208 = vmatpush1.bf16.msra.mxu0 0
  %1209 = vmatprep.subr.bf16.mxu0 0
  %1210 = vmatpush1.bf16.msra.mxu0 0
  %1211 = vmatprep.mubr.bf16.mxu0 0
  %1212 = vmatmul.mubr.bf16.gmra.mrb[0].mxu0 %v1137
  %v1213 = vpop.f32.mrb[0].mxu0
  %v1214 = vadd.f32 0.0, %v1213
  %v1215 = vpop.f32.mrb[0].mxu0
  %v1216 = vadd.f32 0.0, %v1215
  %v1217 = vpop.f32.mrb[0].mxu0
  %v1218 = vpop.f32.mrb[0].mxu0
  %1219 = vdwg.mxu0
  %v1220 = vpack.c.bf16 %v1136, %v1136
  %1221 = vmatprep.subr.bf16.mxu0 %v927
  %1222 = vmatpush1.bf16.msra.mxu0 %v926
  %1223 = vmatprep.subr.bf16.mxu0 %v931
  %1224 = vmatpush1.bf16.msra.mxu0 %v930
  %1225 = vmatprep.subr.bf16.mxu0 %v935
  %1226 = vmatpush1.bf16.msra.mxu0 %v934
  %1227 = vmatprep.subr.bf16.mxu0 %v939
  %1228 = vmatpush1.bf16.msra.mxu0 %v938
  %1229 = vmatprep.subr.bf16.mxu0 %v943
  %1230 = vmatpush1.bf16.msra.mxu0 %v942
  %1231 = vmatprep.subr.bf16.mxu0 %v947
  %1232 = vmatpush1.bf16.msra.mxu0 %v946
  %1233 = vmatprep.subr.bf16.mxu0 %v951
  %1234 = vmatpush1.bf16.msra.mxu0 %v950
  %1235 = vmatprep.subr.bf16.mxu0 %v955
  %1236 = vmatpush1.bf16.msra.mxu0 %v954
  %1237 = vmatprep.subr.bf16.mxu0 0
  %1238 = vmatpush1.bf16.msra.mxu0 0
  %1239 = vmatprep.subr.bf16.mxu0 0
  %1240 = vmatpush1.bf16.msra.mxu0 0
  %1241 = vmatprep.subr.bf16.mxu0 0
  %1242 = vmatpush1.bf16.msra.mxu0 0
  %1243 = vmatprep.subr.bf16.mxu0 0
  %1244 = vmatpush1.bf16.msra.mxu0 0
  %1245 = vmatprep.subr.bf16.mxu0 0
  %1246 = vmatpush1.bf16.msra.mxu0 0
  %1247 = vmatprep.subr.bf16.mxu0 0
  %1248 = vmatpush1.bf16.msra.mxu0 0
  %1249 = vmatprep.subr.bf16.mxu0 0
  %1250 = vmatpush1.bf16.msra.mxu0 0
  %1251 = vmatprep.subr.bf16.mxu0 0
  %1252 = vmatpush1.bf16.msra.mxu0 0
  %1253 = vmatprep.mubr.bf16.mxu0 0
  %1254 = vmatmul.mubr.bf16.gmra.mrb[0].mxu0 %v1220
  %v1255 = vpop.f32.mrb[0].mxu0
  %v1256 = vadd.f32 0.0, %v1255
  %v1257 = vpop.f32.mrb[0].mxu0
  %v1258 = vadd.f32 0.0, %v1257
  %v1259 = vpop.f32.mrb[0].mxu0
  %v1260 = vpop.f32.mrb[0].mxu0
  %1261 = vdwg.mxu0
  %1262 = vmatprep.subr.bf16.mxu0 %v929
  %1263 = vmatpush1.bf16.msra.mxu0 %v928
  %1264 = vmatprep.subr.bf16.mxu0 %v933
  %1265 = vmatpush1.bf16.msra.mxu0 %v932
  %1266 = vmatprep.subr.bf16.mxu0 %v937
  %1267 = vmatpush1.bf16.msra.mxu0 %v936
  %1268 = vmatprep.subr.bf16.mxu0 %v941
  %1269 = vmatpush1.bf16.msra.mxu0 %v940
  %1270 = vmatprep.subr.bf16.mxu0 %v945
  %1271 = vmatpush1.bf16.msra.mxu0 %v944
  %1272 = vmatprep.subr.bf16.mxu0 %v949
  %1273 = vmatpush1.bf16.msra.mxu0 %v948
  %1274 = vmatprep.subr.bf16.mxu0 %v953
  %1275 = vmatpush1.bf16.msra.mxu0 %v952
  %1276 = vmatprep.subr.bf16.mxu0 %v957
  %1277 = vmatpush1.bf16.msra.mxu0 %v956
  %1278 = vmatprep.subr.bf16.mxu0 0
  %1279 = vmatpush1.bf16.msra.mxu0 0
  %1280 = vmatprep.subr.bf16.mxu0 0
  %1281 = vmatpush1.bf16.msra.mxu0 0
  %1282 = vmatprep.subr.bf16.mxu0 0
  %1283 = vmatpush1.bf16.msra.mxu0 0
  %1284 = vmatprep.subr.bf16.mxu0 0
  %1285 = vmatpush1.bf16.msra.mxu0 0
  %1286 = vmatprep.subr.bf16.mxu0 0
  %1287 = vmatpush1.bf16.msra.mxu0 0
  %1288 = vmatprep.subr.bf16.mxu0 0
  %1289 = vmatpush1.bf16.msra.mxu0 0
  %1290 = vmatprep.subr.bf16.mxu0 0
  %1291 = vmatpush1.bf16.msra.mxu0 0
  %1292 = vmatprep.subr.bf16.mxu0 0
  %1293 = vmatpush1.bf16.msra.mxu0 0
  %1294 = vmatprep.mubr.bf16.mxu0 0
  %1295 = vmatmul.mubr.bf16.gmra.mrb[0].mxu0 %v1220
  %v1296 = vpop.f32.mrb[0].mxu0
  %v1297 = vadd.f32 0.0, %v1296
  %v1298 = vpop.f32.mrb[0].mxu0
  %v1299 = vadd.f32 0.0, %v1298
  %v1300 = vpop.f32.mrb[0].mxu0
  %v1301 = vpop.f32.mrb[0].mxu0
  %1302 = vdwg.mxu0
  %s1303 = scalar_lea.vmem [#allocation2], 32
  %v1304 = vld [vmem:[%s1303] sm:$0xff]
  %v1305 = vld [vmem:[%s1303 + $0x8] sm:$0xff]
  %v1306 = vld [vmem:[%s1303 + $0x10] sm:$0xff]
  %v1307 = vld [vmem:[%s1303 + $0x18] sm:$0xff]
  %v1308 = vadd.f32 %v1304, %v1173
  %v1309 = vadd.f32 %v1305, %v1175
  %v1310 = vadd.f32 %v1306, %v1214
  %v1311 = vadd.f32 %v1307, %v1216
  %v1312 = vxor.u32 %v1308, 2147483648
  %v1313 = vmul.f32 %v1312, 1.442695
  %v1314 = vpow.pop %v1313
  %v1315 = vadd.f32 %v1314, 1.0
  %v1316 = vrcp.pop %v1315
  %v1317 = vmul.f32 1.0, %v1316
  %v1318 = vxor.u32 %v1309, 2147483648
  %v1319 = vmul.f32 %v1318, 1.442695
  %v1320 = vpow.pop %v1319
  %v1321 = vadd.f32 %v1320, 1.0
  %v1322 = vrcp.pop %v1321
  %v1323 = vmul.f32 1.0, %v1322
  %v1324 = vtanh.pop %v1310
  %v1325 = vxor.u32 %v1311, 2147483648
  %v1326 = vmul.f32 %v1325, 1.442695
  %v1327 = vpow.pop %v1326
  %v1328 = vadd.f32 %v1327, 1.0
  %v1329 = vrcp.pop %v1328
  %v1330 = vmul.f32 1.0, %v1329
  %v1331 = vmul.f32 %v1323, %v1101
  %v1332 = vmul.f32 %v1317, %v1324
  %v1333 = vadd.f32 %v1331, %v1332
  %v1334 = vtanh.pop %v1333
  %v1335 = vmul.f32 %v1330, %v1334
  %s1336 = scalar_lea.vmem [#allocation3], 192
  %v1337 = vld [vmem:[%s1336] sm:$0xff]
  %v1338 = vld [vmem:[%s1336 + $0x8] sm:$0xff]
  %v1339 = vld [vmem:[%s1336 + $0x10] sm:$0xff]
  %v1340 = vld [vmem:[%s1336 + $0x18] sm:$0xff]
  %v1341 = vadd.f32 %v1337, %v1256
  %v1342 = vadd.f32 %v1338, %v1258
  %v1343 = vadd.f32 %v1339, %v1297
  %v1344 = vadd.f32 %v1340, %v1299
  %v1345 = vxor.u32 %v1341, 2147483648
  %v1346 = vmul.f32 %v1345, 1.442695
  %v1347 = vpow.pop %v1346
  %v1348 = vadd.f32 %v1347, 1.0
  %v1349 = vrcp.pop %v1348
  %v1350 = vmul.f32 1.0, %v1349
  %v1351 = vxor.u32 %v1342, 2147483648
  %v1352 = vmul.f32 %v1351, 1.442695
  %v1353 = vpow.pop %v1352
  %v1354 = vadd.f32 %v1353, 1.0
  %v1355 = vrcp.pop %v1354
  %v1356 = vmul.f32 1.0, %v1355
  %v1357 = vtanh.pop %v1343
  %v1358 = vxor.u32 %v1344, 2147483648
  %v1359 = vmul.f32 %v1358, 1.442695
  %v1360 = vpow.pop %v1359
  %v1361 = vadd.f32 %v1360, 1.0
  %v1362 = vrcp.pop %v1361
  %v1363 = vmul.f32 1.0, %v1362
  %v1364 = vmul.f32 %v1356, %v1134
  %v1365 = vmul.f32 %v1350, %v1357
  %v1366 = vadd.f32 %v1364, %v1365
  %v1367 = vtanh.pop %v1366
  %v1368 = vmul.f32 %v1363, %v1367
  %v1369 = vpack.c.bf16 %v1335, %v1335
  %1370 = vmatprep.subr.bf16.mxu0 %v685
  %1371 = vmatpush1.bf16.msra.mxu0 %v684
  %1372 = vmatprep.subr.bf16.mxu0 %v689
  %1373 = vmatpush1.bf16.msra.mxu0 %v688
  %1374 = vmatprep.subr.bf16.mxu0 %v693
  %1375 = vmatpush1.bf16.msra.mxu0 %v692
  %1376 = vmatprep.subr.bf16.mxu0 %v697
  %1377 = vmatpush1.bf16.msra.mxu0 %v696
  %1378 = vmatprep.subr.bf16.mxu0 %v701
  %1379 = vmatpush1.bf16.msra.mxu0 %v700
  %1380 = vmatprep.subr.bf16.mxu0 %v705
  %1381 = vmatpush1.bf16.msra.mxu0 %v704
  %1382 = vmatprep.subr.bf16.mxu0 %v709
  %1383 = vmatpush1.bf16.msra.mxu0 %v708
  %1384 = vmatprep.subr.bf16.mxu0 %v713
  %1385 = vmatpush1.bf16.msra.mxu0 %v712
  %1386 = vmatprep.subr.bf16.mxu0 0
  %1387 = vmatpush1.bf16.msra.mxu0 0
  %1388 = vmatprep.subr.bf16.mxu0 0
  %1389 = vmatpush1.bf16.msra.mxu0 0
  %1390 = vmatprep.subr.bf16.mxu0 0
  %1391 = vmatpush1.bf16.msra.mxu0 0
  %1392 = vmatprep.subr.bf16.mxu0 0
  %1393 = vmatpush1.bf16.msra.mxu0 0
  %1394 = vmatprep.subr.bf16.mxu0 0
  %1395 = vmatpush1.bf16.msra.mxu0 0
  %1396 = vmatprep.subr.bf16.mxu0 0
  %1397 = vmatpush1.bf16.msra.mxu0 0
  %1398 = vmatprep.subr.bf16.mxu0 0
  %1399 = vmatpush1.bf16.msra.mxu0 0
  %1400 = vmatprep.subr.bf16.mxu0 0
  %1401 = vmatpush1.bf16.msra.mxu0 0
  %1402 = vmatprep.mubr.bf16.mxu0 0
  %1403 = vmatmul.mubr.bf16.gmra.mrb[0].mxu0 %v1369
  %v1404 = vpop.f32.mrb[0].mxu0
  %v1405 = vadd.f32 0.0, %v1404
  %v1406 = vpop.f32.mrb[0].mxu0
  %v1407 = vadd.f32 0.0, %v1406
  %v1408 = vpop.f32.mrb[0].mxu0
  %v1409 = vpop.f32.mrb[0].mxu0
  %1410 = vdwg.mxu0
  %1411 = vmatprep.subr.bf16.mxu0 %v687
  %1412 = vmatpush1.bf16.msra.mxu0 %v686
  %1413 = vmatprep.subr.bf16.mxu0 %v691
  %1414 = vmatpush1.bf16.msra.mxu0 %v690
  %1415 = vmatprep.subr.bf16.mxu0 %v695
  %1416 = vmatpush1.bf16.msra.mxu0 %v694
  %1417 = vmatprep.subr.bf16.mxu0 %v699
  %1418 = vmatpush1.bf16.msra.mxu0 %v698
  %1419 = vmatprep.subr.bf16.mxu0 %v703
  %1420 = vmatpush1.bf16.msra.mxu0 %v702
  %1421 = vmatprep.subr.bf16.mxu0 %v707
  %1422 = vmatpush1.bf16.msra.mxu0 %v706
  %1423 = vmatprep.subr.bf16.mxu0 %v711
  %1424 = vmatpush1.bf16.msra.mxu0 %v710
  %1425 = vmatprep.subr.bf16.mxu0 %v715
  %1426 = vmatpush1.bf16.msra.mxu0 %v714
  %1427 = vmatprep.subr.bf16.mxu0 0
  %1428 = vmatpush1.bf16.msra.mxu0 0
  %1429 = vmatprep.subr.bf16.mxu0 0
  %1430 = vmatpush1.bf16.msra.mxu0 0
  %1431 = vmatprep.subr.bf16.mxu0 0
  %1432 = vmatpush1.bf16.msra.mxu0 0
  %1433 = vmatprep.subr.bf16.mxu0 0
  %1434 = vmatpush1.bf16.msra.mxu0 0
  %1435 = vmatprep.subr.bf16.mxu0 0
  %1436 = vmatpush1.bf16.msra.mxu0 0
  %1437 = vmatprep.subr.bf16.mxu0 0
  %1438 = vmatpush1.bf16.msra.mxu0 0
  %1439 = vmatprep.subr.bf16.mxu0 0
  %1440 = vmatpush1.bf16.msra.mxu0 0
  %1441 = vmatprep.subr.bf16.mxu0 0
  %1442 = vmatpush1.bf16.msra.mxu0 0
  %1443 = vmatprep.mubr.bf16.mxu0 0
  %1444 = vmatmul.mubr.bf16.gmra.mrb[0].mxu0 %v1369
  %v1445 = vpop.f32.mrb[0].mxu0
  %v1446 = vadd.f32 0.0, %v1445
  %v1447 = vpop.f32.mrb[0].mxu0
  %v1448 = vadd.f32 0.0, %v1447
  %v1449 = vpop.f32.mrb[0].mxu0
  %v1450 = vpop.f32.mrb[0].mxu0
  %1451 = vdwg.mxu0
  %v1452 = vpack.c.bf16 %v1368, %v1368
  %1453 = vmatprep.subr.bf16.mxu0 %v927
  %1454 = vmatpush1.bf16.msra.mxu0 %v926
  %1455 = vmatprep.subr.bf16.mxu0 %v931
  %1456 = vmatpush1.bf16.msra.mxu0 %v930
  %1457 = vmatprep.subr.bf16.mxu0 %v935
  %1458 = vmatpush1.bf16.msra.mxu0 %v934
  %1459 = vmatprep.subr.bf16.mxu0 %v939
  %1460 = vmatpush1.bf16.msra.mxu0 %v938
  %1461 = vmatprep.subr.bf16.mxu0 %v943
  %1462 = vmatpush1.bf16.msra.mxu0 %v942
  %1463 = vmatprep.subr.bf16.mxu0 %v947
  %1464 = vmatpush1.bf16.msra.mxu0 %v946
  %1465 = vmatprep.subr.bf16.mxu0 %v951
  %1466 = vmatpush1.bf16.msra.mxu0 %v950
  %1467 = vmatprep.subr.bf16.mxu0 %v955
  %1468 = vmatpush1.bf16.msra.mxu0 %v954
  %1469 = vmatprep.subr.bf16.mxu0 0
  %1470 = vmatpush1.bf16.msra.mxu0 0
  %1471 = vmatprep.subr.bf16.mxu0 0
  %1472 = vmatpush1.bf16.msra.mxu0 0
  %1473 = vmatprep.subr.bf16.mxu0 0
  %1474 = vmatpush1.bf16.msra.mxu0 0
  %1475 = vmatprep.subr.bf16.mxu0 0
  %1476 = vmatpush1.bf16.msra.mxu0 0
  %1477 = vmatprep.subr.bf16.mxu0 0
  %1478 = vmatpush1.bf16.msra.mxu0 0
  %1479 = vmatprep.subr.bf16.mxu0 0
  %1480 = vmatpush1.bf16.msra.mxu0 0
  %1481 = vmatprep.subr.bf16.mxu0 0
  %1482 = vmatpush1.bf16.msra.mxu0 0
  %1483 = vmatprep.subr.bf16.mxu0 0
  %1484 = vmatpush1.bf16.msra.mxu0 0
  %1485 = vmatprep.mubr.bf16.mxu0 0
  %1486 = vmatmul.mubr.bf16.gmra.mrb[0].mxu0 %v1452
  %v1487 = vpop.f32.mrb[0].mxu0
  %v1488 = vadd.f32 0.0, %v1487
  %v1489 = vpop.f32.mrb[0].mxu0
  %v1490 = vadd.f32 0.0, %v1489
  %v1491 = vpop.f32.mrb[0].mxu0
  %v1492 = vpop.f32.mrb[0].mxu0
  %1493 = vdwg.mxu0
  %1494 = vmatprep.subr.bf16.mxu0 %v929
  %1495 = vmatpush1.bf16.msra.mxu0 %v928
  %1496 = vmatprep.subr.bf16.mxu0 %v933
  %1497 = vmatpush1.bf16.msra.mxu0 %v932
  %1498 = vmatprep.subr.bf16.mxu0 %v937
  %1499 = vmatpush1.bf16.msra.mxu0 %v936
  %1500 = vmatprep.subr.bf16.mxu0 %v941
  %1501 = vmatpush1.bf16.msra.mxu0 %v940
  %1502 = vmatprep.subr.bf16.mxu0 %v945
  %1503 = vmatpush1.bf16.msra.mxu0 %v944
  %1504 = vmatprep.subr.bf16.mxu0 %v949
  %1505 = vmatpush1.bf16.msra.mxu0 %v948
  %1506 = vmatprep.subr.bf16.mxu0 %v953
  %1507 = vmatpush1.bf16.msra.mxu0 %v952
  %1508 = vmatprep.subr.bf16.mxu0 %v957
  %1509 = vmatpush1.bf16.msra.mxu0 %v956
  %1510 = vmatprep.subr.bf16.mxu0 0
  %1511 = vmatpush1.bf16.msra.mxu0 0
  %1512 = vmatprep.subr.bf16.mxu0 0
  %1513 = vmatpush1.bf16.msra.mxu0 0
  %1514 = vmatprep.subr.bf16.mxu0 0
  %1515 = vmatpush1.bf16.msra.mxu0 0
  %1516 = vmatprep.subr.bf16.mxu0 0
  %1517 = vmatpush1.bf16.msra.mxu0 0
  %1518 = vmatprep.subr.bf16.mxu0 0
  %1519 = vmatpush1.bf16.msra.mxu0 0
  %1520 = vmatprep.subr.bf16.mxu0 0
  %1521 = vmatpush1.bf16.msra.mxu0 0
  %1522 = vmatprep.subr.bf16.mxu0 0
  %1523 = vmatpush1.bf16.msra.mxu0 0
  %1524 = vmatprep.subr.bf16.mxu0 0
  %1525 = vmatpush1.bf16.msra.mxu0 0
  %1526 = vmatprep.mubr.bf16.mxu0 0
  %1527 = vmatmul.mubr.bf16.gmra.mrb[0].mxu0 %v1452
  %v1528 = vpop.f32.mrb[0].mxu0
  %v1529 = vadd.f32 0.0, %v1528
  %v1530 = vpop.f32.mrb[0].mxu0
  %v1531 = vadd.f32 0.0, %v1530
  %v1532 = vpop.f32.mrb[0].mxu0
  %v1533 = vpop.f32.mrb[0].mxu0
  %1534 = vdwg.mxu0
  %s1535 = scalar_lea.vmem [#allocation2], 64
  %v1536 = vld [vmem:[%s1535] sm:$0xff]
  %v1537 = vld [vmem:[%s1535 + $0x8] sm:$0xff]
  %v1538 = vld [vmem:[%s1535 + $0x10] sm:$0xff]
  %v1539 = vld [vmem:[%s1535 + $0x18] sm:$0xff]
  %v1540 = vadd.f32 %v1536, %v1405
  %v1541 = vadd.f32 %v1537, %v1407
  %v1542 = vadd.f32 %v1538, %v1446
  %v1543 = vadd.f32 %v1539, %v1448
  %v1544 = vxor.u32 %v1540, 2147483648
  %v1545 = vmul.f32 %v1544, 1.442695
  %v1546 = vpow.pop %v1545
  %v1547 = vadd.f32 %v1546, 1.0
  %v1548 = vrcp.pop %v1547
  %v1549 = vmul.f32 1.0, %v1548
  %v1550 = vxor.u32 %v1541, 2147483648
  %v1551 = vmul.f32 %v1550, 1.442695
  %v1552 = vpow.pop %v1551
  %v1553 = vadd.f32 %v1552, 1.0
  %v1554 = vrcp.pop %v1553
  %v1555 = vmul.f32 1.0, %v1554
  %v1556 = vtanh.pop %v1542
  %v1557 = vxor.u32 %v1543, 2147483648
  %v1558 = vmul.f32 %v1557, 1.442695
  %v1559 = vpow.pop %v1558
  %v1560 = vadd.f32 %v1559, 1.0
  %v1561 = vrcp.pop %v1560
  %v1562 = vmul.f32 1.0, %v1561
  %v1563 = vmul.f32 %v1555, %v1333
  %v1564 = vmul.f32 %v1549, %v1556
  %v1565 = vadd.f32 %v1563, %v1564
  %v1566 = vtanh.pop %v1565
  %v1567 = vmul.f32 %v1562, %v1566
  %s1568 = scalar_lea.vmem [#allocation3], 160
  %v1569 = vld [vmem:[%s1568] sm:$0xff]
  %v1570 = vld [vmem:[%s1568 + $0x8] sm:$0xff]
  %v1571 = vld [vmem:[%s1568 + $0x10] sm:$0xff]
  %v1572 = vld [vmem:[%s1568 + $0x18] sm:$0xff]
  %v1573 = vadd.f32 %v1569, %v1488
  %v1574 = vadd.f32 %v1570, %v1490
  %v1575 = vadd.f32 %v1571, %v1529
  %v1576 = vadd.f32 %v1572, %v1531
  %v1577 = vxor.u32 %v1573, 2147483648
  %v1578 = vmul.f32 %v1577, 1.442695
  %v1579 = vpow.pop %v1578
  %v1580 = vadd.f32 %v1579, 1.0
  %v1581 = vrcp.pop %v1580
  %v1582 = vmul.f32 1.0, %v1581
  %v1583 = vxor.u32 %v1574, 2147483648
  %v1584 = vmul.f32 %v1583, 1.442695
  %v1585 = vpow.pop %v1584
  %v1586 = vadd.f32 %v1585, 1.0
  %v1587 = vrcp.pop %v1586
  %v1588 = vmul.f32 1.0, %v1587
  %v1589 = vtanh.pop %v1575
  %v1590 = vxor.u32 %v1576, 2147483648
  %v1591 = vmul.f32 %v1590, 1.442695
  %v1592 = vpow.pop %v1591
  %v1593 = vadd.f32 %v1592, 1.0
  %v1594 = vrcp.pop %v1593
  %v1595 = vmul.f32 1.0, %v1594
  %v1596 = vmul.f32 %v1588, %v1366
  %v1597 = vmul.f32 %v1582, %v1589
  %v1598 = vadd.f32 %v1596, %v1597
  %v1599 = vtanh.pop %v1598
  %v1600 = vmul.f32 %v1595, %v1599
  %v1601 = vpack.c.bf16 %v1567, %v1567
  %1602 = vmatprep.subr.bf16.mxu0 %v685
  %1603 = vmatpush1.bf16.msra.mxu0 %v684
  %1604 = vmatprep.subr.bf16.mxu0 %v689
  %1605 = vmatpush1.bf16.msra.mxu0 %v688
  %1606 = vmatprep.subr.bf16.mxu0 %v693
  %1607 = vmatpush1.bf16.msra.mxu0 %v692
  %1608 = vmatprep.subr.bf16.mxu0 %v697
  %1609 = vmatpush1.bf16.msra.mxu0 %v696
  %1610 = vmatprep.subr.bf16.mxu0 %v701
  %1611 = vmatpush1.bf16.msra.mxu0 %v700
  %1612 = vmatprep.subr.bf16.mxu0 %v705
  %1613 = vmatpush1.bf16.msra.mxu0 %v704
  %1614 = vmatprep.subr.bf16.mxu0 %v709
  %1615 = vmatpush1.bf16.msra.mxu0 %v708
  %1616 = vmatprep.subr.bf16.mxu0 %v713
  %1617 = vmatpush1.bf16.msra.mxu0 %v712
  %1618 = vmatprep.subr.bf16.mxu0 0
  %1619 = vmatpush1.bf16.msra.mxu0 0
  %1620 = vmatprep.subr.bf16.mxu0 0
  %1621 = vmatpush1.bf16.msra.mxu0 0
  %1622 = vmatprep.subr.bf16.mxu0 0
  %1623 = vmatpush1.bf16.msra.mxu0 0
  %1624 = vmatprep.subr.bf16.mxu0 0
  %1625 = vmatpush1.bf16.msra.mxu0 0
  %1626 = vmatprep.subr.bf16.mxu0 0
  %1627 = vmatpush1.bf16.msra.mxu0 0
  %1628 = vmatprep.subr.bf16.mxu0 0
  %1629 = vmatpush1.bf16.msra.mxu0 0
  %1630 = vmatprep.subr.bf16.mxu0 0
  %1631 = vmatpush1.bf16.msra.mxu0 0
  %1632 = vmatprep.subr.bf16.mxu0 0
  %1633 = vmatpush1.bf16.msra.mxu0 0
  %1634 = vmatprep.mubr.bf16.mxu0 0
  %1635 = vmatmul.mubr.bf16.gmra.mrb[0].mxu0 %v1601
  %v1636 = vpop.f32.mrb[0].mxu0
  %v1637 = vadd.f32 0.0, %v1636
  %v1638 = vpop.f32.mrb[0].mxu0
  %v1639 = vadd.f32 0.0, %v1638
  %v1640 = vpop.f32.mrb[0].mxu0
  %v1641 = vpop.f32.mrb[0].mxu0
  %1642 = vdwg.mxu0
  %1643 = vmatprep.subr.bf16.mxu0 %v687
  %1644 = vmatpush1.bf16.msra.mxu0 %v686
  %1645 = vmatprep.subr.bf16.mxu0 %v691
  %1646 = vmatpush1.bf16.msra.mxu0 %v690
  %1647 = vmatprep.subr.bf16.mxu0 %v695
  %1648 = vmatpush1.bf16.msra.mxu0 %v694
  %1649 = vmatprep.subr.bf16.mxu0 %v699
  %1650 = vmatpush1.bf16.msra.mxu0 %v698
  %1651 = vmatprep.subr.bf16.mxu0 %v703
  %1652 = vmatpush1.bf16.msra.mxu0 %v702
  %1653 = vmatprep.subr.bf16.mxu0 %v707
  %1654 = vmatpush1.bf16.msra.mxu0 %v706
  %1655 = vmatprep.subr.bf16.mxu0 %v711
  %1656 = vmatpush1.bf16.msra.mxu0 %v710
  %1657 = vmatprep.subr.bf16.mxu0 %v715
  %1658 = vmatpush1.bf16.msra.mxu0 %v714
  %1659 = vmatprep.subr.bf16.mxu0 0
  %1660 = vmatpush1.bf16.msra.mxu0 0
  %1661 = vmatprep.subr.bf16.mxu0 0
  %1662 = vmatpush1.bf16.msra.mxu0 0
  %1663 = vmatprep.subr.bf16.mxu0 0
  %1664 = vmatpush1.bf16.msra.mxu0 0
  %1665 = vmatprep.subr.bf16.mxu0 0
  %1666 = vmatpush1.bf16.msra.mxu0 0
  %1667 = vmatprep.subr.bf16.mxu0 0
  %1668 = vmatpush1.bf16.msra.mxu0 0
  %1669 = vmatprep.subr.bf16.mxu0 0
  %1670 = vmatpush1.bf16.msra.mxu0 0
  %1671 = vmatprep.subr.bf16.mxu0 0
  %1672 = vmatpush1.bf16.msra.mxu0 0
  %1673 = vmatprep.subr.bf16.mxu0 0
  %1674 = vmatpush1.bf16.msra.mxu0 0
  %1675 = vmatprep.mubr.bf16.mxu0 0
  %1676 = vmatmul.mubr.bf16.gmra.mrb[0].mxu0 %v1601
  %v1677 = vpop.f32.mrb[0].mxu0
  %v1678 = vadd.f32 0.0, %v1677
  %v1679 = vpop.f32.mrb[0].mxu0
  %v1680 = vadd.f32 0.0, %v1679
  %v1681 = vpop.f32.mrb[0].mxu0
  %v1682 = vpop.f32.mrb[0].mxu0
  %1683 = vdwg.mxu0
  %v1684 = vpack.c.bf16 %v1600, %v1600
  %1685 = vmatprep.subr.bf16.mxu0 %v927
  %1686 = vmatpush1.bf16.msra.mxu0 %v926
  %1687 = vmatprep.subr.bf16.mxu0 %v931
  %1688 = vmatpush1.bf16.msra.mxu0 %v930
  %1689 = vmatprep.subr.bf16.mxu0 %v935
  %1690 = vmatpush1.bf16.msra.mxu0 %v934
  %1691 = vmatprep.subr.bf16.mxu0 %v939
  %1692 = vmatpush1.bf16.msra.mxu0 %v938
  %1693 = vmatprep.subr.bf16.mxu0 %v943
  %1694 = vmatpush1.bf16.msra.mxu0 %v942
  %1695 = vmatprep.subr.bf16.mxu0 %v947
  %1696 = vmatpush1.bf16.msra.mxu0 %v946
  %1697 = vmatprep.subr.bf16.mxu0 %v951
  %1698 = vmatpush1.bf16.msra.mxu0 %v950
  %1699 = vmatprep.subr.bf16.mxu0 %v955
  %1700 = vmatpush1.bf16.msra.mxu0 %v954
  %1701 = vmatprep.subr.bf16.mxu0 0
  %1702 = vmatpush1.bf16.msra.mxu0 0
  %1703 = vmatprep.subr.bf16.mxu0 0
  %1704 = vmatpush1.bf16.msra.mxu0 0
  %1705 = vmatprep.subr.bf16.mxu0 0
  %1706 = vmatpush1.bf16.msra.mxu0 0
  %1707 = vmatprep.subr.bf16.mxu0 0
  %1708 = vmatpush1.bf16.msra.mxu0 0
  %1709 = vmatprep.subr.bf16.mxu0 0
  %1710 = vmatpush1.bf16.msra.mxu0 0
  %1711 = vmatprep.subr.bf16.mxu0 0
  %1712 = vmatpush1.bf16.msra.mxu0 0
  %1713 = vmatprep.subr.bf16.mxu0 0
  %1714 = vmatpush1.bf16.msra.mxu0 0
  %1715 = vmatprep.subr.bf16.mxu0 0
  %1716 = vmatpush1.bf16.msra.mxu0 0
  %1717 = vmatprep.mubr.bf16.mxu0 0
  %1718 = vmatmul.mubr.bf16.gmra.mrb[0].mxu0 %v1684
  %v1719 = vpop.f32.mrb[0].mxu0
  %v1720 = vadd.f32 0.0, %v1719
  %v1721 = vpop.f32.mrb[0].mxu0
  %v1722 = vadd.f32 0.0, %v1721
  %v1723 = vpop.f32.mrb[0].mxu0
  %v1724 = vpop.f32.mrb[0].mxu0
  %1725 = vdwg.mxu0
  %1726 = vmatprep.subr.bf16.mxu0 %v929
  %1727 = vmatpush1.bf16.msra.mxu0 %v928
  %1728 = vmatprep.subr.bf16.mxu0 %v933
  %1729 = vmatpush1.bf16.msra.mxu0 %v932
  %1730 = vmatprep.subr.bf16.mxu0 %v937
  %1731 = vmatpush1.bf16.msra.mxu0 %v936
  %1732 = vmatprep.subr.bf16.mxu0 %v941
  %1733 = vmatpush1.bf16.msra.mxu0 %v940
  %1734 = vmatprep.subr.bf16.mxu0 %v945
  %1735 = vmatpush1.bf16.msra.mxu0 %v944
  %1736 = vmatprep.subr.bf16.mxu0 %v949
  %1737 = vmatpush1.bf16.msra.mxu0 %v948
  %1738 = vmatprep.subr.bf16.mxu0 %v953
  %1739 = vmatpush1.bf16.msra.mxu0 %v952
  %1740 = vmatprep.subr.bf16.mxu0 %v957
  %1741 = vmatpush1.bf16.msra.mxu0 %v956
  %1742 = vmatprep.subr.bf16.mxu0 0
  %1743 = vmatpush1.bf16.msra.mxu0 0
  %1744 = vmatprep.subr.bf16.mxu0 0
  %1745 = vmatpush1.bf16.msra.mxu0 0
  %1746 = vmatprep.subr.bf16.mxu0 0
  %1747 = vmatpush1.bf16.msra.mxu0 0
  %1748 = vmatprep.subr.bf16.mxu0 0
  %1749 = vmatpush1.bf16.msra.mxu0 0
  %1750 = vmatprep.subr.bf16.mxu0 0
  %1751 = vmatpush1.bf16.msra.mxu0 0
  %1752 = vmatprep.subr.bf16.mxu0 0
  %1753 = vmatpush1.bf16.msra.mxu0 0
  %1754 = vmatprep.subr.bf16.mxu0 0
  %1755 = vmatpush1.bf16.msra.mxu0 0
  %1756 = vmatprep.subr.bf16.mxu0 0
  %1757 = vmatpush1.bf16.msra.mxu0 0
  %1758 = vmatprep.mubr.bf16.mxu0 0
  %1759 = vmatmul.mubr.bf16.gmra.mrb[0].mxu0 %v1684
  %v1760 = vpop.f32.mrb[0].mxu0
  %v1761 = vadd.f32 0.0, %v1760
  %v1762 = vpop.f32.mrb[0].mxu0
  %v1763 = vadd.f32 0.0, %v1762
  %v1764 = vpop.f32.mrb[0].mxu0
  %v1765 = vpop.f32.mrb[0].mxu0
  %1766 = vdwg.mxu0
  %s1767 = scalar_lea.vmem [#allocation2], 96
  %v1768 = vld [vmem:[%s1767] sm:$0xff]
  %v1769 = vld [vmem:[%s1767 + $0x8] sm:$0xff]
  %v1770 = vld [vmem:[%s1767 + $0x10] sm:$0xff]
  %v1771 = vld [vmem:[%s1767 + $0x18] sm:$0xff]
  %v1772 = vadd.f32 %v1768, %v1637
  %v1773 = vadd.f32 %v1769, %v1639
  %v1774 = vadd.f32 %v1770, %v1678
  %v1775 = vadd.f32 %v1771, %v1680
  %v1776 = vxor.u32 %v1772, 2147483648
  %v1777 = vmul.f32 %v1776, 1.442695
  %v1778 = vpow.pop %v1777
  %v1779 = vadd.f32 %v1778, 1.0
  %v1780 = vrcp.pop %v1779
  %v1781 = vmul.f32 1.0, %v1780
  %v1782 = vxor.u32 %v1773, 2147483648
  %v1783 = vmul.f32 %v1782, 1.442695
  %v1784 = vpow.pop %v1783
  %v1785 = vadd.f32 %v1784, 1.0
  %v1786 = vrcp.pop %v1785
  %v1787 = vmul.f32 1.0, %v1786
  %v1788 = vtanh.pop %v1774
  %v1789 = vxor.u32 %v1775, 2147483648
  %v1790 = vmul.f32 %v1789, 1.442695
  %v1791 = vpow.pop %v1790
  %v1792 = vadd.f32 %v1791, 1.0
  %v1793 = vrcp.pop %v1792
  %v1794 = vmul.f32 1.0, %v1793
  %v1795 = vmul.f32 %v1787, %v1565
  %v1796 = vmul.f32 %v1781, %v1788
  %v1797 = vadd.f32 %v1795, %v1796
  %v1798 = vtanh.pop %v1797
  %v1799 = vmul.f32 %v1794, %v1798
  %s1800 = scalar_lea.vmem [#allocation3], 128
  %v1801 = vld [vmem:[%s1800] sm:$0xff]
  %v1802 = vld [vmem:[%s1800 + $0x8] sm:$0xff]
  %v1803 = vld [vmem:[%s1800 + $0x10] sm:$0xff]
  %v1804 = vld [vmem:[%s1800 + $0x18] sm:$0xff]
  %v1805 = vadd.f32 %v1801, %v1720
  %v1806 = vadd.f32 %v1802, %v1722
  %v1807 = vadd.f32 %v1803, %v1761
  %v1808 = vadd.f32 %v1804, %v1763
  %v1809 = vxor.u32 %v1805, 2147483648
  %v1810 = vmul.f32 %v1809, 1.442695
  %v1811 = vpow.pop %v1810
  %v1812 = vadd.f32 %v1811, 1.0
  %v1813 = vrcp.pop %v1812
  %v1814 = vmul.f32 1.0, %v1813
  %v1815 = vxor.u32 %v1806, 2147483648
  %v1816 = vmul.f32 %v1815, 1.442695
  %v1817 = vpow.pop %v1816
  %v1818 = vadd.f32 %v1817, 1.0
  %v1819 = vrcp.pop %v1818
  %v1820 = vmul.f32 1.0, %v1819
  %v1821 = vtanh.pop %v1807
  %v1822 = vxor.u32 %v1808, 2147483648
  %v1823 = vmul.f32 %v1822, 1.442695
  %v1824 = vpow.pop %v1823
  %v1825 = vadd.f32 %v1824, 1.0
  %v1826 = vrcp.pop %v1825
  %v1827 = vmul.f32 1.0, %v1826
  %v1828 = vmul.f32 %v1820, %v1598
  %v1829 = vmul.f32 %v1814, %v1821
  %v1830 = vadd.f32 %v1828, %v1829
  %v1831 = vtanh.pop %v1830
  %v1832 = vmul.f32 %v1827, %v1831
  %v1833 = vpack.c.bf16 %v1799, %v1799
  %1834 = vmatprep.subr.bf16.mxu0 %v685
  %1835 = vmatpush1.bf16.msra.mxu0 %v684
  %1836 = vmatprep.subr.bf16.mxu0 %v689
  %1837 = vmatpush1.bf16.msra.mxu0 %v688
  %1838 = vmatprep.subr.bf16.mxu0 %v693
  %1839 = vmatpush1.bf16.msra.mxu0 %v692
  %1840 = vmatprep.subr.bf16.mxu0 %v697
  %1841 = vmatpush1.bf16.msra.mxu0 %v696
  %1842 = vmatprep.subr.bf16.mxu0 %v701
  %1843 = vmatpush1.bf16.msra.mxu0 %v700
  %1844 = vmatprep.subr.bf16.mxu0 %v705
  %1845 = vmatpush1.bf16.msra.mxu0 %v704
  %1846 = vmatprep.subr.bf16.mxu0 %v709
  %1847 = vmatpush1.bf16.msra.mxu0 %v708
  %1848 = vmatprep.subr.bf16.mxu0 %v713
  %1849 = vmatpush1.bf16.msra.mxu0 %v712
  %1850 = vmatprep.subr.bf16.mxu0 0
  %1851 = vmatpush1.bf16.msra.mxu0 0
  %1852 = vmatprep.subr.bf16.mxu0 0
  %1853 = vmatpush1.bf16.msra.mxu0 0
  %1854 = vmatprep.subr.bf16.mxu0 0
  %1855 = vmatpush1.bf16.msra.mxu0 0
  %1856 = vmatprep.subr.bf16.mxu0 0
  %1857 = vmatpush1.bf16.msra.mxu0 0
  %1858 = vmatprep.subr.bf16.mxu0 0
  %1859 = vmatpush1.bf16.msra.mxu0 0
  %1860 = vmatprep.subr.bf16.mxu0 0
  %1861 = vmatpush1.bf16.msra.mxu0 0
  %1862 = vmatprep.subr.bf16.mxu0 0
  %1863 = vmatpush1.bf16.msra.mxu0 0
  %1864 = vmatprep.subr.bf16.mxu0 0
  %1865 = vmatpush1.bf16.msra.mxu0 0
  %1866 = vmatprep.mubr.bf16.mxu0 0
  %1867 = vmatmul.mubr.bf16.gmra.mrb[0].mxu0 %v1833
  %v1868 = vpop.f32.mrb[0].mxu0
  %v1869 = vadd.f32 0.0, %v1868
  %v1870 = vpop.f32.mrb[0].mxu0
  %v1871 = vadd.f32 0.0, %v1870
  %v1872 = vpop.f32.mrb[0].mxu0
  %v1873 = vpop.f32.mrb[0].mxu0
  %1874 = vdwg.mxu0
  %1875 = vmatprep.subr.bf16.mxu0 %v687
  %1876 = vmatpush1.bf16.msra.mxu0 %v686
  %1877 = vmatprep.subr.bf16.mxu0 %v691
  %1878 = vmatpush1.bf16.msra.mxu0 %v690
  %1879 = vmatprep.subr.bf16.mxu0 %v695
  %1880 = vmatpush1.bf16.msra.mxu0 %v694
  %1881 = vmatprep.subr.bf16.mxu0 %v699
  %1882 = vmatpush1.bf16.msra.mxu0 %v698
  %1883 = vmatprep.subr.bf16.mxu0 %v703
  %1884 = vmatpush1.bf16.msra.mxu0 %v702
  %1885 = vmatprep.subr.bf16.mxu0 %v707
  %1886 = vmatpush1.bf16.msra.mxu0 %v706
  %1887 = vmatprep.subr.bf16.mxu0 %v711
  %1888 = vmatpush1.bf16.msra.mxu0 %v710
  %1889 = vmatprep.subr.bf16.mxu0 %v715
  %1890 = vmatpush1.bf16.msra.mxu0 %v714
  %1891 = vmatprep.subr.bf16.mxu0 0
  %1892 = vmatpush1.bf16.msra.mxu0 0
  %1893 = vmatprep.subr.bf16.mxu0 0
  %1894 = vmatpush1.bf16.msra.mxu0 0
  %1895 = vmatprep.subr.bf16.mxu0 0
  %1896 = vmatpush1.bf16.msra.mxu0 0
  %1897 = vmatprep.subr.bf16.mxu0 0
  %1898 = vmatpush1.bf16.msra.mxu0 0
  %1899 = vmatprep.subr.bf16.mxu0 0
  %1900 = vmatpush1.bf16.msra.mxu0 0
  %1901 = vmatprep.subr.bf16.mxu0 0
  %1902 = vmatpush1.bf16.msra.mxu0 0
  %1903 = vmatprep.subr.bf16.mxu0 0
  %1904 = vmatpush1.bf16.msra.mxu0 0
  %1905 = vmatprep.subr.bf16.mxu0 0
  %1906 = vmatpush1.bf16.msra.mxu0 0
  %1907 = vmatprep.mubr.bf16.mxu0 0
  %1908 = vmatmul.mubr.bf16.gmra.mrb[0].mxu0 %v1833
  %v1909 = vpop.f32.mrb[0].mxu0
  %v1910 = vadd.f32 0.0, %v1909
  %v1911 = vpop.f32.mrb[0].mxu0
  %v1912 = vadd.f32 0.0, %v1911
  %v1913 = vpop.f32.mrb[0].mxu0
  %v1914 = vpop.f32.mrb[0].mxu0
  %1915 = vdwg.mxu0
  %v1916 = vpack.c.bf16 %v1832, %v1832
  %1917 = vmatprep.subr.bf16.mxu0 %v927
  %1918 = vmatpush1.bf16.msra.mxu0 %v926
  %1919 = vmatprep.subr.bf16.mxu0 %v931
  %1920 = vmatpush1.bf16.msra.mxu0 %v930
  %1921 = vmatprep.subr.bf16.mxu0 %v935
  %1922 = vmatpush1.bf16.msra.mxu0 %v934
  %1923 = vmatprep.subr.bf16.mxu0 %v939
  %1924 = vmatpush1.bf16.msra.mxu0 %v938
  %1925 = vmatprep.subr.bf16.mxu0 %v943
  %1926 = vmatpush1.bf16.msra.mxu0 %v942
  %1927 = vmatprep.subr.bf16.mxu0 %v947
  %1928 = vmatpush1.bf16.msra.mxu0 %v946
  %1929 = vmatprep.subr.bf16.mxu0 %v951
  %1930 = vmatpush1.bf16.msra.mxu0 %v950
  %1931 = vmatprep.subr.bf16.mxu0 %v955
  %1932 = vmatpush1.bf16.msra.mxu0 %v954
  %1933 = vmatprep.subr.bf16.mxu0 0
  %1934 = vmatpush1.bf16.msra.mxu0 0
  %1935 = vmatprep.subr.bf16.mxu0 0
  %1936 = vmatpush1.bf16.msra.mxu0 0
  %1937 = vmatprep.subr.bf16.mxu0 0
  %1938 = vmatpush1.bf16.msra.mxu0 0
  %1939 = vmatprep.subr.bf16.mxu0 0
  %1940 = vmatpush1.bf16.msra.mxu0 0
  %1941 = vmatprep.subr.bf16.mxu0 0
  %1942 = vmatpush1.bf16.msra.mxu0 0
  %1943 = vmatprep.subr.bf16.mxu0 0
  %1944 = vmatpush1.bf16.msra.mxu0 0
  %1945 = vmatprep.subr.bf16.mxu0 0
  %1946 = vmatpush1.bf16.msra.mxu0 0
  %1947 = vmatprep.subr.bf16.mxu0 0
  %1948 = vmatpush1.bf16.msra.mxu0 0
  %1949 = vmatprep.mubr.bf16.mxu0 0
  %1950 = vmatmul.mubr.bf16.gmra.mrb[0].mxu0 %v1916
  %v1951 = vpop.f32.mrb[0].mxu0
  %v1952 = vadd.f32 0.0, %v1951
  %v1953 = vpop.f32.mrb[0].mxu0
  %v1954 = vadd.f32 0.0, %v1953
  %v1955 = vpop.f32.mrb[0].mxu0
  %v1956 = vpop.f32.mrb[0].mxu0
  %1957 = vdwg.mxu0
  %1958 = vmatprep.subr.bf16.mxu0 %v929
  %1959 = vmatpush1.bf16.msra.mxu0 %v928
  %1960 = vmatprep.subr.bf16.mxu0 %v933
  %1961 = vmatpush1.bf16.msra.mxu0 %v932
  %1962 = vmatprep.subr.bf16.mxu0 %v937
  %1963 = vmatpush1.bf16.msra.mxu0 %v936
  %1964 = vmatprep.subr.bf16.mxu0 %v941
  %1965 = vmatpush1.bf16.msra.mxu0 %v940
  %1966 = vmatprep.subr.bf16.mxu0 %v945
  %1967 = vmatpush1.bf16.msra.mxu0 %v944
  %1968 = vmatprep.subr.bf16.mxu0 %v949
  %1969 = vmatpush1.bf16.msra.mxu0 %v948
  %1970 = vmatprep.subr.bf16.mxu0 %v953
  %1971 = vmatpush1.bf16.msra.mxu0 %v952
  %1972 = vmatprep.subr.bf16.mxu0 %v957
  %1973 = vmatpush1.bf16.msra.mxu0 %v956
  %1974 = vmatprep.subr.bf16.mxu0 0
  %1975 = vmatpush1.bf16.msra.mxu0 0
  %1976 = vmatprep.subr.bf16.mxu0 0
  %1977 = vmatpush1.bf16.msra.mxu0 0
  %1978 = vmatprep.subr.bf16.mxu0 0
  %1979 = vmatpush1.bf16.msra.mxu0 0
  %1980 = vmatprep.subr.bf16.mxu0 0
  %1981 = vmatpush1.bf16.msra.mxu0 0
  %1982 = vmatprep.subr.bf16.mxu0 0
  %1983 = vmatpush1.bf16.msra.mxu0 0
  %1984 = vmatprep.subr.bf16.mxu0 0
  %1985 = vmatpush1.bf16.msra.mxu0 0
  %1986 = vmatprep.subr.bf16.mxu0 0
  %1987 = vmatpush1.bf16.msra.mxu0 0
  %1988 = vmatprep.subr.bf16.mxu0 0
  %1989 = vmatpush1.bf16.msra.mxu0 0
  %1990 = vmatprep.mubr.bf16.mxu0 0
  %1991 = vmatmul.mubr.bf16.gmra.mrb[0].mxu0 %v1916
  %v1992 = vpop.f32.mrb[0].mxu0
  %v1993 = vadd.f32 0.0, %v1992
  %v1994 = vpop.f32.mrb[0].mxu0
  %v1995 = vadd.f32 0.0, %v1994
  %v1996 = vpop.f32.mrb[0].mxu0
  %v1997 = vpop.f32.mrb[0].mxu0
  %1998 = vdwg.mxu0
  %s1999 = scalar_lea.vmem [#allocation2], 128
  %v2000 = vld [vmem:[%s1999] sm:$0xff]
  %v2001 = vld [vmem:[%s1999 + $0x8] sm:$0xff]
  %v2002 = vld [vmem:[%s1999 + $0x10] sm:$0xff]
  %v2003 = vld [vmem:[%s1999 + $0x18] sm:$0xff]
  %v2004 = vadd.f32 %v2000, %v1869
  %v2005 = vadd.f32 %v2001, %v1871
  %v2006 = vadd.f32 %v2002, %v1910
  %v2007 = vadd.f32 %v2003, %v1912
  %v2008 = vxor.u32 %v2004, 2147483648
  %v2009 = vmul.f32 %v2008, 1.442695
  %v2010 = vpow.pop %v2009
  %v2011 = vadd.f32 %v2010, 1.0
  %v2012 = vrcp.pop %v2011
  %v2013 = vmul.f32 1.0, %v2012
  %v2014 = vxor.u32 %v2005, 2147483648
  %v2015 = vmul.f32 %v2014, 1.442695
  %v2016 = vpow.pop %v2015
  %v2017 = vadd.f32 %v2016, 1.0
  %v2018 = vrcp.pop %v2017
  %v2019 = vmul.f32 1.0, %v2018
  %v2020 = vtanh.pop %v2006
  %v2021 = vxor.u32 %v2007, 2147483648
  %v2022 = vmul.f32 %v2021, 1.442695
  %v2023 = vpow.pop %v2022
  %v2024 = vadd.f32 %v2023, 1.0
  %v2025 = vrcp.pop %v2024
  %v2026 = vmul.f32 1.0, %v2025
  %v2027 = vmul.f32 %v2019, %v1797
  %v2028 = vmul.f32 %v2013, %v2020
  %v2029 = vadd.f32 %v2027, %v2028
  %v2030 = vtanh.pop %v2029
  %v2031 = vmul.f32 %v2026, %v2030
  %s2032 = scalar_lea.vmem [#allocation3], 96
  %v2033 = vld [vmem:[%s2032] sm:$0xff]
  %v2034 = vld [vmem:[%s2032 + $0x8] sm:$0xff]
  %v2035 = vld [vmem:[%s2032 + $0x10] sm:$0xff]
  %v2036 = vld [vmem:[%s2032 + $0x18] sm:$0xff]
  %v2037 = vadd.f32 %v2033, %v1952
  %v2038 = vadd.f32 %v2034, %v1954
  %v2039 = vadd.f32 %v2035, %v1993
  %v2040 = vadd.f32 %v2036, %v1995
  %v2041 = vxor.u32 %v2037, 2147483648
  %v2042 = vmul.f32 %v2041, 1.442695
  %v2043 = vpow.pop %v2042
  %v2044 = vadd.f32 %v2043, 1.0
  %v2045 = vrcp.pop %v2044
  %v2046 = vmul.f32 1.0, %v2045
  %v2047 = vxor.u32 %v2038, 2147483648
  %v2048 = vmul.f32 %v2047, 1.442695
  %v2049 = vpow.pop %v2048
  %v2050 = vadd.f32 %v2049, 1.0
  %v2051 = vrcp.pop %v2050
  %v2052 = vmul.f32 1.0, %v2051
  %v2053 = vtanh.pop %v2039
  %v2054 = vxor.u32 %v2040, 2147483648
  %v2055 = vmul.f32 %v2054, 1.442695
  %v2056 = vpow.pop %v2055
  %v2057 = vadd.f32 %v2056, 1.0
  %v2058 = vrcp.pop %v2057
  %v2059 = vmul.f32 1.0, %v2058
  %v2060 = vmul.f32 %v2052, %v1830
  %v2061 = vmul.f32 %v2046, %v2053
  %v2062 = vadd.f32 %v2060, %v2061
  %v2063 = vtanh.pop %v2062
  %v2064 = vmul.f32 %v2059, %v2063
  %v2065 = vpack.c.bf16 %v2031, %v2031
  %2066 = vmatprep.subr.bf16.mxu0 %v685
  %2067 = vmatpush1.bf16.msra.mxu0 %v684
  %2068 = vmatprep.subr.bf16.mxu0 %v689
  %2069 = vmatpush1.bf16.msra.mxu0 %v688
  %2070 = vmatprep.subr.bf16.mxu0 %v693
  %2071 = vmatpush1.bf16.msra.mxu0 %v692
  %2072 = vmatprep.subr.bf16.mxu0 %v697
  %2073 = vmatpush1.bf16.msra.mxu0 %v696
  %2074 = vmatprep.subr.bf16.mxu0 %v701
  %2075 = vmatpush1.bf16.msra.mxu0 %v700
  %2076 = vmatprep.subr.bf16.mxu0 %v705
  %2077 = vmatpush1.bf16.msra.mxu0 %v704
  %2078 = vmatprep.subr.bf16.mxu0 %v709
  %2079 = vmatpush1.bf16.msra.mxu0 %v708
  %2080 = vmatprep.subr.bf16.mxu0 %v713
  %2081 = vmatpush1.bf16.msra.mxu0 %v712
  %2082 = vmatprep.subr.bf16.mxu0 0
  %2083 = vmatpush1.bf16.msra.mxu0 0
  %2084 = vmatprep.subr.bf16.mxu0 0
  %2085 = vmatpush1.bf16.msra.mxu0 0
  %2086 = vmatprep.subr.bf16.mxu0 0
  %2087 = vmatpush1.bf16.msra.mxu0 0
  %2088 = vmatprep.subr.bf16.mxu0 0
  %2089 = vmatpush1.bf16.msra.mxu0 0
  %2090 = vmatprep.subr.bf16.mxu0 0
  %2091 = vmatpush1.bf16.msra.mxu0 0
  %2092 = vmatprep.subr.bf16.mxu0 0
  %2093 = vmatpush1.bf16.msra.mxu0 0
  %2094 = vmatprep.subr.bf16.mxu0 0
  %2095 = vmatpush1.bf16.msra.mxu0 0
  %2096 = vmatprep.subr.bf16.mxu0 0
  %2097 = vmatpush1.bf16.msra.mxu0 0
  %2098 = vmatprep.mubr.bf16.mxu0 0
  %2099 = vmatmul.mubr.bf16.gmra.mrb[0].mxu0 %v2065
  %v2100 = vpop.f32.mrb[0].mxu0
  %v2101 = vadd.f32 0.0, %v2100
  %v2102 = vpop.f32.mrb[0].mxu0
  %v2103 = vadd.f32 0.0, %v2102
  %v2104 = vpop.f32.mrb[0].mxu0
  %v2105 = vpop.f32.mrb[0].mxu0
  %2106 = vdwg.mxu0
  %2107 = vmatprep.subr.bf16.mxu0 %v687
  %2108 = vmatpush1.bf16.msra.mxu0 %v686
  %2109 = vmatprep.subr.bf16.mxu0 %v691
  %2110 = vmatpush1.bf16.msra.mxu0 %v690
  %2111 = vmatprep.subr.bf16.mxu0 %v695
  %2112 = vmatpush1.bf16.msra.mxu0 %v694
  %2113 = vmatprep.subr.bf16.mxu0 %v699
  %2114 = vmatpush1.bf16.msra.mxu0 %v698
  %2115 = vmatprep.subr.bf16.mxu0 %v703
  %2116 = vmatpush1.bf16.msra.mxu0 %v702
  %2117 = vmatprep.subr.bf16.mxu0 %v707
  %2118 = vmatpush1.bf16.msra.mxu0 %v706
  %2119 = vmatprep.subr.bf16.mxu0 %v711
  %2120 = vmatpush1.bf16.msra.mxu0 %v710
  %2121 = vmatprep.subr.bf16.mxu0 %v715
  %2122 = vmatpush1.bf16.msra.mxu0 %v714
  %2123 = vmatprep.subr.bf16.mxu0 0
  %2124 = vmatpush1.bf16.msra.mxu0 0
  %2125 = vmatprep.subr.bf16.mxu0 0
  %2126 = vmatpush1.bf16.msra.mxu0 0
  %2127 = vmatprep.subr.bf16.mxu0 0
  %2128 = vmatpush1.bf16.msra.mxu0 0
  %2129 = vmatprep.subr.bf16.mxu0 0
  %2130 = vmatpush1.bf16.msra.mxu0 0
  %2131 = vmatprep.subr.bf16.mxu0 0
  %2132 = vmatpush1.bf16.msra.mxu0 0
  %2133 = vmatprep.subr.bf16.mxu0 0
  %2134 = vmatpush1.bf16.msra.mxu0 0
  %2135 = vmatprep.subr.bf16.mxu0 0
  %2136 = vmatpush1.bf16.msra.mxu0 0
  %2137 = vmatprep.subr.bf16.mxu0 0
  %2138 = vmatpush1.bf16.msra.mxu0 0
  %2139 = vmatprep.mubr.bf16.mxu0 0
  %2140 = vmatmul.mubr.bf16.gmra.mrb[0].mxu0 %v2065
  %v2141 = vpop.f32.mrb[0].mxu0
  %v2142 = vadd.f32 0.0, %v2141
  %v2143 = vpop.f32.mrb[0].mxu0
  %v2144 = vadd.f32 0.0, %v2143
  %v2145 = vpop.f32.mrb[0].mxu0
  %v2146 = vpop.f32.mrb[0].mxu0
  %2147 = vdwg.mxu0
  %v2148 = vpack.c.bf16 %v2064, %v2064
  %2149 = vmatprep.subr.bf16.mxu0 %v927
  %2150 = vmatpush1.bf16.msra.mxu0 %v926
  %2151 = vmatprep.subr.bf16.mxu0 %v931
  %2152 = vmatpush1.bf16.msra.mxu0 %v930
  %2153 = vmatprep.subr.bf16.mxu0 %v935
  %2154 = vmatpush1.bf16.msra.mxu0 %v934
  %2155 = vmatprep.subr.bf16.mxu0 %v939
  %2156 = vmatpush1.bf16.msra.mxu0 %v938
  %2157 = vmatprep.subr.bf16.mxu0 %v943
  %2158 = vmatpush1.bf16.msra.mxu0 %v942
  %2159 = vmatprep.subr.bf16.mxu0 %v947
  %2160 = vmatpush1.bf16.msra.mxu0 %v946
  %2161 = vmatprep.subr.bf16.mxu0 %v951
  %2162 = vmatpush1.bf16.msra.mxu0 %v950
  %2163 = vmatprep.subr.bf16.mxu0 %v955
  %2164 = vmatpush1.bf16.msra.mxu0 %v954
  %2165 = vmatprep.subr.bf16.mxu0 0
  %2166 = vmatpush1.bf16.msra.mxu0 0
  %2167 = vmatprep.subr.bf16.mxu0 0
  %2168 = vmatpush1.bf16.msra.mxu0 0
  %2169 = vmatprep.subr.bf16.mxu0 0
  %2170 = vmatpush1.bf16.msra.mxu0 0
  %2171 = vmatprep.subr.bf16.mxu0 0
  %2172 = vmatpush1.bf16.msra.mxu0 0
  %2173 = vmatprep.subr.bf16.mxu0 0
  %2174 = vmatpush1.bf16.msra.mxu0 0
  %2175 = vmatprep.subr.bf16.mxu0 0
  %2176 = vmatpush1.bf16.msra.mxu0 0
  %2177 = vmatprep.subr.bf16.mxu0 0
  %2178 = vmatpush1.bf16.msra.mxu0 0
  %2179 = vmatprep.subr.bf16.mxu0 0
  %2180 = vmatpush1.bf16.msra.mxu0 0
  %2181 = vmatprep.mubr.bf16.mxu0 0
  %2182 = vmatmul.mubr.bf16.gmra.mrb[0].mxu0 %v2148
  %v2183 = vpop.f32.mrb[0].mxu0
  %v2184 = vadd.f32 0.0, %v2183
  %v2185 = vpop.f32.mrb[0].mxu0
  %v2186 = vadd.f32 0.0, %v2185
  %v2187 = vpop.f32.mrb[0].mxu0
  %v2188 = vpop.f32.mrb[0].mxu0
  %2189 = vdwg.mxu0
  %2190 = vmatprep.subr.bf16.mxu0 %v929
  %2191 = vmatpush1.bf16.msra.mxu0 %v928
  %2192 = vmatprep.subr.bf16.mxu0 %v933
  %2193 = vmatpush1.bf16.msra.mxu0 %v932
  %2194 = vmatprep.subr.bf16.mxu0 %v937
  %2195 = vmatpush1.bf16.msra.mxu0 %v936
  %2196 = vmatprep.subr.bf16.mxu0 %v941
  %2197 = vmatpush1.bf16.msra.mxu0 %v940
  %2198 = vmatprep.subr.bf16.mxu0 %v945
  %2199 = vmatpush1.bf16.msra.mxu0 %v944
  %2200 = vmatprep.subr.bf16.mxu0 %v949
  %2201 = vmatpush1.bf16.msra.mxu0 %v948
  %2202 = vmatprep.subr.bf16.mxu0 %v953
  %2203 = vmatpush1.bf16.msra.mxu0 %v952
  %2204 = vmatprep.subr.bf16.mxu0 %v957
  %2205 = vmatpush1.bf16.msra.mxu0 %v956
  %2206 = vmatprep.subr.bf16.mxu0 0
  %2207 = vmatpush1.bf16.msra.mxu0 0
  %2208 = vmatprep.subr.bf16.mxu0 0
  %2209 = vmatpush1.bf16.msra.mxu0 0
  %2210 = vmatprep.subr.bf16.mxu0 0
  %2211 = vmatpush1.bf16.msra.mxu0 0
  %2212 = vmatprep.subr.bf16.mxu0 0
  %2213 = vmatpush1.bf16.msra.mxu0 0
  %2214 = vmatprep.subr.bf16.mxu0 0
  %2215 = vmatpush1.bf16.msra.mxu0 0
  %2216 = vmatprep.subr.bf16.mxu0 0
  %2217 = vmatpush1.bf16.msra.mxu0 0
  %2218 = vmatprep.subr.bf16.mxu0 0
  %2219 = vmatpush1.bf16.msra.mxu0 0
  %2220 = vmatprep.subr.bf16.mxu0 0
  %2221 = vmatpush1.bf16.msra.mxu0 0
  %2222 = vmatprep.mubr.bf16.mxu0 0
  %2223 = vmatmul.mubr.bf16.gmra.mrb[0].mxu0 %v2148
  %v2224 = vpop.f32.mrb[0].mxu0
  %v2225 = vadd.f32 0.0, %v2224
  %v2226 = vpop.f32.mrb[0].mxu0
  %v2227 = vadd.f32 0.0, %v2226
  %v2228 = vpop.f32.mrb[0].mxu0
  %v2229 = vpop.f32.mrb[0].mxu0
  %2230 = vdwg.mxu0
  %s2231 = scalar_lea.vmem [#allocation2], 160
  %v2232 = vld [vmem:[%s2231] sm:$0xff]
  %v2233 = vld [vmem:[%s2231 + $0x8] sm:$0xff]
  %v2234 = vld [vmem:[%s2231 + $0x10] sm:$0xff]
  %v2235 = vld [vmem:[%s2231 + $0x18] sm:$0xff]
  %v2236 = vadd.f32 %v2232, %v2101
  %v2237 = vadd.f32 %v2233, %v2103
  %v2238 = vadd.f32 %v2234, %v2142
  %v2239 = vadd.f32 %v2235, %v2144
  %v2240 = vxor.u32 %v2236, 2147483648
  %v2241 = vmul.f32 %v2240, 1.442695
  %v2242 = vpow.pop %v2241
  %v2243 = vadd.f32 %v2242, 1.0
  %v2244 = vrcp.pop %v2243
  %v2245 = vmul.f32 1.0, %v2244
  %v2246 = vxor.u32 %v2237, 2147483648
  %v2247 = vmul.f32 %v2246, 1.442695
  %v2248 = vpow.pop %v2247
  %v2249 = vadd.f32 %v2248, 1.0
  %v2250 = vrcp.pop %v2249
  %v2251 = vmul.f32 1.0, %v2250
  %v2252 = vtanh.pop %v2238
  %v2253 = vxor.u32 %v2239, 2147483648
  %v2254 = vmul.f32 %v2253, 1.442695
  %v2255 = vpow.pop %v2254
  %v2256 = vadd.f32 %v2255, 1.0
  %v2257 = vrcp.pop %v2256
  %v2258 = vmul.f32 1.0, %v2257
  %v2259 = vmul.f32 %v2251, %v2029
  %v2260 = vmul.f32 %v2245, %v2252
  %v2261 = vadd.f32 %v2259, %v2260
  %v2262 = vtanh.pop %v2261
  %v2263 = vmul.f32 %v2258, %v2262
  %s2264 = scalar_lea.vmem [#allocation3], 64
  %v2265 = vld [vmem:[%s2264] sm:$0xff]
  %v2266 = vld [vmem:[%s2264 + $0x8] sm:$0xff]
  %v2267 = vld [vmem:[%s2264 + $0x10] sm:$0xff]
  %v2268 = vld [vmem:[%s2264 + $0x18] sm:$0xff]
  %v2269 = vadd.f32 %v2265, %v2184
  %v2270 = vadd.f32 %v2266, %v2186
  %v2271 = vadd.f32 %v2267, %v2225
  %v2272 = vadd.f32 %v2268, %v2227
  %v2273 = vxor.u32 %v2269, 2147483648
  %v2274 = vmul.f32 %v2273, 1.442695
  %v2275 = vpow.pop %v2274
  %v2276 = vadd.f32 %v2275, 1.0
  %v2277 = vrcp.pop %v2276
  %v2278 = vmul.f32 1.0, %v2277
  %v2279 = vxor.u32 %v2270, 2147483648
  %v2280 = vmul.f32 %v2279, 1.442695
  %v2281 = vpow.pop %v2280
  %v2282 = vadd.f32 %v2281, 1.0
  %v2283 = vrcp.pop %v2282
  %v2284 = vmul.f32 1.0, %v2283
  %v2285 = vtanh.pop %v2271
  %v2286 = vxor.u32 %v2272, 2147483648
  %v2287 = vmul.f32 %v2286, 1.442695
  %v2288 = vpow.pop %v2287
  %v2289 = vadd.f32 %v2288, 1.0
  %v2290 = vrcp.pop %v2289
  %v2291 = vmul.f32 1.0, %v2290
  %v2292 = vmul.f32 %v2284, %v2062
  %v2293 = vmul.f32 %v2278, %v2285
  %v2294 = vadd.f32 %v2292, %v2293
  %v2295 = vtanh.pop %v2294
  %v2296 = vmul.f32 %v2291, %v2295
  %v2297 = vpack.c.bf16 %v2263, %v2263
  %2298 = vmatprep.subr.bf16.mxu0 %v685
  %2299 = vmatpush1.bf16.msra.mxu0 %v684
  %2300 = vmatprep.subr.bf16.mxu0 %v689
  %2301 = vmatpush1.bf16.msra.mxu0 %v688
  %2302 = vmatprep.subr.bf16.mxu0 %v693
  %2303 = vmatpush1.bf16.msra.mxu0 %v692
  %2304 = vmatprep.subr.bf16.mxu0 %v697
  %2305 = vmatpush1.bf16.msra.mxu0 %v696
  %2306 = vmatprep.subr.bf16.mxu0 %v701
  %2307 = vmatpush1.bf16.msra.mxu0 %v700
  %2308 = vmatprep.subr.bf16.mxu0 %v705
  %2309 = vmatpush1.bf16.msra.mxu0 %v704
  %2310 = vmatprep.subr.bf16.mxu0 %v709
  %2311 = vmatpush1.bf16.msra.mxu0 %v708
  %2312 = vmatprep.subr.bf16.mxu0 %v713
  %2313 = vmatpush1.bf16.msra.mxu0 %v712
  %2314 = vmatprep.subr.bf16.mxu0 0
  %2315 = vmatpush1.bf16.msra.mxu0 0
  %2316 = vmatprep.subr.bf16.mxu0 0
  %2317 = vmatpush1.bf16.msra.mxu0 0
  %2318 = vmatprep.subr.bf16.mxu0 0
  %2319 = vmatpush1.bf16.msra.mxu0 0
  %2320 = vmatprep.subr.bf16.mxu0 0
  %2321 = vmatpush1.bf16.msra.mxu0 0
  %2322 = vmatprep.subr.bf16.mxu0 0
  %2323 = vmatpush1.bf16.msra.mxu0 0
  %2324 = vmatprep.subr.bf16.mxu0 0
  %2325 = vmatpush1.bf16.msra.mxu0 0
  %2326 = vmatprep.subr.bf16.mxu0 0
  %2327 = vmatpush1.bf16.msra.mxu0 0
  %2328 = vmatprep.subr.bf16.mxu0 0
  %2329 = vmatpush1.bf16.msra.mxu0 0
  %2330 = vmatprep.mubr.bf16.mxu0 0
  %2331 = vmatmul.mubr.bf16.gmra.mrb[0].mxu0 %v2297
  %v2332 = vpop.f32.mrb[0].mxu0
  %v2333 = vadd.f32 0.0, %v2332
  %v2334 = vpop.f32.mrb[0].mxu0
  %v2335 = vadd.f32 0.0, %v2334
  %v2336 = vpop.f32.mrb[0].mxu0
  %v2337 = vpop.f32.mrb[0].mxu0
  %2338 = vdwg.mxu0
  %2339 = vmatprep.subr.bf16.mxu0 %v687
  %2340 = vmatpush1.bf16.msra.mxu0 %v686
  %2341 = vmatprep.subr.bf16.mxu0 %v691
  %2342 = vmatpush1.bf16.msra.mxu0 %v690
  %2343 = vmatprep.subr.bf16.mxu0 %v695
  %2344 = vmatpush1.bf16.msra.mxu0 %v694
  %2345 = vmatprep.subr.bf16.mxu0 %v699
  %2346 = vmatpush1.bf16.msra.mxu0 %v698
  %2347 = vmatprep.subr.bf16.mxu0 %v703
  %2348 = vmatpush1.bf16.msra.mxu0 %v702
  %2349 = vmatprep.subr.bf16.mxu0 %v707
  %2350 = vmatpush1.bf16.msra.mxu0 %v706
  %2351 = vmatprep.subr.bf16.mxu0 %v711
  %2352 = vmatpush1.bf16.msra.mxu0 %v710
  %2353 = vmatprep.subr.bf16.mxu0 %v715
  %2354 = vmatpush1.bf16.msra.mxu0 %v714
  %2355 = vmatprep.subr.bf16.mxu0 0
  %2356 = vmatpush1.bf16.msra.mxu0 0
  %2357 = vmatprep.subr.bf16.mxu0 0
  %2358 = vmatpush1.bf16.msra.mxu0 0
  %2359 = vmatprep.subr.bf16.mxu0 0
  %2360 = vmatpush1.bf16.msra.mxu0 0
  %2361 = vmatprep.subr.bf16.mxu0 0
  %2362 = vmatpush1.bf16.msra.mxu0 0
  %2363 = vmatprep.subr.bf16.mxu0 0
  %2364 = vmatpush1.bf16.msra.mxu0 0
  %2365 = vmatprep.subr.bf16.mxu0 0
  %2366 = vmatpush1.bf16.msra.mxu0 0
  %2367 = vmatprep.subr.bf16.mxu0 0
  %2368 = vmatpush1.bf16.msra.mxu0 0
  %2369 = vmatprep.subr.bf16.mxu0 0
  %2370 = vmatpush1.bf16.msra.mxu0 0
  %2371 = vmatprep.mubr.bf16.mxu0 0
  %2372 = vmatmul.mubr.bf16.gmra.mrb[0].mxu0 %v2297
  %v2373 = vpop.f32.mrb[0].mxu0
  %v2374 = vadd.f32 0.0, %v2373
  %v2375 = vpop.f32.mrb[0].mxu0
  %v2376 = vadd.f32 0.0, %v2375
  %v2377 = vpop.f32.mrb[0].mxu0
  %v2378 = vpop.f32.mrb[0].mxu0
  %2379 = vdwg.mxu0
  %v2380 = vpack.c.bf16 %v2296, %v2296
  %2381 = vmatprep.subr.bf16.mxu0 %v927
  %2382 = vmatpush1.bf16.msra.mxu0 %v926
  %2383 = vmatprep.subr.bf16.mxu0 %v931
  %2384 = vmatpush1.bf16.msra.mxu0 %v930
  %2385 = vmatprep.subr.bf16.mxu0 %v935
  %2386 = vmatpush1.bf16.msra.mxu0 %v934
  %2387 = vmatprep.subr.bf16.mxu0 %v939
  %2388 = vmatpush1.bf16.msra.mxu0 %v938
  %2389 = vmatprep.subr.bf16.mxu0 %v943
  %2390 = vmatpush1.bf16.msra.mxu0 %v942
  %2391 = vmatprep.subr.bf16.mxu0 %v947
  %2392 = vmatpush1.bf16.msra.mxu0 %v946
  %2393 = vmatprep.subr.bf16.mxu0 %v951
  %2394 = vmatpush1.bf16.msra.mxu0 %v950
  %2395 = vmatprep.subr.bf16.mxu0 %v955
  %2396 = vmatpush1.bf16.msra.mxu0 %v954
  %2397 = vmatprep.subr.bf16.mxu0 0
  %2398 = vmatpush1.bf16.msra.mxu0 0
  %2399 = vmatprep.subr.bf16.mxu0 0
  %2400 = vmatpush1.bf16.msra.mxu0 0
  %2401 = vmatprep.subr.bf16.mxu0 0
  %2402 = vmatpush1.bf16.msra.mxu0 0
  %2403 = vmatprep.subr.bf16.mxu0 0
  %2404 = vmatpush1.bf16.msra.mxu0 0
  %2405 = vmatprep.subr.bf16.mxu0 0
  %2406 = vmatpush1.bf16.msra.mxu0 0
  %2407 = vmatprep.subr.bf16.mxu0 0
  %2408 = vmatpush1.bf16.msra.mxu0 0
  %2409 = vmatprep.subr.bf16.mxu0 0
  %2410 = vmatpush1.bf16.msra.mxu0 0
  %2411 = vmatprep.subr.bf16.mxu0 0
  %2412 = vmatpush1.bf16.msra.mxu0 0
  %2413 = vmatprep.mubr.bf16.mxu0 0
  %2414 = vmatmul.mubr.bf16.gmra.mrb[0].mxu0 %v2380
  %v2415 = vpop.f32.mrb[0].mxu0
  %v2416 = vadd.f32 0.0, %v2415
  %v2417 = vpop.f32.mrb[0].mxu0
  %v2418 = vadd.f32 0.0, %v2417
  %v2419 = vpop.f32.mrb[0].mxu0
  %v2420 = vpop.f32.mrb[0].mxu0
  %2421 = vdwg.mxu0
  %2422 = vmatprep.subr.bf16.mxu0 %v929
  %2423 = vmatpush1.bf16.msra.mxu0 %v928
  %2424 = vmatprep.subr.bf16.mxu0 %v933
  %2425 = vmatpush1.bf16.msra.mxu0 %v932
  %2426 = vmatprep.subr.bf16.mxu0 %v937
  %2427 = vmatpush1.bf16.msra.mxu0 %v936
  %2428 = vmatprep.subr.bf16.mxu0 %v941
  %2429 = vmatpush1.bf16.msra.mxu0 %v940
  %2430 = vmatprep.subr.bf16.mxu0 %v945
  %2431 = vmatpush1.bf16.msra.mxu0 %v944
  %2432 = vmatprep.subr.bf16.mxu0 %v949
  %2433 = vmatpush1.bf16.msra.mxu0 %v948
  %2434 = vmatprep.subr.bf16.mxu0 %v953
  %2435 = vmatpush1.bf16.msra.mxu0 %v952
  %2436 = vmatprep.subr.bf16.mxu0 %v957
  %2437 = vmatpush1.bf16.msra.mxu0 %v956
  %2438 = vmatprep.subr.bf16.mxu0 0
  %2439 = vmatpush1.bf16.msra.mxu0 0
  %2440 = vmatprep.subr.bf16.mxu0 0
  %2441 = vmatpush1.bf16.msra.mxu0 0
  %2442 = vmatprep.subr.bf16.mxu0 0
  %2443 = vmatpush1.bf16.msra.mxu0 0
  %2444 = vmatprep.subr.bf16.mxu0 0
  %2445 = vmatpush1.bf16.msra.mxu0 0
  %2446 = vmatprep.subr.bf16.mxu0 0
  %2447 = vmatpush1.bf16.msra.mxu0 0
  %2448 = vmatprep.subr.bf16.mxu0 0
  %2449 = vmatpush1.bf16.msra.mxu0 0
  %2450 = vmatprep.subr.bf16.mxu0 0
  %2451 = vmatpush1.bf16.msra.mxu0 0
  %2452 = vmatprep.subr.bf16.mxu0 0
  %2453 = vmatpush1.bf16.msra.mxu0 0
  %2454 = vmatprep.mubr.bf16.mxu0 0
  %2455 = vmatmul.mubr.bf16.gmra.mrb[0].mxu0 %v2380
  %v2456 = vpop.f32.mrb[0].mxu0
  %v2457 = vadd.f32 0.0, %v2456
  %v2458 = vpop.f32.mrb[0].mxu0
  %v2459 = vadd.f32 0.0, %v2458
  %v2460 = vpop.f32.mrb[0].mxu0
  %v2461 = vpop.f32.mrb[0].mxu0
  %2462 = vdwg.mxu0
  %s2463 = scalar_lea.vmem [#allocation2], 192
  %v2464 = vld [vmem:[%s2463] sm:$0xff]
  %v2465 = vld [vmem:[%s2463 + $0x8] sm:$0xff]
  %v2466 = vld [vmem:[%s2463 + $0x10] sm:$0xff]
  %v2467 = vld [vmem:[%s2463 + $0x18] sm:$0xff]
  %v2468 = vadd.f32 %v2464, %v2333
  %v2469 = vadd.f32 %v2465, %v2335
  %v2470 = vadd.f32 %v2466, %v2374
  %v2471 = vadd.f32 %v2467, %v2376
  %v2472 = vxor.u32 %v2468, 2147483648
  %v2473 = vmul.f32 %v2472, 1.442695
  %v2474 = vpow.pop %v2473
  %v2475 = vadd.f32 %v2474, 1.0
  %v2476 = vrcp.pop %v2475
  %v2477 = vmul.f32 1.0, %v2476
  %v2478 = vxor.u32 %v2469, 2147483648
  %v2479 = vmul.f32 %v2478, 1.442695
  %v2480 = vpow.pop %v2479
  %v2481 = vadd.f32 %v2480, 1.0
  %v2482 = vrcp.pop %v2481
  %v2483 = vmul.f32 1.0, %v2482
  %v2484 = vtanh.pop %v2470
  %v2485 = vxor.u32 %v2471, 2147483648
  %v2486 = vmul.f32 %v2485, 1.442695
  %v2487 = vpow.pop %v2486
  %v2488 = vadd.f32 %v2487, 1.0
  %v2489 = vrcp.pop %v2488
  %v2490 = vmul.f32 1.0, %v2489
  %v2491 = vmul.f32 %v2483, %v2261
  %v2492 = vmul.f32 %v2477, %v2484
  %v2493 = vadd.f32 %v2491, %v2492
  %v2494 = vtanh.pop %v2493
  %v2495 = vmul.f32 %v2490, %v2494
  %s2496 = scalar_lea.vmem [#allocation3], 32
  %v2497 = vld [vmem:[%s2496] sm:$0xff]
  %v2498 = vld [vmem:[%s2496 + $0x8] sm:$0xff]
  %v2499 = vld [vmem:[%s2496 + $0x10] sm:$0xff]
  %v2500 = vld [vmem:[%s2496 + $0x18] sm:$0xff]
  %v2501 = vadd.f32 %v2497, %v2416
  %v2502 = vadd.f32 %v2498, %v2418
  %v2503 = vadd.f32 %v2499, %v2457
  %v2504 = vadd.f32 %v2500, %v2459
  %v2505 = vxor.u32 %v2501, 2147483648
  %v2506 = vmul.f32 %v2505, 1.442695
  %v2507 = vpow.pop %v2506
  %v2508 = vadd.f32 %v2507, 1.0
  %v2509 = vrcp.pop %v2508
  %v2510 = vmul.f32 1.0, %v2509
  %v2511 = vxor.u32 %v2502, 2147483648
  %v2512 = vmul.f32 %v2511, 1.442695
  %v2513 = vpow.pop %v2512
  %v2514 = vadd.f32 %v2513, 1.0
  %v2515 = vrcp.pop %v2514
  %v2516 = vmul.f32 1.0, %v2515
  %v2517 = vtanh.pop %v2503
  %v2518 = vxor.u32 %v2504, 2147483648
  %v2519 = vmul.f32 %v2518, 1.442695
  %v2520 = vpow.pop %v2519
  %v2521 = vadd.f32 %v2520, 1.0
  %v2522 = vrcp.pop %v2521
  %v2523 = vmul.f32 1.0, %v2522
  %v2524 = vmul.f32 %v2516, %v2294
  %v2525 = vmul.f32 %v2510, %v2517
  %v2526 = vadd.f32 %v2524, %v2525
  %v2527 = vtanh.pop %v2526
  %v2528 = vmul.f32 %v2523, %v2527
  %v2529 = vpack.c.bf16 %v2495, %v2495
  %2530 = vmatprep.subr.bf16.mxu0 %v685
  %2531 = vmatpush1.bf16.msra.mxu0 %v684
  %2532 = vmatprep.subr.bf16.mxu0 %v689
  %2533 = vmatpush1.bf16.msra.mxu0 %v688
  %2534 = vmatprep.subr.bf16.mxu0 %v693
  %2535 = vmatpush1.bf16.msra.mxu0 %v692
  %2536 = vmatprep.subr.bf16.mxu0 %v697
  %2537 = vmatpush1.bf16.msra.mxu0 %v696
  %2538 = vmatprep.subr.bf16.mxu0 %v701
  %2539 = vmatpush1.bf16.msra.mxu0 %v700
  %2540 = vmatprep.subr.bf16.mxu0 %v705
  %2541 = vmatpush1.bf16.msra.mxu0 %v704
  %2542 = vmatprep.subr.bf16.mxu0 %v709
  %2543 = vmatpush1.bf16.msra.mxu0 %v708
  %2544 = vmatprep.subr.bf16.mxu0 %v713
  %2545 = vmatpush1.bf16.msra.mxu0 %v712
  %2546 = vmatprep.subr.bf16.mxu0 0
  %2547 = vmatpush1.bf16.msra.mxu0 0
  %2548 = vmatprep.subr.bf16.mxu0 0
  %2549 = vmatpush1.bf16.msra.mxu0 0
  %2550 = vmatprep.subr.bf16.mxu0 0
  %2551 = vmatpush1.bf16.msra.mxu0 0
  %2552 = vmatprep.subr.bf16.mxu0 0
  %2553 = vmatpush1.bf16.msra.mxu0 0
  %2554 = vmatprep.subr.bf16.mxu0 0
  %2555 = vmatpush1.bf16.msra.mxu0 0
  %2556 = vmatprep.subr.bf16.mxu0 0
  %2557 = vmatpush1.bf16.msra.mxu0 0
  %2558 = vmatprep.subr.bf16.mxu0 0
  %2559 = vmatpush1.bf16.msra.mxu0 0
  %2560 = vmatprep.subr.bf16.mxu0 0
  %2561 = vmatpush1.bf16.msra.mxu0 0
  %2562 = vmatprep.mubr.bf16.mxu0 0
  %2563 = vmatmul.mubr.bf16.gmra.mrb[0].mxu0 %v2529
  %v2564 = vpop.f32.mrb[0].mxu0
  %v2565 = vadd.f32 0.0, %v2564
  %v2566 = vpop.f32.mrb[0].mxu0
  %v2567 = vadd.f32 0.0, %v2566
  %v2568 = vpop.f32.mrb[0].mxu0
  %v2569 = vpop.f32.mrb[0].mxu0
  %2570 = vdwg.mxu0
  %2571 = vmatprep.subr.bf16.mxu0 %v687
  %2572 = vmatpush1.bf16.msra.mxu0 %v686
  %2573 = vmatprep.subr.bf16.mxu0 %v691
  %2574 = vmatpush1.bf16.msra.mxu0 %v690
  %2575 = vmatprep.subr.bf16.mxu0 %v695
  %2576 = vmatpush1.bf16.msra.mxu0 %v694
  %2577 = vmatprep.subr.bf16.mxu0 %v699
  %2578 = vmatpush1.bf16.msra.mxu0 %v698
  %2579 = vmatprep.subr.bf16.mxu0 %v703
  %2580 = vmatpush1.bf16.msra.mxu0 %v702
  %2581 = vmatprep.subr.bf16.mxu0 %v707
  %2582 = vmatpush1.bf16.msra.mxu0 %v706
  %2583 = vmatprep.subr.bf16.mxu0 %v711
  %2584 = vmatpush1.bf16.msra.mxu0 %v710
  %2585 = vmatprep.subr.bf16.mxu0 %v715
  %2586 = vmatpush1.bf16.msra.mxu0 %v714
  %2587 = vmatprep.subr.bf16.mxu0 0
  %2588 = vmatpush1.bf16.msra.mxu0 0
  %2589 = vmatprep.subr.bf16.mxu0 0
  %2590 = vmatpush1.bf16.msra.mxu0 0
  %2591 = vmatprep.subr.bf16.mxu0 0
  %2592 = vmatpush1.bf16.msra.mxu0 0
  %2593 = vmatprep.subr.bf16.mxu0 0
  %2594 = vmatpush1.bf16.msra.mxu0 0
  %2595 = vmatprep.subr.bf16.mxu0 0
  %2596 = vmatpush1.bf16.msra.mxu0 0
  %2597 = vmatprep.subr.bf16.mxu0 0
  %2598 = vmatpush1.bf16.msra.mxu0 0
  %2599 = vmatprep.subr.bf16.mxu0 0
  %2600 = vmatpush1.bf16.msra.mxu0 0
  %2601 = vmatprep.subr.bf16.mxu0 0
  %2602 = vmatpush1.bf16.msra.mxu0 0
  %2603 = vmatprep.mubr.bf16.mxu0 0
  %2604 = vmatmul.mubr.bf16.gmra.mrb[0].mxu0 %v2529
  %v2605 = vpop.f32.mrb[0].mxu0
  %v2606 = vadd.f32 0.0, %v2605
  %v2607 = vpop.f32.mrb[0].mxu0
  %v2608 = vadd.f32 0.0, %v2607
  %v2609 = vpop.f32.mrb[0].mxu0
  %v2610 = vpop.f32.mrb[0].mxu0
  %2611 = vdwg.mxu0
  %v2612 = vpack.c.bf16 %v2528, %v2528
  %2613 = vmatprep.subr.bf16.mxu0 %v927
  %2614 = vmatpush1.bf16.msra.mxu0 %v926
  %2615 = vmatprep.subr.bf16.mxu0 %v931
  %2616 = vmatpush1.bf16.msra.mxu0 %v930
  %2617 = vmatprep.subr.bf16.mxu0 %v935
  %2618 = vmatpush1.bf16.msra.mxu0 %v934
  %2619 = vmatprep.subr.bf16.mxu0 %v939
  %2620 = vmatpush1.bf16.msra.mxu0 %v938
  %2621 = vmatprep.subr.bf16.mxu0 %v943
  %2622 = vmatpush1.bf16.msra.mxu0 %v942
  %2623 = vmatprep.subr.bf16.mxu0 %v947
  %2624 = vmatpush1.bf16.msra.mxu0 %v946
  %2625 = vmatprep.subr.bf16.mxu0 %v951
  %2626 = vmatpush1.bf16.msra.mxu0 %v950
  %2627 = vmatprep.subr.bf16.mxu0 %v955
  %2628 = vmatpush1.bf16.msra.mxu0 %v954
  %2629 = vmatprep.subr.bf16.mxu0 0
  %2630 = vmatpush1.bf16.msra.mxu0 0
  %2631 = vmatprep.subr.bf16.mxu0 0
  %2632 = vmatpush1.bf16.msra.mxu0 0
  %2633 = vmatprep.subr.bf16.mxu0 0
  %2634 = vmatpush1.bf16.msra.mxu0 0
  %2635 = vmatprep.subr.bf16.mxu0 0
  %2636 = vmatpush1.bf16.msra.mxu0 0
  %2637 = vmatprep.subr.bf16.mxu0 0
  %2638 = vmatpush1.bf16.msra.mxu0 0
  %2639 = vmatprep.subr.bf16.mxu0 0
  %2640 = vmatpush1.bf16.msra.mxu0 0
  %2641 = vmatprep.subr.bf16.mxu0 0
  %2642 = vmatpush1.bf16.msra.mxu0 0
  %2643 = vmatprep.subr.bf16.mxu0 0
  %2644 = vmatpush1.bf16.msra.mxu0 0
  %2645 = vmatprep.mubr.bf16.mxu0 0
  %2646 = vmatmul.mubr.bf16.gmra.mrb[0].mxu0 %v2612
  %v2647 = vpop.f32.mrb[0].mxu0
  %v2648 = vadd.f32 0.0, %v2647
  %v2649 = vpop.f32.mrb[0].mxu0
  %v2650 = vadd.f32 0.0, %v2649
  %v2651 = vpop.f32.mrb[0].mxu0
  %v2652 = vpop.f32.mrb[0].mxu0
  %2653 = vdwg.mxu0
  %2654 = vmatprep.subr.bf16.mxu0 %v929
  %2655 = vmatpush1.bf16.msra.mxu0 %v928
  %2656 = vmatprep.subr.bf16.mxu0 %v933
  %2657 = vmatpush1.bf16.msra.mxu0 %v932
  %2658 = vmatprep.subr.bf16.mxu0 %v937
  %2659 = vmatpush1.bf16.msra.mxu0 %v936
  %2660 = vmatprep.subr.bf16.mxu0 %v941
  %2661 = vmatpush1.bf16.msra.mxu0 %v940
  %2662 = vmatprep.subr.bf16.mxu0 %v945
  %2663 = vmatpush1.bf16.msra.mxu0 %v944
  %2664 = vmatprep.subr.bf16.mxu0 %v949
  %2665 = vmatpush1.bf16.msra.mxu0 %v948
  %2666 = vmatprep.subr.bf16.mxu0 %v953
  %2667 = vmatpush1.bf16.msra.mxu0 %v952
  %2668 = vmatprep.subr.bf16.mxu0 %v957
  %2669 = vmatpush1.bf16.msra.mxu0 %v956
  %2670 = vmatprep.subr.bf16.mxu0 0
  %2671 = vmatpush1.bf16.msra.mxu0 0
  %2672 = vmatprep.subr.bf16.mxu0 0
  %2673 = vmatpush1.bf16.msra.mxu0 0
  %2674 = vmatprep.subr.bf16.mxu0 0
  %2675 = vmatpush1.bf16.msra.mxu0 0
  %2676 = vmatprep.subr.bf16.mxu0 0
  %2677 = vmatpush1.bf16.msra.mxu0 0
  %2678 = vmatprep.subr.bf16.mxu0 0
  %2679 = vmatpush1.bf16.msra.mxu0 0
  %2680 = vmatprep.subr.bf16.mxu0 0
  %2681 = vmatpush1.bf16.msra.mxu0 0
  %2682 = vmatprep.subr.bf16.mxu0 0
  %2683 = vmatpush1.bf16.msra.mxu0 0
  %2684 = vmatprep.subr.bf16.mxu0 0
  %2685 = vmatpush1.bf16.msra.mxu0 0
  %2686 = vmatprep.mubr.bf16.mxu0 0
  %2687 = vmatmul.mubr.bf16.gmra.mrb[0].mxu0 %v2612
  %v2688 = vpop.f32.mrb[0].mxu0
  %v2689 = vadd.f32 0.0, %v2688
  %v2690 = vpop.f32.mrb[0].mxu0
  %v2691 = vadd.f32 0.0, %v2690
  %v2692 = vpop.f32.mrb[0].mxu0
  %v2693 = vpop.f32.mrb[0].mxu0
  %2694 = vdwg.mxu0
  %s2695 = scalar_lea.vmem [#allocation2], 224
  %v2696 = vld [vmem:[%s2695] sm:$0xff]
  %v2697 = vld [vmem:[%s2695 + $0x8] sm:$0xff]
  %v2698 = vld [vmem:[%s2695 + $0x10] sm:$0xff]
  %v2699 = vld [vmem:[%s2695 + $0x18] sm:$0xff]
  %v2700 = vadd.f32 %v2696, %v2565
  %v2701 = vadd.f32 %v2697, %v2567
  %v2702 = vadd.f32 %v2698, %v2606
  %v2703 = vadd.f32 %v2699, %v2608
  %v2704 = vxor.u32 %v2700, 2147483648
  %v2705 = vmul.f32 %v2704, 1.442695
  %v2706 = vpow.pop %v2705
  %v2707 = vadd.f32 %v2706, 1.0
  %v2708 = vrcp.pop %v2707
  %v2709 = vmul.f32 1.0, %v2708
  %v2710 = vxor.u32 %v2701, 2147483648
  %v2711 = vmul.f32 %v2710, 1.442695
  %v2712 = vpow.pop %v2711
  %v2713 = vadd.f32 %v2712, 1.0
  %v2714 = vrcp.pop %v2713
  %v2715 = vmul.f32 1.0, %v2714
  %v2716 = vtanh.pop %v2702
  %v2717 = vxor.u32 %v2703, 2147483648
  %v2718 = vmul.f32 %v2717, 1.442695
  %v2719 = vpow.pop %v2718
  %v2720 = vadd.f32 %v2719, 1.0
  %v2721 = vrcp.pop %v2720
  %v2722 = vmul.f32 1.0, %v2721
  %v2723 = vmul.f32 %v2715, %v2493
  %v2724 = vmul.f32 %v2709, %v2716
  %v2725 = vadd.f32 %v2723, %v2724
  %v2726 = vtanh.pop %v2725
  %v2727 = vmul.f32 %v2722, %v2726
  %v2728 = vld [vmem:[#allocation3] sm:$0xff]
  %v2729 = vld [vmem:[#allocation3 + $0x8] sm:$0xff]
  %v2730 = vld [vmem:[#allocation3 + $0x10] sm:$0xff]
  %v2731 = vld [vmem:[#allocation3 + $0x18] sm:$0xff]
  %v2732 = vadd.f32 %v2728, %v2648
  %v2733 = vadd.f32 %v2729, %v2650
  %v2734 = vadd.f32 %v2730, %v2689
  %v2735 = vadd.f32 %v2731, %v2691
  %v2736 = vxor.u32 %v2732, 2147483648
  %v2737 = vmul.f32 %v2736, 1.442695
  %v2738 = vpow.pop %v2737
  %v2739 = vadd.f32 %v2738, 1.0
  %v2740 = vrcp.pop %v2739
  %v2741 = vmul.f32 1.0, %v2740
  %v2742 = vxor.u32 %v2733, 2147483648
  %v2743 = vmul.f32 %v2742, 1.442695
  %v2744 = vpow.pop %v2743
  %v2745 = vadd.f32 %v2744, 1.0
  %v2746 = vrcp.pop %v2745
  %v2747 = vmul.f32 1.0, %v2746
  %v2748 = vtanh.pop %v2734
  %v2749 = vxor.u32 %v2735, 2147483648
  %v2750 = vmul.f32 %v2749, 1.442695
  %v2751 = vpow.pop %v2750
  %v2752 = vadd.f32 %v2751, 1.0
  %v2753 = vrcp.pop %v2752
  %v2754 = vmul.f32 1.0, %v2753
  %v2755 = vmul.f32 %v2747, %v2526
  %v2756 = vmul.f32 %v2741, %v2748
  %v2757 = vadd.f32 %v2755, %v2756
  %v2758 = vtanh.pop %v2757
  %v2759 = vmul.f32 %v2754, %v2758
  %v2760 = vpack.c.bf16 %v2727, %v2727
  %v2761 = vpack.c.bf16 %v2759, %v2759
  %v2762 = vld [vmem:[%s7] sm:$0xf]
  %v2763 = vld [vmem:[%s7 + $0x4] sm:$0xf]
  %v2764 = vld [vmem:[%s7 + $0x8] sm:$0xf]
  %v2765 = vld [vmem:[%s7 + $0xc] sm:$0xf]
  %v2766 = vld [vmem:[%s7 + $0x10] sm:$0xf]
  %v2767 = vld [vmem:[%s7 + $0x14] sm:$0xf]
  %v2768 = vld [vmem:[%s7 + $0x18] sm:$0xf]
  %v2769 = vld [vmem:[%s7 + $0x1c] sm:$0xf]
  %v2770 = vld [vmem:[%s7 + $0x20] sm:$0xf]
  %v2771 = vld [vmem:[%s7 + $0x24] sm:$0xf]
  %v2772 = vld [vmem:[%s7 + $0x28] sm:$0xf]
  %v2773 = vld [vmem:[%s7 + $0x2c] sm:$0xf]
  %v2774 = vld [vmem:[%s7 + $0x30] sm:$0xf]
  %v2775 = vld [vmem:[%s7 + $0x34] sm:$0xf]
  %v2776 = vld [vmem:[%s7 + $0x38] sm:$0xf]
  %v2777 = vld [vmem:[%s7 + $0x3c] sm:$0xf]
  %v2778 = vld [vmem:[%s7 + $0x40] sm:$0xf]
  %v2779 = vld [vmem:[%s7 + $0x44] sm:$0xf]
  %v2780 = vld [vmem:[%s7 + $0x48] sm:$0xf]
  %v2781 = vld [vmem:[%s7 + $0x4c] sm:$0xf]
  %v2782 = vld [vmem:[%s7 + $0x50] sm:$0xf]
  %v2783 = vld [vmem:[%s7 + $0x54] sm:$0xf]
  %v2784 = vld [vmem:[%s7 + $0x58] sm:$0xf]
  %v2785 = vld [vmem:[%s7 + $0x5c] sm:$0xf]
  %v2786 = vld [vmem:[%s7 + $0x60] sm:$0xf]
  %v2787 = vld [vmem:[%s7 + $0x64] sm:$0xf]
  %v2788 = vld [vmem:[%s7 + $0x68] sm:$0xf]
  %v2789 = vld [vmem:[%s7 + $0x6c] sm:$0xf]
  %v2790 = vld [vmem:[%s7 + $0x70] sm:$0xf]
  %v2791 = vld [vmem:[%s7 + $0x74] sm:$0xf]
  %v2792 = vld [vmem:[%s7 + $0x78] sm:$0xf]
  %v2793 = vld [vmem:[%s7 + $0x7c] sm:$0xf]
  %v2794 = vld [vmem:[#allocation4] sm:$0x1]
  %v2796 = vlaneseq
  %v2797 = vshrl.u32 %v2796, 7
  %v2798 = vsub.s32 0, %v2797
  %v2799 = vrot.slane %v2794, %v2798
  %v2833 = vunpack.c.l.b16 %v2762
  %v2834 = vunpack.c.l.b16 %v2763
  %v2835 = vunpack.c.l.b16 %v2764
  %v2836 = vunpack.c.l.b16 %v2765
  %v2837 = vunpack.c.l.b16 %v2766
  %v2838 = vunpack.c.l.b16 %v2767
  %v2839 = vunpack.c.l.b16 %v2768
  %v2840 = vunpack.c.l.b16 %v2769
  %v2841 = vunpack.c.l.b16 %v2770
  %v2842 = vunpack.c.l.b16 %v2771
  %v2843 = vunpack.c.l.b16 %v2772
  %v2844 = vunpack.c.l.b16 %v2773
  %v2845 = vunpack.c.l.b16 %v2774
  %v2846 = vunpack.c.l.b16 %v2775
  %v2847 = vunpack.c.l.b16 %v2776
  %v2848 = vunpack.c.l.b16 %v2777
  %v2849 = vunpack.c.l.b16 %v2778
  %v2850 = vunpack.c.l.b16 %v2779
  %v2851 = vunpack.c.l.b16 %v2780
  %v2852 = vunpack.c.l.b16 %v2781
  %v2853 = vunpack.c.l.b16 %v2782
  %v2854 = vunpack.c.l.b16 %v2783
  %v2855 = vunpack.c.l.b16 %v2784
  %v2856 = vunpack.c.l.b16 %v2785
  %v2857 = vunpack.c.l.b16 %v2786
  %v2858 = vunpack.c.l.b16 %v2787
  %v2859 = vunpack.c.l.b16 %v2788
  %v2860 = vunpack.c.l.b16 %v2789
  %v2861 = vunpack.c.l.b16 %v2790
  %v2862 = vunpack.c.l.b16 %v2791
  %v2863 = vunpack.c.l.b16 %v2792
  %v2864 = vunpack.c.l.b16 %v2793
  %v2865 = vpack.c.b16 %v2834, %v2833
  %v2866 = vpack.c.b16 %v2836, %v2835
  %v2867 = vpack.c.b16 %v2838, %v2837
  %v2868 = vpack.c.b16 %v2840, %v2839
  %v2869 = vpack.c.b16 %v2842, %v2841
  %v2870 = vpack.c.b16 %v2844, %v2843
  %v2871 = vpack.c.b16 %v2846, %v2845
  %v2872 = vpack.c.b16 %v2848, %v2847
  %v2873 = vpack.c.b16 %v2850, %v2849
  %v2874 = vpack.c.b16 %v2852, %v2851
  %v2875 = vpack.c.b16 %v2854, %v2853
  %v2876 = vpack.c.b16 %v2856, %v2855
  %v2877 = vpack.c.b16 %v2858, %v2857
  %v2878 = vpack.c.b16 %v2860, %v2859
  %v2879 = vpack.c.b16 %v2862, %v2861
  %v2880 = vpack.c.b16 %v2864, %v2863
  %2897 = vmatprep.subr.bf16.mxu0 0
  %2898 = vmatpush1.bf16.msra.mxu0 %v2865
  %2899 = vmatprep.subr.bf16.mxu0 0
  %2900 = vmatpush1.bf16.msra.mxu0 %v2866
  %2901 = vmatprep.subr.bf16.mxu0 0
  %2902 = vmatpush1.bf16.msra.mxu0 %v2867
  %2903 = vmatprep.subr.bf16.mxu0 0
  %2904 = vmatpush1.bf16.msra.mxu0 %v2868
  %2905 = vmatprep.subr.bf16.mxu0 0
  %2906 = vmatpush1.bf16.msra.mxu0 %v2869
  %2907 = vmatprep.subr.bf16.mxu0 0
  %2908 = vmatpush1.bf16.msra.mxu0 %v2870
  %2909 = vmatprep.subr.bf16.mxu0 0
  %2910 = vmatpush1.bf16.msra.mxu0 %v2871
  %2911 = vmatprep.subr.bf16.mxu0 0
  %2912 = vmatpush1.bf16.msra.mxu0 %v2872
  %2913 = vmatprep.subr.bf16.mxu0 0
  %2914 = vmatpush1.bf16.msra.mxu0 %v2873
  %2915 = vmatprep.subr.bf16.mxu0 0
  %2916 = vmatpush1.bf16.msra.mxu0 %v2874
  %2917 = vmatprep.subr.bf16.mxu0 0
  %2918 = vmatpush1.bf16.msra.mxu0 %v2875
  %2919 = vmatprep.subr.bf16.mxu0 0
  %2920 = vmatpush1.bf16.msra.mxu0 %v2876
  %2921 = vmatprep.subr.bf16.mxu0 0
  %2922 = vmatpush1.bf16.msra.mxu0 %v2877
  %2923 = vmatprep.subr.bf16.mxu0 0
  %2924 = vmatpush1.bf16.msra.mxu0 %v2878
  %2925 = vmatprep.subr.bf16.mxu0 0
  %2926 = vmatpush1.bf16.msra.mxu0 %v2879
  %2927 = vmatprep.subr.bf16.mxu0 0
  %2928 = vmatpush1.bf16.msra.mxu0 %v2880
  %2929 = vmatprep.mubr.bf16.mxu0 %v2761
  %2930 = vmatmul.mubr.bf16.gmra.mrb[0].mxu0 %v2760
  %v2931 = vpop.f32.mrb[0].mxu0
  %v2932 = vadd.f32 %v2799, %v2931
  %v2933 = vpop.f32.mrb[0].mxu0
  %v2934 = vpop.f32.mrb[0].mxu0
  %v2935 = vpop.f32.mrb[0].mxu0
  %2936 = vdwg.mxu0
  %v2937 = vxor.u32 %v2932, 2147483648
  %v2938 = vmul.f32 %v2937, 1.442695
  %v2939 = vpow.pop %v2938
  %v2940 = vadd.f32 %v2939, 1.0
  %v2941 = vrcp.pop %v2940
  %v2942 = vmul.f32 1.0, %v2941
  %vm2943 = vcmask 7168
  %2944 = vst.msk [vmem:[%s9] sm:$0xff] %vm2943, %v2942
  // Predicated region
  $region38: #{bilstm_classifier.1} parent=0 // pred_check
    _
  $region39: #{bilstm_classifier.1} parent=0 // pred_check_branch
    %2946 = sbr.rel (0) target = $region41
  $region40: #{bilstm_classifier.1} parent=0 // pred_region
    _
  $region41: #{bilstm_classifier.1} parent=0 // pred_fallthru
    _
  // Predicated region
  $region42: #{bilstm_classifier.1} parent=0 // pred_check
    _
  $region43: #{bilstm_classifier.1} parent=0 // pred_check_branch
    %2948 = sbr.rel (0) target = $region45
  $region44: #{bilstm_classifier.1} parent=0 // pred_region
    _
  $region45: #{bilstm_classifier.1} parent=0 // pred_fallthru
    _

</llo_original>
